<compile_context>
chip_gen: v5e
topology: v5e:2x2
jax: 0.10.0
libtpu: 0.0.40
codegen_flags: <defaults>
</compile_context>

<pallas_src>
import jax
import jax.numpy as jnp
from jax import lax
from jax.experimental import pallas as pl
from jax.experimental.pallas import tpu as pltpu


# ------------------------------ Pallas kernel -------------------------------

def _make_bilstm_kernel(T, B, H, n_layers):
    G = 4 * H       # gate width, one direction
    G2 = 8 * H      # gate width, both directions (lane-dense when H=16)

    def kernel(*refs):
        lens_ref = refs[0]                              # (B, 1) int32, VMEM
        x_ref = refs[1]                                 # (T, B, Din)
        w_refs = refs[2:2 + 4 * n_layers]               # per layer: Wih, Whh_f, Whh_b, b
        out_ref = refs[2 + 4 * n_layers]                # (T, B, 2H)
        gx_ref = refs[3 + 4 * n_layers]                 # scratch (T, B, 8H)
        act_ref = refs[4 + 4 * n_layers]                # scratch (T, B, 2H)

        lens_col = lens_ref[...]                        # (B, 1) int32, loaded once

        for layer in range(n_layers):
            wih_ref, whhf_ref, whhb_ref, b_ref = w_refs[4 * layer:4 * layer + 4]
            src_ref = x_ref if layer == 0 else act_ref
            dst_ref = out_ref if layer == n_layers - 1 else act_ref

            # ---- hoisted input projection (both directions), off the serial path
            w_ih = wih_ref[...]                         # (Din_l, 8H), loaded once
            bias = b_ref[...]                           # (1, 8H),   loaded once
            for t in range(T):                          # static, fully parallel work
                gx_ref[t] = jnp.dot(src_ref[t], w_ih,
                                    preferred_element_type=jnp.float32) + bias

            # ---- serial recurrence: forward and backward interleaved per step
            w_hh_f = whhf_ref[...]                      # (H, 4H)
            w_hh_b = whhb_ref[...]

            def step(s, carry):
                h_f, c_f, h_b, c_b = carry
                t_b = T - 1 - s

                g_f = gx_ref[s, :, 0:G] + jnp.dot(
                    h_f, w_hh_f, preferred_element_type=jnp.float32)
                g_b = gx_ref[t_b, :, G:G2] + jnp.dot(
                    h_b, w_hh_b, preferred_element_type=jnp.float32)

                def cell(g, c_prev):                    # PyTorch gate order: i, f, g, o
                    i_g = jax.nn.sigmoid(g[:, 0 * H:1 * H])
                    f_g = jax.nn.sigmoid(g[:, 1 * H:2 * H])
                    g_g = jnp.tanh(g[:, 2 * H:3 * H])
                    o_g = jax.nn.sigmoid(g[:, 3 * H:4 * H])
                    c_new = f_g * c_prev + i_g * g_g
                    h_new = o_g * jnp.tanh(c_new)
                    return h_new, c_new

                h_f_new, c_f_new = cell(g_f, c_f)
                h_b_new, c_b_new = cell(g_b, c_b)

                # validity mask (emulates pack/pad_packed): freeze state, zero output
                m_f = s < lens_col                      # (B, 1) bool
                m_b = t_b < lens_col

                dst_ref[s, :, 0:H] = jnp.where(m_f, h_f_new, 0.0)
                dst_ref[t_b, :, H:2 * H] = jnp.where(m_b, h_b_new, 0.0)

                return (jnp.where(m_f, h_f_new, h_f),
                        jnp.where(m_f, c_f_new, c_f),
                        jnp.where(m_b, h_b_new, h_b),
                        jnp.where(m_b, c_b_new, c_b))

            zeros = jnp.zeros((B, H), jnp.float32)
            lax.fori_loop(0, T, step, (zeros, zeros, zeros, zeros), unroll=True)

    return kernel


def _zero_map(ndim):
    return lambda i: (0,) * ndim


def _bilstm_stack(x_tbd, lens_col, params):
    """x_tbd: [T, B, Din] f32; lens_col: [B, 1] int32 -> [T, B, 2H] f32."""
    T, B, _ = x_tbd.shape
    H = params[0]["w_hh_f"].shape[0]
    n_layers = len(params)

    weights = []
    for p in params:
        weights += [p["w_ih"], p["w_hh_f"], p["w_hh_b"], p["b"]]

    in_arrays = [lens_col, x_tbd] + weights
    in_specs = [pl.BlockSpec(a.shape, _zero_map(a.ndim)) for a in in_arrays]

    return pl.pallas_call(
        _make_bilstm_kernel(T, B, H, n_layers),
        out_shape=jax.ShapeDtypeStruct((T, B, 2 * H), jnp.float32),
        grid=(1,),
        in_specs=in_specs,
        out_specs=pl.BlockSpec((T, B, 2 * H), _zero_map(3)),
        scratch_shapes=[
            pltpu.VMEM((T, B, 8 * H), jnp.float32),   # hoisted gate projections
            pltpu.VMEM((T, B, 2 * H), jnp.float32),   # inter-layer activations
        ],
        compiler_params=pltpu.CompilerParams(dimension_semantics=("arbitrary",)),
    )(*in_arrays)


# --------------------------- parameters / wrapper ----------------------------

def init_bilstm_params(key, d_input, d_hid, n_layers):
    assert d_hid % 2 == 0
    H = d_hid // 2
    bound = 1.0 / (H ** 0.5)    # PyTorch nn.LSTM default: U(-1/sqrt(H), 1/sqrt(H))
    params = []
    for layer in range(n_layers):
        in_l = d_input if layer == 0 else 2 * H
        w_ih_dirs, w_hh_dirs, b_dirs = [], [], []
        for _direction in range(2):       # 0 = forward, 1 = reverse
            key, k1, k2, k3, k4 = jax.random.split(key, 5)
            w_ih = jax.random.uniform(k1, (4 * H, in_l), jnp.float32, -bound, bound)
            w_hh = jax.random.uniform(k2, (4 * H, H), jnp.float32, -bound, bound)
            b_ih = jax.random.uniform(k3, (4 * H,), jnp.float32, -bound, bound)
            b_hh = jax.random.uniform(k4, (4 * H,), jnp.float32, -bound, bound)
            w_ih_dirs.append(w_ih.T)       # (in_l, 4H)
            w_hh_dirs.append(w_hh.T)       # (H, 4H)
            b_dirs.append(b_ih + b_hh)     # (4H,)
        params.append({
            "w_ih": jnp.concatenate(w_ih_dirs, axis=1),    # (in_l, 8H)  fwd|bwd
            "w_hh_f": w_hh_dirs[0],                        # (H, 4H)
            "w_hh_b": w_hh_dirs[1],                        # (H, 4H)
            "b": jnp.concatenate(b_dirs)[None, :],         # (1, 8H)
        })
    return params


@jax.jit
def bilstm_layer_forward(in_seqs, in_lens, params):
    """in_seqs: [B, T, d_input] f32; in_lens: [B] int -> [B, T, d_hid] f32."""
    B, T, _ = in_seqs.shape
    x = jnp.transpose(in_seqs, (1, 0, 2)).astype(jnp.float32)     # [T, B, Din]
    lens_col = in_lens.astype(jnp.int32).reshape(B, 1)            # [B, 1]
    out = _bilstm_stack(x, lens_col, params)                      # [T, B, 2H]
    # TODO(synk): inter-layer dropout would go here, but the reference module
    # never enables it (dropout lands in nn.LSTM's `bias` positional arg).
    return jnp.transpose(out, (1, 0, 2))                          # [B, T, d_hid]


# -------------------------------- pure-JAX ref --------------------------------

def _ref_lstm_direction(x, mask, w_ih, w_hh, bias, reverse):
    T, B, _ = x.shape
    H = w_hh.shape[0]
    h = jnp.zeros((B, H), jnp.float32)
    c = jnp.zeros((B, H), jnp.float32)
    outs = [None] * T
    order = range(T - 1, -1, -1) if reverse else range(T)
    for t in order:
        gates = x[t] @ w_ih + h @ w_hh + bias
        i_g = jax.nn.sigmoid(gates[:, 0 * H:1 * H])
        f_g = jax.nn.sigmoid(gates[:, 1 * H:2 * H])
        g_g = jnp.tanh(gates[:, 2 * H:3 * H])
        o_g = jax.nn.sigmoid(gates[:, 3 * H:4 * H])
        c_new = f_g * c + i_g * g_g
        h_new = o_g * jnp.tanh(c_new)
        m = mask[t]
        c = m * c_new + (1.0 - m) * c
        h = m * h_new + (1.0 - m) * h
        outs[t] = m * h_new
    return jnp.stack(outs, axis=0)


def _ref_bilstm(in_seqs, in_lens, params):
    B, T, _ = in_seqs.shape
    x = jnp.transpose(in_seqs, (1, 0, 2)).astype(jnp.float32)
    mask = (jnp.arange(T)[:, None] < in_lens[None, :]).astype(jnp.float32)[:, :, None]
    for p in params:
        H = p["w_hh_f"].shape[0]
        G = 4 * H
        fwd = _ref_lstm_direction(x, mask, p["w_ih"][:, :G], p["w_hh_f"],
                                  p["b"][:, :G], reverse=False)
        bwd = _ref_lstm_direction(x, mask, p["w_ih"][:, G:], p["w_hh_b"],
                                  p["b"][:, G:], reverse=True)
        x = jnp.concatenate([fwd, bwd], axis=-1)
    return jnp.transpose(x, (1, 0, 2))


# ------------------------------------ main ------------------------------------

if __name__ == "__main__":
    d_input, d_hid, n_layers, dropout = 16, 32, 2, 0.5
    batch, seq_len = 4, 8

    key = jax.random.PRNGKey(0)
    key, k_x = jax.random.split(key)
    in_seqs = jax.random.normal(k_x, (batch, seq_len, d_input), jnp.float32)
    in_lens = jnp.array([8, 5, 3, 8], jnp.int32)

    params = init_bilstm_params(jax.random.PRNGKey(42), d_input, d_hid, n_layers)

    out = bilstm_layer_forward(in_seqs, in_lens, params)
    out = jax.block_until_ready(out)
    assert out.shape == (batch, seq_len, d_hid), out.shape

    ref = jax.block_until_ready(_ref_bilstm(in_seqs, in_lens, params))
    assert jnp.allclose(out, ref, rtol=1e-4, atol=1e-4), float(jnp.max(jnp.abs(out - ref)))

    print("KERNEL_OK")
</pallas_src>

<mosaic_0001>
module attributes {stable_mosaic.version = 11 : i64} {
  func.func @kernel(%arg0: i32, %arg1: memref<4x1xi32, #tpu.memory_space<vmem>>, %arg2: memref<8x4x16xf32, #tpu.memory_space<vmem>>, %arg3: memref<16x128xf32, #tpu.memory_space<vmem>>, %arg4: memref<16x64xf32, #tpu.memory_space<vmem>>, %arg5: memref<16x64xf32, #tpu.memory_space<vmem>>, %arg6: memref<1x128xf32, #tpu.memory_space<vmem>>, %arg7: memref<32x128xf32, #tpu.memory_space<vmem>>, %arg8: memref<16x64xf32, #tpu.memory_space<vmem>>, %arg9: memref<16x64xf32, #tpu.memory_space<vmem>>, %arg10: memref<1x128xf32, #tpu.memory_space<vmem>>, %arg11: memref<8x4x32xf32, #tpu.memory_space<vmem>>, %arg12: memref<8x4x128xf32, #tpu.memory_space<vmem>>, %arg13: memref<8x4x32xf32, #tpu.memory_space<vmem>>) attributes {dimension_semantics = [#tpu.dimension_semantics<arbitrary>], iteration_bounds = array<i64: 1>, scalar_prefetch = 0 : i64, scratch_operands = 2 : i64, tpu.core_type = #tpu.core_type<tc>, window_params = [{pipeline_mode = #tpu.pipeline_mode<synchronous>, transform_indices = @transform_0, window_bounds = array<i64: 4, 1>}, {pipeline_mode = #tpu.pipeline_mode<synchronous>, transform_indices = @transform_1, window_bounds = array<i64: 8, 4, 16>}, {pipeline_mode = #tpu.pipeline_mode<synchronous>, transform_indices = @transform_2, window_bounds = array<i64: 16, 128>}, {pipeline_mode = #tpu.pipeline_mode<synchronous>, transform_indices = @transform_3, window_bounds = array<i64: 16, 64>}, {pipeline_mode = #tpu.pipeline_mode<synchronous>, transform_indices = @transform_4, window_bounds = array<i64: 16, 64>}, {pipeline_mode = #tpu.pipeline_mode<synchronous>, transform_indices = @transform_5, window_bounds = array<i64: 1, 128>}, {pipeline_mode = #tpu.pipeline_mode<synchronous>, transform_indices = @transform_6, window_bounds = array<i64: 32, 128>}, {pipeline_mode = #tpu.pipeline_mode<synchronous>, transform_indices = @transform_7, window_bounds = array<i64: 16, 64>}, {pipeline_mode = #tpu.pipeline_mode<synchronous>, transform_indices = @transform_8, window_bounds = array<i64: 16, 64>}, {pipeline_mode = #tpu.pipeline_mode<synchronous>, transform_indices = @transform_9, window_bounds = array<i64: 1, 128>}, {pipeline_mode = #tpu.pipeline_mode<synchronous>, transform_indices = @transform_10, window_bounds = array<i64: 8, 4, 32>}]} {
    %c0 = arith.constant 0 : index
    %c0_0 = arith.constant 0 : index
    %0 = vector.load %arg1[%c0, %c0_0] : memref<4x1xi32, #tpu.memory_space<vmem>>, vector<4x1xi32>
    %c0_1 = arith.constant 0 : index
    %c0_2 = arith.constant 0 : index
    %1 = vector.load %arg3[%c0_1, %c0_2] : memref<16x128xf32, #tpu.memory_space<vmem>>, vector<16x128xf32>
    %c0_3 = arith.constant 0 : index
    %c0_4 = arith.constant 0 : index
    %2 = vector.load %arg6[%c0_3, %c0_4] : memref<1x128xf32, #tpu.memory_space<vmem>>, vector<1x128xf32>
    %c0_5 = arith.constant 0 : index
    %c0_6 = arith.constant 0 : index
    %c0_7 = arith.constant 0 : index
    %3 = vector.load %arg2[%c0_5, %c0_6, %c0_7] : memref<8x4x16xf32, #tpu.memory_space<vmem>>, vector<1x4x16xf32>
    %4 = vector.shape_cast %3 : vector<1x4x16xf32> to vector<4x16xf32>
    %cst = arith.constant dense<0.000000e+00> : vector<4x128xf32>
    %5 = tpu.matmul %4, %1, %cst {dimension_numbers = #tpu.dot_dimension_numbers<[1], [0], [0], [1], [0, 0, 1, 1], [], []>} : vector<4x16xf32>, vector<16x128xf32>, vector<4x128xf32> -> vector<4x128xf32>
    %6 = vector.broadcast %2 : vector<1x128xf32> to vector<4x128xf32>
    %7 = arith.addf %5, %6 : vector<4x128xf32>
    %c0_8 = arith.constant 0 : index
    %c0_9 = arith.constant 0 : index
    %c0_10 = arith.constant 0 : index
    %8 = vector.load %arg12[%c0_8, %c0_9, %c0_10] : memref<8x4x128xf32, #tpu.memory_space<vmem>>, vector<1x4x128xf32>
    %9 = vector.shape_cast %8 : vector<1x4x128xf32> to vector<4x128xf32>
    %10 = vector.shape_cast %7 : vector<4x128xf32> to vector<1x4x128xf32>
    tpu.vector_store %arg12[%c0_8, %c0_9, %c0_10], %10 {strides = array<i32>} : memref<8x4x128xf32, #tpu.memory_space<vmem>>, vector<1x4x128xf32>,
    %c1 = arith.constant 1 : index
    %c0_11 = arith.constant 0 : index
    %c0_12 = arith.constant 0 : index
    %11 = vector.load %arg2[%c1, %c0_11, %c0_12] : memref<8x4x16xf32, #tpu.memory_space<vmem>>, vector<1x4x16xf32>
    %12 = vector.shape_cast %11 : vector<1x4x16xf32> to vector<4x16xf32>
    %cst_13 = arith.constant dense<0.000000e+00> : vector<4x128xf32>
    %13 = tpu.matmul %12, %1, %cst_13 {dimension_numbers = #tpu.dot_dimension_numbers<[1], [0], [0], [1], [0, 0, 1, 1], [], []>} : vector<4x16xf32>, vector<16x128xf32>, vector<4x128xf32> -> vector<4x128xf32>
    %14 = vector.broadcast %2 : vector<1x128xf32> to vector<4x128xf32>
    %15 = arith.addf %13, %14 : vector<4x128xf32>
    %c1_14 = arith.constant 1 : index
    %c0_15 = arith.constant 0 : index
    %c0_16 = arith.constant 0 : index
    %16 = vector.load %arg12[%c1_14, %c0_15, %c0_16] : memref<8x4x128xf32, #tpu.memory_space<vmem>>, vector<1x4x128xf32>
    %17 = vector.shape_cast %16 : vector<1x4x128xf32> to vector<4x128xf32>
    %18 = vector.shape_cast %15 : vector<4x128xf32> to vector<1x4x128xf32>
    tpu.vector_store %arg12[%c1_14, %c0_15, %c0_16], %18 {strides = array<i32>} : memref<8x4x128xf32, #tpu.memory_space<vmem>>, vector<1x4x128xf32>,
    %c2 = arith.constant 2 : index
    %c0_17 = arith.constant 0 : index
    %c0_18 = arith.constant 0 : index
    %19 = vector.load %arg2[%c2, %c0_17, %c0_18] : memref<8x4x16xf32, #tpu.memory_space<vmem>>, vector<1x4x16xf32>
    %20 = vector.shape_cast %19 : vector<1x4x16xf32> to vector<4x16xf32>
    %cst_19 = arith.constant dense<0.000000e+00> : vector<4x128xf32>
    %21 = tpu.matmul %20, %1, %cst_19 {dimension_numbers = #tpu.dot_dimension_numbers<[1], [0], [0], [1], [0, 0, 1, 1], [], []>} : vector<4x16xf32>, vector<16x128xf32>, vector<4x128xf32> -> vector<4x128xf32>
    %22 = vector.broadcast %2 : vector<1x128xf32> to vector<4x128xf32>
    %23 = arith.addf %21, %22 : vector<4x128xf32>
    %c2_20 = arith.constant 2 : index
    %c0_21 = arith.constant 0 : index
    %c0_22 = arith.constant 0 : index
    %24 = vector.load %arg12[%c2_20, %c0_21, %c0_22] : memref<8x4x128xf32, #tpu.memory_space<vmem>>, vector<1x4x128xf32>
    %25 = vector.shape_cast %24 : vector<1x4x128xf32> to vector<4x128xf32>
    %26 = vector.shape_cast %23 : vector<4x128xf32> to vector<1x4x128xf32>
    tpu.vector_store %arg12[%c2_20, %c0_21, %c0_22], %26 {strides = array<i32>} : memref<8x4x128xf32, #tpu.memory_space<vmem>>, vector<1x4x128xf32>,
    %c3 = arith.constant 3 : index
    %c0_23 = arith.constant 0 : index
    %c0_24 = arith.constant 0 : index
    %27 = vector.load %arg2[%c3, %c0_23, %c0_24] : memref<8x4x16xf32, #tpu.memory_space<vmem>>, vector<1x4x16xf32>
    %28 = vector.shape_cast %27 : vector<1x4x16xf32> to vector<4x16xf32>
    %cst_25 = arith.constant dense<0.000000e+00> : vector<4x128xf32>
    %29 = tpu.matmul %28, %1, %cst_25 {dimension_numbers = #tpu.dot_dimension_numbers<[1], [0], [0], [1], [0, 0, 1, 1], [], []>} : vector<4x16xf32>, vector<16x128xf32>, vector<4x128xf32> -> vector<4x128xf32>
    %30 = vector.broadcast %2 : vector<1x128xf32> to vector<4x128xf32>
    %31 = arith.addf %29, %30 : vector<4x128xf32>
    %c3_26 = arith.constant 3 : index
    %c0_27 = arith.constant 0 : index
    %c0_28 = arith.constant 0 : index
    %32 = vector.load %arg12[%c3_26, %c0_27, %c0_28] : memref<8x4x128xf32, #tpu.memory_space<vmem>>, vector<1x4x128xf32>
    %33 = vector.shape_cast %32 : vector<1x4x128xf32> to vector<4x128xf32>
    %34 = vector.shape_cast %31 : vector<4x128xf32> to vector<1x4x128xf32>
    tpu.vector_store %arg12[%c3_26, %c0_27, %c0_28], %34 {strides = array<i32>} : memref<8x4x128xf32, #tpu.memory_space<vmem>>, vector<1x4x128xf32>,
    %c4 = arith.constant 4 : index
    %c0_29 = arith.constant 0 : index
    %c0_30 = arith.constant 0 : index
    %35 = vector.load %arg2[%c4, %c0_29, %c0_30] : memref<8x4x16xf32, #tpu.memory_space<vmem>>, vector<1x4x16xf32>
    %36 = vector.shape_cast %35 : vector<1x4x16xf32> to vector<4x16xf32>
    %cst_31 = arith.constant dense<0.000000e+00> : vector<4x128xf32>
    %37 = tpu.matmul %36, %1, %cst_31 {dimension_numbers = #tpu.dot_dimension_numbers<[1], [0], [0], [1], [0, 0, 1, 1], [], []>} : vector<4x16xf32>, vector<16x128xf32>, vector<4x128xf32> -> vector<4x128xf32>
    %38 = vector.broadcast %2 : vector<1x128xf32> to vector<4x128xf32>
    %39 = arith.addf %37, %38 : vector<4x128xf32>
    %c4_32 = arith.constant 4 : index
    %c0_33 = arith.constant 0 : index
    %c0_34 = arith.constant 0 : index
    %40 = vector.load %arg12[%c4_32, %c0_33, %c0_34] : memref<8x4x128xf32, #tpu.memory_space<vmem>>, vector<1x4x128xf32>
    %41 = vector.shape_cast %40 : vector<1x4x128xf32> to vector<4x128xf32>
    %42 = vector.shape_cast %39 : vector<4x128xf32> to vector<1x4x128xf32>
    tpu.vector_store %arg12[%c4_32, %c0_33, %c0_34], %42 {strides = array<i32>} : memref<8x4x128xf32, #tpu.memory_space<vmem>>, vector<1x4x128xf32>,
    %c5 = arith.constant 5 : index
    %c0_35 = arith.constant 0 : index
    %c0_36 = arith.constant 0 : index
    %43 = vector.load %arg2[%c5, %c0_35, %c0_36] : memref<8x4x16xf32, #tpu.memory_space<vmem>>, vector<1x4x16xf32>
    %44 = vector.shape_cast %43 : vector<1x4x16xf32> to vector<4x16xf32>
    %cst_37 = arith.constant dense<0.000000e+00> : vector<4x128xf32>
    %45 = tpu.matmul %44, %1, %cst_37 {dimension_numbers = #tpu.dot_dimension_numbers<[1], [0], [0], [1], [0, 0, 1, 1], [], []>} : vector<4x16xf32>, vector<16x128xf32>, vector<4x128xf32> -> vector<4x128xf32>
    %46 = vector.broadcast %2 : vector<1x128xf32> to vector<4x128xf32>
    %47 = arith.addf %45, %46 : vector<4x128xf32>
    %c5_38 = arith.constant 5 : index
    %c0_39 = arith.constant 0 : index
    %c0_40 = arith.constant 0 : index
    %48 = vector.load %arg12[%c5_38, %c0_39, %c0_40] : memref<8x4x128xf32, #tpu.memory_space<vmem>>, vector<1x4x128xf32>
    %49 = vector.shape_cast %48 : vector<1x4x128xf32> to vector<4x128xf32>
    %50 = vector.shape_cast %47 : vector<4x128xf32> to vector<1x4x128xf32>
    tpu.vector_store %arg12[%c5_38, %c0_39, %c0_40], %50 {strides = array<i32>} : memref<8x4x128xf32, #tpu.memory_space<vmem>>, vector<1x4x128xf32>,
    %c6 = arith.constant 6 : index
    %c0_41 = arith.constant 0 : index
    %c0_42 = arith.constant 0 : index
    %51 = vector.load %arg2[%c6, %c0_41, %c0_42] : memref<8x4x16xf32, #tpu.memory_space<vmem>>, vector<1x4x16xf32>
    %52 = vector.shape_cast %51 : vector<1x4x16xf32> to vector<4x16xf32>
    %cst_43 = arith.constant dense<0.000000e+00> : vector<4x128xf32>
    %53 = tpu.matmul %52, %1, %cst_43 {dimension_numbers = #tpu.dot_dimension_numbers<[1], [0], [0], [1], [0, 0, 1, 1], [], []>} : vector<4x16xf32>, vector<16x128xf32>, vector<4x128xf32> -> vector<4x128xf32>
    %54 = vector.broadcast %2 : vector<1x128xf32> to vector<4x128xf32>
    %55 = arith.addf %53, %54 : vector<4x128xf32>
    %c6_44 = arith.constant 6 : index
    %c0_45 = arith.constant 0 : index
    %c0_46 = arith.constant 0 : index
    %56 = vector.load %arg12[%c6_44, %c0_45, %c0_46] : memref<8x4x128xf32, #tpu.memory_space<vmem>>, vector<1x4x128xf32>
    %57 = vector.shape_cast %56 : vector<1x4x128xf32> to vector<4x128xf32>
    %58 = vector.shape_cast %55 : vector<4x128xf32> to vector<1x4x128xf32>
    tpu.vector_store %arg12[%c6_44, %c0_45, %c0_46], %58 {strides = array<i32>} : memref<8x4x128xf32, #tpu.memory_space<vmem>>, vector<1x4x128xf32>,
    %c7 = arith.constant 7 : index
    %c0_47 = arith.constant 0 : index
    %c0_48 = arith.constant 0 : index
    %59 = vector.load %arg2[%c7, %c0_47, %c0_48] : memref<8x4x16xf32, #tpu.memory_space<vmem>>, vector<1x4x16xf32>
    %60 = vector.shape_cast %59 : vector<1x4x16xf32> to vector<4x16xf32>
    %cst_49 = arith.constant dense<0.000000e+00> : vector<4x128xf32>
    %61 = tpu.matmul %60, %1, %cst_49 {dimension_numbers = #tpu.dot_dimension_numbers<[1], [0], [0], [1], [0, 0, 1, 1], [], []>} : vector<4x16xf32>, vector<16x128xf32>, vector<4x128xf32> -> vector<4x128xf32>
    %62 = vector.broadcast %2 : vector<1x128xf32> to vector<4x128xf32>
    %63 = arith.addf %61, %62 : vector<4x128xf32>
    %c7_50 = arith.constant 7 : index
    %c0_51 = arith.constant 0 : index
    %c0_52 = arith.constant 0 : index
    %64 = vector.load %arg12[%c7_50, %c0_51, %c0_52] : memref<8x4x128xf32, #tpu.memory_space<vmem>>, vector<1x4x128xf32>
    %65 = vector.shape_cast %64 : vector<1x4x128xf32> to vector<4x128xf32>
    %66 = vector.shape_cast %63 : vector<4x128xf32> to vector<1x4x128xf32>
    tpu.vector_store %arg12[%c7_50, %c0_51, %c0_52], %66 {strides = array<i32>} : memref<8x4x128xf32, #tpu.memory_space<vmem>>, vector<1x4x128xf32>,
    %c0_53 = arith.constant 0 : index
    %c0_54 = arith.constant 0 : index
    %67 = vector.load %arg4[%c0_53, %c0_54] : memref<16x64xf32, #tpu.memory_space<vmem>>, vector<16x64xf32>
    %c0_55 = arith.constant 0 : index
    %c0_56 = arith.constant 0 : index
    %68 = vector.load %arg5[%c0_55, %c0_56] : memref<16x64xf32, #tpu.memory_space<vmem>>, vector<16x64xf32>
    %cst_57 = arith.constant 0.000000e+00 : f32
    %69 = vector.broadcast %cst_57 : f32 to vector<4x16xf32>
    %c0_i32 = arith.constant 0 : i32
    %c7_i32 = arith.constant 7 : i32
    %70 = arith.subi %c7_i32, %c0_i32 : i32
    %71 = arith.index_cast %c0_i32 : i32 to index
    %c0_58 = arith.constant 0 : index
    %c0_59 = arith.constant 0 : index
    %72 = vector.load %arg12[%71, %c0_58, %c0_59] : memref<8x4x128xf32, #tpu.memory_space<vmem>>, vector<1x4x64xf32>
    %73 = vector.shape_cast %72 : vector<1x4x64xf32> to vector<4x64xf32>
    %cst_60 = arith.constant dense<0.000000e+00> : vector<4x64xf32>
    %74 = tpu.matmul %69, %67, %cst_60 {dimension_numbers = #tpu.dot_dimension_numbers<[1], [0], [0], [1], [0, 0, 1, 1], [], []>} : vector<4x16xf32>, vector<16x64xf32>, vector<4x64xf32> -> vector<4x64xf32>
    %75 = arith.addf %73, %74 : vector<4x64xf32>
    %76 = arith.index_cast %70 : i32 to index
    %c0_61 = arith.constant 0 : index
    %c64 = arith.constant 64 : index
    %77 = vector.load %arg12[%76, %c0_61, %c64] : memref<8x4x128xf32, #tpu.memory_space<vmem>>, vector<1x4x64xf32>
    %78 = vector.shape_cast %77 : vector<1x4x64xf32> to vector<4x64xf32>
    %cst_62 = arith.constant dense<0.000000e+00> : vector<4x64xf32>
    %79 = tpu.matmul %69, %68, %cst_62 {dimension_numbers = #tpu.dot_dimension_numbers<[1], [0], [0], [1], [0, 0, 1, 1], [], []>} : vector<4x16xf32>, vector<16x64xf32>, vector<4x64xf32> -> vector<4x64xf32>
    %80 = arith.addf %78, %79 : vector<4x64xf32>
    %81 = vector.extract_strided_slice %75 {offsets = [0, 0], sizes = [4, 16], strides = [1, 1]} : vector<4x64xf32> to vector<4x16xf32>
    %82 = arith.negf %81 : vector<4x16xf32>
    %83 = math.exp %82 : vector<4x16xf32>
    %cst_63 = arith.constant 1.000000e+00 : f32
    %84 = vector.broadcast %cst_63 : f32 to vector<4x16xf32>
    %85 = arith.addf %84, %83 : vector<4x16xf32>
    %86 = arith.divf %84, %85 : vector<4x16xf32>
    %87 = vector.extract_strided_slice %75 {offsets = [0, 16], sizes = [4, 16], strides = [1, 1]} : vector<4x64xf32> to vector<4x16xf32>
    %88 = arith.negf %87 : vector<4x16xf32>
    %89 = math.exp %88 : vector<4x16xf32>
    %cst_64 = arith.constant 1.000000e+00 : f32
    %90 = vector.broadcast %cst_64 : f32 to vector<4x16xf32>
    %91 = arith.addf %90, %89 : vector<4x16xf32>
    %92 = arith.divf %90, %91 : vector<4x16xf32>
    %93 = vector.extract_strided_slice %75 {offsets = [0, 32], sizes = [4, 16], strides = [1, 1]} : vector<4x64xf32> to vector<4x16xf32>
    %94 = math.tanh %93 : vector<4x16xf32>
    %95 = vector.extract_strided_slice %75 {offsets = [0, 48], sizes = [4, 16], strides = [1, 1]} : vector<4x64xf32> to vector<4x16xf32>
    %96 = arith.negf %95 : vector<4x16xf32>
    %97 = math.exp %96 : vector<4x16xf32>
    %cst_65 = arith.constant 1.000000e+00 : f32
    %98 = vector.broadcast %cst_65 : f32 to vector<4x16xf32>
    %99 = arith.addf %98, %97 : vector<4x16xf32>
    %100 = arith.divf %98, %99 : vector<4x16xf32>
    %101 = arith.mulf %92, %69 : vector<4x16xf32>
    %102 = arith.mulf %86, %94 : vector<4x16xf32>
    %103 = arith.addf %101, %102 : vector<4x16xf32>
    %104 = math.tanh %103 : vector<4x16xf32>
    %105 = arith.mulf %100, %104 : vector<4x16xf32>
    %106 = vector.extract_strided_slice %80 {offsets = [0, 0], sizes = [4, 16], strides = [1, 1]} : vector<4x64xf32> to vector<4x16xf32>
    %107 = arith.negf %106 : vector<4x16xf32>
    %108 = math.exp %107 : vector<4x16xf32>
    %cst_66 = arith.constant 1.000000e+00 : f32
    %109 = vector.broadcast %cst_66 : f32 to vector<4x16xf32>
    %110 = arith.addf %109, %108 : vector<4x16xf32>
    %111 = arith.divf %109, %110 : vector<4x16xf32>
    %112 = vector.extract_strided_slice %80 {offsets = [0, 16], sizes = [4, 16], strides = [1, 1]} : vector<4x64xf32> to vector<4x16xf32>
    %113 = arith.negf %112 : vector<4x16xf32>
    %114 = math.exp %113 : vector<4x16xf32>
    %cst_67 = arith.constant 1.000000e+00 : f32
    %115 = vector.broadcast %cst_67 : f32 to vector<4x16xf32>
    %116 = arith.addf %115, %114 : vector<4x16xf32>
    %117 = arith.divf %115, %116 : vector<4x16xf32>
    %118 = vector.extract_strided_slice %80 {offsets = [0, 32], sizes = [4, 16], strides = [1, 1]} : vector<4x64xf32> to vector<4x16xf32>
    %119 = math.tanh %118 : vector<4x16xf32>
    %120 = vector.extract_strided_slice %80 {offsets = [0, 48], sizes = [4, 16], strides = [1, 1]} : vector<4x64xf32> to vector<4x16xf32>
    %121 = arith.negf %120 : vector<4x16xf32>
    %122 = math.exp %121 : vector<4x16xf32>
    %cst_68 = arith.constant 1.000000e+00 : f32
    %123 = vector.broadcast %cst_68 : f32 to vector<4x16xf32>
    %124 = arith.addf %123, %122 : vector<4x16xf32>
    %125 = arith.divf %123, %124 : vector<4x16xf32>
    %126 = arith.mulf %117, %69 : vector<4x16xf32>
    %127 = arith.mulf %111, %119 : vector<4x16xf32>
    %128 = arith.addf %126, %127 : vector<4x16xf32>
    %129 = math.tanh %128 : vector<4x16xf32>
    %130 = arith.mulf %125, %129 : vector<4x16xf32>
    %131 = vector.broadcast %c0_i32 : i32 to vector<4x1xi32>
    %132 = arith.cmpi slt, %131, %0 : vector<4x1xi32>
    %133 = vector.broadcast %70 : i32 to vector<4x1xi32>
    %134 = arith.cmpi slt, %133, %0 : vector<4x1xi32>
    %cst_69 = arith.constant 0.000000e+00 : f32
    %135 = vector.shape_cast %132 : vector<4x1xi1> to vector<4x1xi1>
    %136 = vector.broadcast %135 : vector<4x1xi1> to vector<4x16xi1>
    %137 = vector.broadcast %cst_69 : f32 to vector<4x16xf32>
    %138 = arith.select %136, %105, %137 : vector<4x16xi1>, vector<4x16xf32>
    %139 = arith.index_cast %c0_i32 : i32 to index
    %c0_70 = arith.constant 0 : index
    %c0_71 = arith.constant 0 : index
    %140 = vector.load %arg13[%139, %c0_70, %c0_71] : memref<8x4x32xf32, #tpu.memory_space<vmem>>, vector<1x4x16xf32>
    %141 = vector.shape_cast %140 : vector<1x4x16xf32> to vector<4x16xf32>
    %142 = vector.shape_cast %138 : vector<4x16xf32> to vector<1x4x16xf32>
    tpu.vector_store %arg13[%139, %c0_70, %c0_71], %142 {strides = array<i32>} : memref<8x4x32xf32, #tpu.memory_space<vmem>>, vector<1x4x16xf32>,
    %cst_72 = arith.constant 0.000000e+00 : f32
    %143 = vector.shape_cast %134 : vector<4x1xi1> to vector<4x1xi1>
    %144 = vector.broadcast %143 : vector<4x1xi1> to vector<4x16xi1>
    %145 = vector.broadcast %cst_72 : f32 to vector<4x16xf32>
    %146 = arith.select %144, %130, %145 : vector<4x16xi1>, vector<4x16xf32>
    %147 = arith.index_cast %70 : i32 to index
    %c0_73 = arith.constant 0 : index
    %c16 = arith.constant 16 : index
    %148 = vector.load %arg13[%147, %c0_73, %c16] : memref<8x4x32xf32, #tpu.memory_space<vmem>>, vector<1x4x16xf32>
    %149 = vector.shape_cast %148 : vector<1x4x16xf32> to vector<4x16xf32>
    %150 = vector.shape_cast %146 : vector<4x16xf32> to vector<1x4x16xf32>
    tpu.vector_store %arg13[%147, %c0_73, %c16], %150 {strides = array<i32>} : memref<8x4x32xf32, #tpu.memory_space<vmem>>, vector<1x4x16xf32>,
    %151 = vector.shape_cast %132 : vector<4x1xi1> to vector<4x1xi1>
    %152 = vector.broadcast %151 : vector<4x1xi1> to vector<4x16xi1>
    %153 = arith.select %152, %105, %69 : vector<4x16xi1>, vector<4x16xf32>
    %154 = vector.shape_cast %132 : vector<4x1xi1> to vector<4x1xi1>
    %155 = vector.broadcast %154 : vector<4x1xi1> to vector<4x16xi1>
    %156 = arith.select %155, %103, %69 : vector<4x16xi1>, vector<4x16xf32>
    %157 = vector.shape_cast %134 : vector<4x1xi1> to vector<4x1xi1>
    %158 = vector.broadcast %157 : vector<4x1xi1> to vector<4x16xi1>
    %159 = arith.select %158, %130, %69 : vector<4x16xi1>, vector<4x16xf32>
    %160 = vector.shape_cast %134 : vector<4x1xi1> to vector<4x1xi1>
    %161 = vector.broadcast %160 : vector<4x1xi1> to vector<4x16xi1>
    %162 = arith.select %161, %128, %69 : vector<4x16xi1>, vector<4x16xf32>
    %c1_i32 = arith.constant 1 : i32
    %c7_i32_74 = arith.constant 7 : i32
    %163 = arith.subi %c7_i32_74, %c1_i32 : i32
    %164 = arith.index_cast %c1_i32 : i32 to index
    %c0_75 = arith.constant 0 : index
    %c0_76 = arith.constant 0 : index
    %165 = vector.load %arg12[%164, %c0_75, %c0_76] : memref<8x4x128xf32, #tpu.memory_space<vmem>>, vector<1x4x64xf32>
    %166 = vector.shape_cast %165 : vector<1x4x64xf32> to vector<4x64xf32>
    %cst_77 = arith.constant dense<0.000000e+00> : vector<4x64xf32>
    %167 = tpu.matmul %153, %67, %cst_77 {dimension_numbers = #tpu.dot_dimension_numbers<[1], [0], [0], [1], [0, 0, 1, 1], [], []>} : vector<4x16xf32>, vector<16x64xf32>, vector<4x64xf32> -> vector<4x64xf32>
    %168 = arith.addf %166, %167 : vector<4x64xf32>
    %169 = arith.index_cast %163 : i32 to index
    %c0_78 = arith.constant 0 : index
    %c64_79 = arith.constant 64 : index
    %170 = vector.load %arg12[%169, %c0_78, %c64_79] : memref<8x4x128xf32, #tpu.memory_space<vmem>>, vector<1x4x64xf32>
    %171 = vector.shape_cast %170 : vector<1x4x64xf32> to vector<4x64xf32>
    %cst_80 = arith.constant dense<0.000000e+00> : vector<4x64xf32>
    %172 = tpu.matmul %159, %68, %cst_80 {dimension_numbers = #tpu.dot_dimension_numbers<[1], [0], [0], [1], [0, 0, 1, 1], [], []>} : vector<4x16xf32>, vector<16x64xf32>, vector<4x64xf32> -> vector<4x64xf32>
    %173 = arith.addf %171, %172 : vector<4x64xf32>
    %174 = vector.extract_strided_slice %168 {offsets = [0, 0], sizes = [4, 16], strides = [1, 1]} : vector<4x64xf32> to vector<4x16xf32>
    %175 = arith.negf %174 : vector<4x16xf32>
    %176 = math.exp %175 : vector<4x16xf32>
    %cst_81 = arith.constant 1.000000e+00 : f32
    %177 = vector.broadcast %cst_81 : f32 to vector<4x16xf32>
    %178 = arith.addf %177, %176 : vector<4x16xf32>
    %179 = arith.divf %177, %178 : vector<4x16xf32>
    %180 = vector.extract_strided_slice %168 {offsets = [0, 16], sizes = [4, 16], strides = [1, 1]} : vector<4x64xf32> to vector<4x16xf32>
    %181 = arith.negf %180 : vector<4x16xf32>
    %182 = math.exp %181 : vector<4x16xf32>
    %cst_82 = arith.constant 1.000000e+00 : f32
    %183 = vector.broadcast %cst_82 : f32 to vector<4x16xf32>
    %184 = arith.addf %183, %182 : vector<4x16xf32>
    %185 = arith.divf %183, %184 : vector<4x16xf32>
    %186 = vector.extract_strided_slice %168 {offsets = [0, 32], sizes = [4, 16], strides = [1, 1]} : vector<4x64xf32> to vector<4x16xf32>
    %187 = math.tanh %186 : vector<4x16xf32>
    %188 = vector.extract_strided_slice %168 {offsets = [0, 48], sizes = [4, 16], strides = [1, 1]} : vector<4x64xf32> to vector<4x16xf32>
    %189 = arith.negf %188 : vector<4x16xf32>
    %190 = math.exp %189 : vector<4x16xf32>
    %cst_83 = arith.constant 1.000000e+00 : f32
    %191 = vector.broadcast %cst_83 : f32 to vector<4x16xf32>
    %192 = arith.addf %191, %190 : vector<4x16xf32>
    %193 = arith.divf %191, %192 : vector<4x16xf32>
    %194 = arith.mulf %185, %156 : vector<4x16xf32>
    %195 = arith.mulf %179, %187 : vector<4x16xf32>
    %196 = arith.addf %194, %195 : vector<4x16xf32>
    %197 = math.tanh %196 : vector<4x16xf32>
    %198 = arith.mulf %193, %197 : vector<4x16xf32>
    %199 = vector.extract_strided_slice %173 {offsets = [0, 0], sizes = [4, 16], strides = [1, 1]} : vector<4x64xf32> to vector<4x16xf32>
    %200 = arith.negf %199 : vector<4x16xf32>
    %201 = math.exp %200 : vector<4x16xf32>
    %cst_84 = arith.constant 1.000000e+00 : f32
    %202 = vector.broadcast %cst_84 : f32 to vector<4x16xf32>
    %203 = arith.addf %202, %201 : vector<4x16xf32>
    %204 = arith.divf %202, %203 : vector<4x16xf32>
    %205 = vector.extract_strided_slice %173 {offsets = [0, 16], sizes = [4, 16], strides = [1, 1]} : vector<4x64xf32> to vector<4x16xf32>
    %206 = arith.negf %205 : vector<4x16xf32>
    %207 = math.exp %206 : vector<4x16xf32>
    %cst_85 = arith.constant 1.000000e+00 : f32
    %208 = vector.broadcast %cst_85 : f32 to vector<4x16xf32>
    %209 = arith.addf %208, %207 : vector<4x16xf32>
    %210 = arith.divf %208, %209 : vector<4x16xf32>
    %211 = vector.extract_strided_slice %173 {offsets = [0, 32], sizes = [4, 16], strides = [1, 1]} : vector<4x64xf32> to vector<4x16xf32>
    %212 = math.tanh %211 : vector<4x16xf32>
    %213 = vector.extract_strided_slice %173 {offsets = [0, 48], sizes = [4, 16], strides = [1, 1]} : vector<4x64xf32> to vector<4x16xf32>
    %214 = arith.negf %213 : vector<4x16xf32>
    %215 = math.exp %214 : vector<4x16xf32>
    %cst_86 = arith.constant 1.000000e+00 : f32
    %216 = vector.broadcast %cst_86 : f32 to vector<4x16xf32>
    %217 = arith.addf %216, %215 : vector<4x16xf32>
    %218 = arith.divf %216, %217 : vector<4x16xf32>
    %219 = arith.mulf %210, %162 : vector<4x16xf32>
    %220 = arith.mulf %204, %212 : vector<4x16xf32>
    %221 = arith.addf %219, %220 : vector<4x16xf32>
    %222 = math.tanh %221 : vector<4x16xf32>
    %223 = arith.mulf %218, %222 : vector<4x16xf32>
    %224 = vector.broadcast %c1_i32 : i32 to vector<4x1xi32>
    %225 = arith.cmpi slt, %224, %0 : vector<4x1xi32>
    %226 = vector.broadcast %163 : i32 to vector<4x1xi32>
    %227 = arith.cmpi slt, %226, %0 : vector<4x1xi32>
    %cst_87 = arith.constant 0.000000e+00 : f32
    %228 = vector.shape_cast %225 : vector<4x1xi1> to vector<4x1xi1>
    %229 = vector.broadcast %228 : vector<4x1xi1> to vector<4x16xi1>
    %230 = vector.broadcast %cst_87 : f32 to vector<4x16xf32>
    %231 = arith.select %229, %198, %230 : vector<4x16xi1>, vector<4x16xf32>
    %232 = arith.index_cast %c1_i32 : i32 to index
    %c0_88 = arith.constant 0 : index
    %c0_89 = arith.constant 0 : index
    %233 = vector.load %arg13[%232, %c0_88, %c0_89] : memref<8x4x32xf32, #tpu.memory_space<vmem>>, vector<1x4x16xf32>
    %234 = vector.shape_cast %233 : vector<1x4x16xf32> to vector<4x16xf32>
    %235 = vector.shape_cast %231 : vector<4x16xf32> to vector<1x4x16xf32>
    tpu.vector_store %arg13[%232, %c0_88, %c0_89], %235 {strides = array<i32>} : memref<8x4x32xf32, #tpu.memory_space<vmem>>, vector<1x4x16xf32>,
    %cst_90 = arith.constant 0.000000e+00 : f32
    %236 = vector.shape_cast %227 : vector<4x1xi1> to vector<4x1xi1>
    %237 = vector.broadcast %236 : vector<4x1xi1> to vector<4x16xi1>
    %238 = vector.broadcast %cst_90 : f32 to vector<4x16xf32>
    %239 = arith.select %237, %223, %238 : vector<4x16xi1>, vector<4x16xf32>
    %240 = arith.index_cast %163 : i32 to index
    %c0_91 = arith.constant 0 : index
    %c16_92 = arith.constant 16 : index
    %241 = vector.load %arg13[%240, %c0_91, %c16_92] : memref<8x4x32xf32, #tpu.memory_space<vmem>>, vector<1x4x16xf32>
    %242 = vector.shape_cast %241 : vector<1x4x16xf32> to vector<4x16xf32>
    %243 = vector.shape_cast %239 : vector<4x16xf32> to vector<1x4x16xf32>
    tpu.vector_store %arg13[%240, %c0_91, %c16_92], %243 {strides = array<i32>} : memref<8x4x32xf32, #tpu.memory_space<vmem>>, vector<1x4x16xf32>,
    %244 = vector.shape_cast %225 : vector<4x1xi1> to vector<4x1xi1>
    %245 = vector.broadcast %244 : vector<4x1xi1> to vector<4x16xi1>
    %246 = arith.select %245, %198, %153 : vector<4x16xi1>, vector<4x16xf32>
    %247 = vector.shape_cast %225 : vector<4x1xi1> to vector<4x1xi1>
    %248 = vector.broadcast %247 : vector<4x1xi1> to vector<4x16xi1>
    %249 = arith.select %248, %196, %156 : vector<4x16xi1>, vector<4x16xf32>
    %250 = vector.shape_cast %227 : vector<4x1xi1> to vector<4x1xi1>
    %251 = vector.broadcast %250 : vector<4x1xi1> to vector<4x16xi1>
    %252 = arith.select %251, %223, %159 : vector<4x16xi1>, vector<4x16xf32>
    %253 = vector.shape_cast %227 : vector<4x1xi1> to vector<4x1xi1>
    %254 = vector.broadcast %253 : vector<4x1xi1> to vector<4x16xi1>
    %255 = arith.select %254, %221, %162 : vector<4x16xi1>, vector<4x16xf32>
    %c2_i32 = arith.constant 2 : i32
    %c7_i32_93 = arith.constant 7 : i32
    %256 = arith.subi %c7_i32_93, %c2_i32 : i32
    %257 = arith.index_cast %c2_i32 : i32 to index
    %c0_94 = arith.constant 0 : index
    %c0_95 = arith.constant 0 : index
    %258 = vector.load %arg12[%257, %c0_94, %c0_95] : memref<8x4x128xf32, #tpu.memory_space<vmem>>, vector<1x4x64xf32>
    %259 = vector.shape_cast %258 : vector<1x4x64xf32> to vector<4x64xf32>
    %cst_96 = arith.constant dense<0.000000e+00> : vector<4x64xf32>
    %260 = tpu.matmul %246, %67, %cst_96 {dimension_numbers = #tpu.dot_dimension_numbers<[1], [0], [0], [1], [0, 0, 1, 1], [], []>} : vector<4x16xf32>, vector<16x64xf32>, vector<4x64xf32> -> vector<4x64xf32>
    %261 = arith.addf %259, %260 : vector<4x64xf32>
    %262 = arith.index_cast %256 : i32 to index
    %c0_97 = arith.constant 0 : index
    %c64_98 = arith.constant 64 : index
    %263 = vector.load %arg12[%262, %c0_97, %c64_98] : memref<8x4x128xf32, #tpu.memory_space<vmem>>, vector<1x4x64xf32>
    %264 = vector.shape_cast %263 : vector<1x4x64xf32> to vector<4x64xf32>
    %cst_99 = arith.constant dense<0.000000e+00> : vector<4x64xf32>
    %265 = tpu.matmul %252, %68, %cst_99 {dimension_numbers = #tpu.dot_dimension_numbers<[1], [0], [0], [1], [0, 0, 1, 1], [], []>} : vector<4x16xf32>, vector<16x64xf32>, vector<4x64xf32> -> vector<4x64xf32>
    %266 = arith.addf %264, %265 : vector<4x64xf32>
    %267 = vector.extract_strided_slice %261 {offsets = [0, 0], sizes = [4, 16], strides = [1, 1]} : vector<4x64xf32> to vector<4x16xf32>
    %268 = arith.negf %267 : vector<4x16xf32>
    %269 = math.exp %268 : vector<4x16xf32>
    %cst_100 = arith.constant 1.000000e+00 : f32
    %270 = vector.broadcast %cst_100 : f32 to vector<4x16xf32>
    %271 = arith.addf %270, %269 : vector<4x16xf32>
    %272 = arith.divf %270, %271 : vector<4x16xf32>
    %273 = vector.extract_strided_slice %261 {offsets = [0, 16], sizes = [4, 16], strides = [1, 1]} : vector<4x64xf32> to vector<4x16xf32>
    %274 = arith.negf %273 : vector<4x16xf32>
    %275 = math.exp %274 : vector<4x16xf32>
    %cst_101 = arith.constant 1.000000e+00 : f32
    %276 = vector.broadcast %cst_101 : f32 to vector<4x16xf32>
    %277 = arith.addf %276, %275 : vector<4x16xf32>
    %278 = arith.divf %276, %277 : vector<4x16xf32>
    %279 = vector.extract_strided_slice %261 {offsets = [0, 32], sizes = [4, 16], strides = [1, 1]} : vector<4x64xf32> to vector<4x16xf32>
    %280 = math.tanh %279 : vector<4x16xf32>
    %281 = vector.extract_strided_slice %261 {offsets = [0, 48], sizes = [4, 16], strides = [1, 1]} : vector<4x64xf32> to vector<4x16xf32>
    %282 = arith.negf %281 : vector<4x16xf32>
    %283 = math.exp %282 : vector<4x16xf32>
    %cst_102 = arith.constant 1.000000e+00 : f32
    %284 = vector.broadcast %cst_102 : f32 to vector<4x16xf32>
    %285 = arith.addf %284, %283 : vector<4x16xf32>
    %286 = arith.divf %284, %285 : vector<4x16xf32>
    %287 = arith.mulf %278, %249 : vector<4x16xf32>
    %288 = arith.mulf %272, %280 : vector<4x16xf32>
    %289 = arith.addf %287, %288 : vector<4x16xf32>
    %290 = math.tanh %289 : vector<4x16xf32>
    %291 = arith.mulf %286, %290 : vector<4x16xf32>
    %292 = vector.extract_strided_slice %266 {offsets = [0, 0], sizes = [4, 16], strides = [1, 1]} : vector<4x64xf32> to vector<4x16xf32>
    %293 = arith.negf %292 : vector<4x16xf32>
    %294 = math.exp %293 : vector<4x16xf32>
    %cst_103 = arith.constant 1.000000e+00 : f32
    %295 = vector.broadcast %cst_103 : f32 to vector<4x16xf32>
    %296 = arith.addf %295, %294 : vector<4x16xf32>
    %297 = arith.divf %295, %296 : vector<4x16xf32>
    %298 = vector.extract_strided_slice %266 {offsets = [0, 16], sizes = [4, 16], strides = [1, 1]} : vector<4x64xf32> to vector<4x16xf32>
    %299 = arith.negf %298 : vector<4x16xf32>
    %300 = math.exp %299 : vector<4x16xf32>
    %cst_104 = arith.constant 1.000000e+00 : f32
    %301 = vector.broadcast %cst_104 : f32 to vector<4x16xf32>
    %302 = arith.addf %301, %300 : vector<4x16xf32>
    %303 = arith.divf %301, %302 : vector<4x16xf32>
    %304 = vector.extract_strided_slice %266 {offsets = [0, 32], sizes = [4, 16], strides = [1, 1]} : vector<4x64xf32> to vector<4x16xf32>
    %305 = math.tanh %304 : vector<4x16xf32>
    %306 = vector.extract_strided_slice %266 {offsets = [0, 48], sizes = [4, 16], strides = [1, 1]} : vector<4x64xf32> to vector<4x16xf32>
    %307 = arith.negf %306 : vector<4x16xf32>
    %308 = math.exp %307 : vector<4x16xf32>
    %cst_105 = arith.constant 1.000000e+00 : f32
    %309 = vector.broadcast %cst_105 : f32 to vector<4x16xf32>
    %310 = arith.addf %309, %308 : vector<4x16xf32>
    %311 = arith.divf %309, %310 : vector<4x16xf32>
    %312 = arith.mulf %303, %255 : vector<4x16xf32>
    %313 = arith.mulf %297, %305 : vector<4x16xf32>
    %314 = arith.addf %312, %313 : vector<4x16xf32>
    %315 = math.tanh %314 : vector<4x16xf32>
    %316 = arith.mulf %311, %315 : vector<4x16xf32>
    %317 = vector.broadcast %c2_i32 : i32 to vector<4x1xi32>
    %318 = arith.cmpi slt, %317, %0 : vector<4x1xi32>
    %319 = vector.broadcast %256 : i32 to vector<4x1xi32>
    %320 = arith.cmpi slt, %319, %0 : vector<4x1xi32>
    %cst_106 = arith.constant 0.000000e+00 : f32
    %321 = vector.shape_cast %318 : vector<4x1xi1> to vector<4x1xi1>
    %322 = vector.broadcast %321 : vector<4x1xi1> to vector<4x16xi1>
    %323 = vector.broadcast %cst_106 : f32 to vector<4x16xf32>
    %324 = arith.select %322, %291, %323 : vector<4x16xi1>, vector<4x16xf32>
    %325 = arith.index_cast %c2_i32 : i32 to index
    %c0_107 = arith.constant 0 : index
    %c0_108 = arith.constant 0 : index
    %326 = vector.load %arg13[%325, %c0_107, %c0_108] : memref<8x4x32xf32, #tpu.memory_space<vmem>>, vector<1x4x16xf32>
    %327 = vector.shape_cast %326 : vector<1x4x16xf32> to vector<4x16xf32>
    %328 = vector.shape_cast %324 : vector<4x16xf32> to vector<1x4x16xf32>
    tpu.vector_store %arg13[%325, %c0_107, %c0_108], %328 {strides = array<i32>} : memref<8x4x32xf32, #tpu.memory_space<vmem>>, vector<1x4x16xf32>,
    %cst_109 = arith.constant 0.000000e+00 : f32
    %329 = vector.shape_cast %320 : vector<4x1xi1> to vector<4x1xi1>
    %330 = vector.broadcast %329 : vector<4x1xi1> to vector<4x16xi1>
    %331 = vector.broadcast %cst_109 : f32 to vector<4x16xf32>
    %332 = arith.select %330, %316, %331 : vector<4x16xi1>, vector<4x16xf32>
    %333 = arith.index_cast %256 : i32 to index
    %c0_110 = arith.constant 0 : index
    %c16_111 = arith.constant 16 : index
    %334 = vector.load %arg13[%333, %c0_110, %c16_111] : memref<8x4x32xf32, #tpu.memory_space<vmem>>, vector<1x4x16xf32>
    %335 = vector.shape_cast %334 : vector<1x4x16xf32> to vector<4x16xf32>
    %336 = vector.shape_cast %332 : vector<4x16xf32> to vector<1x4x16xf32>
    tpu.vector_store %arg13[%333, %c0_110, %c16_111], %336 {strides = array<i32>} : memref<8x4x32xf32, #tpu.memory_space<vmem>>, vector<1x4x16xf32>,
    %337 = vector.shape_cast %318 : vector<4x1xi1> to vector<4x1xi1>
    %338 = vector.broadcast %337 : vector<4x1xi1> to vector<4x16xi1>
    %339 = arith.select %338, %291, %246 : vector<4x16xi1>, vector<4x16xf32>
    %340 = vector.shape_cast %318 : vector<4x1xi1> to vector<4x1xi1>
    %341 = vector.broadcast %340 : vector<4x1xi1> to vector<4x16xi1>
    %342 = arith.select %341, %289, %249 : vector<4x16xi1>, vector<4x16xf32>
    %343 = vector.shape_cast %320 : vector<4x1xi1> to vector<4x1xi1>
    %344 = vector.broadcast %343 : vector<4x1xi1> to vector<4x16xi1>
    %345 = arith.select %344, %316, %252 : vector<4x16xi1>, vector<4x16xf32>
    %346 = vector.shape_cast %320 : vector<4x1xi1> to vector<4x1xi1>
    %347 = vector.broadcast %346 : vector<4x1xi1> to vector<4x16xi1>
    %348 = arith.select %347, %314, %255 : vector<4x16xi1>, vector<4x16xf32>
    %c3_i32 = arith.constant 3 : i32
    %c7_i32_112 = arith.constant 7 : i32
    %349 = arith.subi %c7_i32_112, %c3_i32 : i32
    %350 = arith.index_cast %c3_i32 : i32 to index
    %c0_113 = arith.constant 0 : index
    %c0_114 = arith.constant 0 : index
    %351 = vector.load %arg12[%350, %c0_113, %c0_114] : memref<8x4x128xf32, #tpu.memory_space<vmem>>, vector<1x4x64xf32>
    %352 = vector.shape_cast %351 : vector<1x4x64xf32> to vector<4x64xf32>
    %cst_115 = arith.constant dense<0.000000e+00> : vector<4x64xf32>
    %353 = tpu.matmul %339, %67, %cst_115 {dimension_numbers = #tpu.dot_dimension_numbers<[1], [0], [0], [1], [0, 0, 1, 1], [], []>} : vector<4x16xf32>, vector<16x64xf32>, vector<4x64xf32> -> vector<4x64xf32>
    %354 = arith.addf %352, %353 : vector<4x64xf32>
    %355 = arith.index_cast %349 : i32 to index
    %c0_116 = arith.constant 0 : index
    %c64_117 = arith.constant 64 : index
    %356 = vector.load %arg12[%355, %c0_116, %c64_117] : memref<8x4x128xf32, #tpu.memory_space<vmem>>, vector<1x4x64xf32>
    %357 = vector.shape_cast %356 : vector<1x4x64xf32> to vector<4x64xf32>
    %cst_118 = arith.constant dense<0.000000e+00> : vector<4x64xf32>
    %358 = tpu.matmul %345, %68, %cst_118 {dimension_numbers = #tpu.dot_dimension_numbers<[1], [0], [0], [1], [0, 0, 1, 1], [], []>} : vector<4x16xf32>, vector<16x64xf32>, vector<4x64xf32> -> vector<4x64xf32>
    %359 = arith.addf %357, %358 : vector<4x64xf32>
    %360 = vector.extract_strided_slice %354 {offsets = [0, 0], sizes = [4, 16], strides = [1, 1]} : vector<4x64xf32> to vector<4x16xf32>
    %361 = arith.negf %360 : vector<4x16xf32>
    %362 = math.exp %361 : vector<4x16xf32>
    %cst_119 = arith.constant 1.000000e+00 : f32
    %363 = vector.broadcast %cst_119 : f32 to vector<4x16xf32>
    %364 = arith.addf %363, %362 : vector<4x16xf32>
    %365 = arith.divf %363, %364 : vector<4x16xf32>
    %366 = vector.extract_strided_slice %354 {offsets = [0, 16], sizes = [4, 16], strides = [1, 1]} : vector<4x64xf32> to vector<4x16xf32>
    %367 = arith.negf %366 : vector<4x16xf32>
    %368 = math.exp %367 : vector<4x16xf32>
    %cst_120 = arith.constant 1.000000e+00 : f32
    %369 = vector.broadcast %cst_120 : f32 to vector<4x16xf32>
    %370 = arith.addf %369, %368 : vector<4x16xf32>
    %371 = arith.divf %369, %370 : vector<4x16xf32>
    %372 = vector.extract_strided_slice %354 {offsets = [0, 32], sizes = [4, 16], strides = [1, 1]} : vector<4x64xf32> to vector<4x16xf32>
    %373 = math.tanh %372 : vector<4x16xf32>
    %374 = vector.extract_strided_slice %354 {offsets = [0, 48], sizes = [4, 16], strides = [1, 1]} : vector<4x64xf32> to vector<4x16xf32>
    %375 = arith.negf %374 : vector<4x16xf32>
    %376 = math.exp %375 : vector<4x16xf32>
    %cst_121 = arith.constant 1.000000e+00 : f32
    %377 = vector.broadcast %cst_121 : f32 to vector<4x16xf32>
    %378 = arith.addf %377, %376 : vector<4x16xf32>
    %379 = arith.divf %377, %378 : vector<4x16xf32>
    %380 = arith.mulf %371, %342 : vector<4x16xf32>
    %381 = arith.mulf %365, %373 : vector<4x16xf32>
    %382 = arith.addf %380, %381 : vector<4x16xf32>
    %383 = math.tanh %382 : vector<4x16xf32>
    %384 = arith.mulf %379, %383 : vector<4x16xf32>
    %385 = vector.extract_strided_slice %359 {offsets = [0, 0], sizes = [4, 16], strides = [1, 1]} : vector<4x64xf32> to vector<4x16xf32>
    %386 = arith.negf %385 : vector<4x16xf32>
    %387 = math.exp %386 : vector<4x16xf32>
    %cst_122 = arith.constant 1.000000e+00 : f32
    %388 = vector.broadcast %cst_122 : f32 to vector<4x16xf32>
    %389 = arith.addf %388, %387 : vector<4x16xf32>
    %390 = arith.divf %388, %389 : vector<4x16xf32>
    %391 = vector.extract_strided_slice %359 {offsets = [0, 16], sizes = [4, 16], strides = [1, 1]} : vector<4x64xf32> to vector<4x16xf32>
    %392 = arith.negf %391 : vector<4x16xf32>
    %393 = math.exp %392 : vector<4x16xf32>
    %cst_123 = arith.constant 1.000000e+00 : f32
    %394 = vector.broadcast %cst_123 : f32 to vector<4x16xf32>
    %395 = arith.addf %394, %393 : vector<4x16xf32>
    %396 = arith.divf %394, %395 : vector<4x16xf32>
    %397 = vector.extract_strided_slice %359 {offsets = [0, 32], sizes = [4, 16], strides = [1, 1]} : vector<4x64xf32> to vector<4x16xf32>
    %398 = math.tanh %397 : vector<4x16xf32>
    %399 = vector.extract_strided_slice %359 {offsets = [0, 48], sizes = [4, 16], strides = [1, 1]} : vector<4x64xf32> to vector<4x16xf32>
    %400 = arith.negf %399 : vector<4x16xf32>
    %401 = math.exp %400 : vector<4x16xf32>
    %cst_124 = arith.constant 1.000000e+00 : f32
    %402 = vector.broadcast %cst_124 : f32 to vector<4x16xf32>
    %403 = arith.addf %402, %401 : vector<4x16xf32>
    %404 = arith.divf %402, %403 : vector<4x16xf32>
    %405 = arith.mulf %396, %348 : vector<4x16xf32>
    %406 = arith.mulf %390, %398 : vector<4x16xf32>
    %407 = arith.addf %405, %406 : vector<4x16xf32>
    %408 = math.tanh %407 : vector<4x16xf32>
    %409 = arith.mulf %404, %408 : vector<4x16xf32>
    %410 = vector.broadcast %c3_i32 : i32 to vector<4x1xi32>
    %411 = arith.cmpi slt, %410, %0 : vector<4x1xi32>
    %412 = vector.broadcast %349 : i32 to vector<4x1xi32>
    %413 = arith.cmpi slt, %412, %0 : vector<4x1xi32>
    %cst_125 = arith.constant 0.000000e+00 : f32
    %414 = vector.shape_cast %411 : vector<4x1xi1> to vector<4x1xi1>
    %415 = vector.broadcast %414 : vector<4x1xi1> to vector<4x16xi1>
    %416 = vector.broadcast %cst_125 : f32 to vector<4x16xf32>
    %417 = arith.select %415, %384, %416 : vector<4x16xi1>, vector<4x16xf32>
    %418 = arith.index_cast %c3_i32 : i32 to index
    %c0_126 = arith.constant 0 : index
    %c0_127 = arith.constant 0 : index
    %419 = vector.load %arg13[%418, %c0_126, %c0_127] : memref<8x4x32xf32, #tpu.memory_space<vmem>>, vector<1x4x16xf32>
    %420 = vector.shape_cast %419 : vector<1x4x16xf32> to vector<4x16xf32>
    %421 = vector.shape_cast %417 : vector<4x16xf32> to vector<1x4x16xf32>
    tpu.vector_store %arg13[%418, %c0_126, %c0_127], %421 {strides = array<i32>} : memref<8x4x32xf32, #tpu.memory_space<vmem>>, vector<1x4x16xf32>,
    %cst_128 = arith.constant 0.000000e+00 : f32
    %422 = vector.shape_cast %413 : vector<4x1xi1> to vector<4x1xi1>
    %423 = vector.broadcast %422 : vector<4x1xi1> to vector<4x16xi1>
    %424 = vector.broadcast %cst_128 : f32 to vector<4x16xf32>
    %425 = arith.select %423, %409, %424 : vector<4x16xi1>, vector<4x16xf32>
    %426 = arith.index_cast %349 : i32 to index
    %c0_129 = arith.constant 0 : index
    %c16_130 = arith.constant 16 : index
    %427 = vector.load %arg13[%426, %c0_129, %c16_130] : memref<8x4x32xf32, #tpu.memory_space<vmem>>, vector<1x4x16xf32>
    %428 = vector.shape_cast %427 : vector<1x4x16xf32> to vector<4x16xf32>
    %429 = vector.shape_cast %425 : vector<4x16xf32> to vector<1x4x16xf32>
    tpu.vector_store %arg13[%426, %c0_129, %c16_130], %429 {strides = array<i32>} : memref<8x4x32xf32, #tpu.memory_space<vmem>>, vector<1x4x16xf32>,
    %430 = vector.shape_cast %411 : vector<4x1xi1> to vector<4x1xi1>
    %431 = vector.broadcast %430 : vector<4x1xi1> to vector<4x16xi1>
    %432 = arith.select %431, %384, %339 : vector<4x16xi1>, vector<4x16xf32>
    %433 = vector.shape_cast %411 : vector<4x1xi1> to vector<4x1xi1>
    %434 = vector.broadcast %433 : vector<4x1xi1> to vector<4x16xi1>
    %435 = arith.select %434, %382, %342 : vector<4x16xi1>, vector<4x16xf32>
    %436 = vector.shape_cast %413 : vector<4x1xi1> to vector<4x1xi1>
    %437 = vector.broadcast %436 : vector<4x1xi1> to vector<4x16xi1>
    %438 = arith.select %437, %409, %345 : vector<4x16xi1>, vector<4x16xf32>
    %439 = vector.shape_cast %413 : vector<4x1xi1> to vector<4x1xi1>
    %440 = vector.broadcast %439 : vector<4x1xi1> to vector<4x16xi1>
    %441 = arith.select %440, %407, %348 : vector<4x16xi1>, vector<4x16xf32>
    %c4_i32 = arith.constant 4 : i32
    %c7_i32_131 = arith.constant 7 : i32
    %442 = arith.subi %c7_i32_131, %c4_i32 : i32
    %443 = arith.index_cast %c4_i32 : i32 to index
    %c0_132 = arith.constant 0 : index
    %c0_133 = arith.constant 0 : index
    %444 = vector.load %arg12[%443, %c0_132, %c0_133] : memref<8x4x128xf32, #tpu.memory_space<vmem>>, vector<1x4x64xf32>
    %445 = vector.shape_cast %444 : vector<1x4x64xf32> to vector<4x64xf32>
    %cst_134 = arith.constant dense<0.000000e+00> : vector<4x64xf32>
    %446 = tpu.matmul %432, %67, %cst_134 {dimension_numbers = #tpu.dot_dimension_numbers<[1], [0], [0], [1], [0, 0, 1, 1], [], []>} : vector<4x16xf32>, vector<16x64xf32>, vector<4x64xf32> -> vector<4x64xf32>
    %447 = arith.addf %445, %446 : vector<4x64xf32>
    %448 = arith.index_cast %442 : i32 to index
    %c0_135 = arith.constant 0 : index
    %c64_136 = arith.constant 64 : index
    %449 = vector.load %arg12[%448, %c0_135, %c64_136] : memref<8x4x128xf32, #tpu.memory_space<vmem>>, vector<1x4x64xf32>
    %450 = vector.shape_cast %449 : vector<1x4x64xf32> to vector<4x64xf32>
    %cst_137 = arith.constant dense<0.000000e+00> : vector<4x64xf32>
    %451 = tpu.matmul %438, %68, %cst_137 {dimension_numbers = #tpu.dot_dimension_numbers<[1], [0], [0], [1], [0, 0, 1, 1], [], []>} : vector<4x16xf32>, vector<16x64xf32>, vector<4x64xf32> -> vector<4x64xf32>
    %452 = arith.addf %450, %451 : vector<4x64xf32>
    %453 = vector.extract_strided_slice %447 {offsets = [0, 0], sizes = [4, 16], strides = [1, 1]} : vector<4x64xf32> to vector<4x16xf32>
    %454 = arith.negf %453 : vector<4x16xf32>
    %455 = math.exp %454 : vector<4x16xf32>
    %cst_138 = arith.constant 1.000000e+00 : f32
    %456 = vector.broadcast %cst_138 : f32 to vector<4x16xf32>
    %457 = arith.addf %456, %455 : vector<4x16xf32>
    %458 = arith.divf %456, %457 : vector<4x16xf32>
    %459 = vector.extract_strided_slice %447 {offsets = [0, 16], sizes = [4, 16], strides = [1, 1]} : vector<4x64xf32> to vector<4x16xf32>
    %460 = arith.negf %459 : vector<4x16xf32>
    %461 = math.exp %460 : vector<4x16xf32>
    %cst_139 = arith.constant 1.000000e+00 : f32
    %462 = vector.broadcast %cst_139 : f32 to vector<4x16xf32>
    %463 = arith.addf %462, %461 : vector<4x16xf32>
    %464 = arith.divf %462, %463 : vector<4x16xf32>
    %465 = vector.extract_strided_slice %447 {offsets = [0, 32], sizes = [4, 16], strides = [1, 1]} : vector<4x64xf32> to vector<4x16xf32>
    %466 = math.tanh %465 : vector<4x16xf32>
    %467 = vector.extract_strided_slice %447 {offsets = [0, 48], sizes = [4, 16], strides = [1, 1]} : vector<4x64xf32> to vector<4x16xf32>
    %468 = arith.negf %467 : vector<4x16xf32>
    %469 = math.exp %468 : vector<4x16xf32>
    %cst_140 = arith.constant 1.000000e+00 : f32
    %470 = vector.broadcast %cst_140 : f32 to vector<4x16xf32>
    %471 = arith.addf %470, %469 : vector<4x16xf32>
    %472 = arith.divf %470, %471 : vector<4x16xf32>
    %473 = arith.mulf %464, %435 : vector<4x16xf32>
    %474 = arith.mulf %458, %466 : vector<4x16xf32>
    %475 = arith.addf %473, %474 : vector<4x16xf32>
    %476 = math.tanh %475 : vector<4x16xf32>
    %477 = arith.mulf %472, %476 : vector<4x16xf32>
    %478 = vector.extract_strided_slice %452 {offsets = [0, 0], sizes = [4, 16], strides = [1, 1]} : vector<4x64xf32> to vector<4x16xf32>
    %479 = arith.negf %478 : vector<4x16xf32>
    %480 = math.exp %479 : vector<4x16xf32>
    %cst_141 = arith.constant 1.000000e+00 : f32
    %481 = vector.broadcast %cst_141 : f32 to vector<4x16xf32>
    %482 = arith.addf %481, %480 : vector<4x16xf32>
    %483 = arith.divf %481, %482 : vector<4x16xf32>
    %484 = vector.extract_strided_slice %452 {offsets = [0, 16], sizes = [4, 16], strides = [1, 1]} : vector<4x64xf32> to vector<4x16xf32>
    %485 = arith.negf %484 : vector<4x16xf32>
    %486 = math.exp %485 : vector<4x16xf32>
    %cst_142 = arith.constant 1.000000e+00 : f32
    %487 = vector.broadcast %cst_142 : f32 to vector<4x16xf32>
    %488 = arith.addf %487, %486 : vector<4x16xf32>
    %489 = arith.divf %487, %488 : vector<4x16xf32>
    %490 = vector.extract_strided_slice %452 {offsets = [0, 32], sizes = [4, 16], strides = [1, 1]} : vector<4x64xf32> to vector<4x16xf32>
    %491 = math.tanh %490 : vector<4x16xf32>
    %492 = vector.extract_strided_slice %452 {offsets = [0, 48], sizes = [4, 16], strides = [1, 1]} : vector<4x64xf32> to vector<4x16xf32>
    %493 = arith.negf %492 : vector<4x16xf32>
    %494 = math.exp %493 : vector<4x16xf32>
    %cst_143 = arith.constant 1.000000e+00 : f32
    %495 = vector.broadcast %cst_143 : f32 to vector<4x16xf32>
    %496 = arith.addf %495, %494 : vector<4x16xf32>
    %497 = arith.divf %495, %496 : vector<4x16xf32>
    %498 = arith.mulf %489, %441 : vector<4x16xf32>
    %499 = arith.mulf %483, %491 : vector<4x16xf32>
    %500 = arith.addf %498, %499 : vector<4x16xf32>
    %501 = math.tanh %500 : vector<4x16xf32>
    %502 = arith.mulf %497, %501 : vector<4x16xf32>
    %503 = vector.broadcast %c4_i32 : i32 to vector<4x1xi32>
    %504 = arith.cmpi slt, %503, %0 : vector<4x1xi32>
    %505 = vector.broadcast %442 : i32 to vector<4x1xi32>
    %506 = arith.cmpi slt, %505, %0 : vector<4x1xi32>
    %cst_144 = arith.constant 0.000000e+00 : f32
    %507 = vector.shape_cast %504 : vector<4x1xi1> to vector<4x1xi1>
    %508 = vector.broadcast %507 : vector<4x1xi1> to vector<4x16xi1>
    %509 = vector.broadcast %cst_144 : f32 to vector<4x16xf32>
    %510 = arith.select %508, %477, %509 : vector<4x16xi1>, vector<4x16xf32>
    %511 = arith.index_cast %c4_i32 : i32 to index
    %c0_145 = arith.constant 0 : index
    %c0_146 = arith.constant 0 : index
    %512 = vector.load %arg13[%511, %c0_145, %c0_146] : memref<8x4x32xf32, #tpu.memory_space<vmem>>, vector<1x4x16xf32>
    %513 = vector.shape_cast %512 : vector<1x4x16xf32> to vector<4x16xf32>
    %514 = vector.shape_cast %510 : vector<4x16xf32> to vector<1x4x16xf32>
    tpu.vector_store %arg13[%511, %c0_145, %c0_146], %514 {strides = array<i32>} : memref<8x4x32xf32, #tpu.memory_space<vmem>>, vector<1x4x16xf32>,
    %cst_147 = arith.constant 0.000000e+00 : f32
    %515 = vector.shape_cast %506 : vector<4x1xi1> to vector<4x1xi1>
    %516 = vector.broadcast %515 : vector<4x1xi1> to vector<4x16xi1>
    %517 = vector.broadcast %cst_147 : f32 to vector<4x16xf32>
    %518 = arith.select %516, %502, %517 : vector<4x16xi1>, vector<4x16xf32>
    %519 = arith.index_cast %442 : i32 to index
    %c0_148 = arith.constant 0 : index
    %c16_149 = arith.constant 16 : index
    %520 = vector.load %arg13[%519, %c0_148, %c16_149] : memref<8x4x32xf32, #tpu.memory_space<vmem>>, vector<1x4x16xf32>
    %521 = vector.shape_cast %520 : vector<1x4x16xf32> to vector<4x16xf32>
    %522 = vector.shape_cast %518 : vector<4x16xf32> to vector<1x4x16xf32>
    tpu.vector_store %arg13[%519, %c0_148, %c16_149], %522 {strides = array<i32>} : memref<8x4x32xf32, #tpu.memory_space<vmem>>, vector<1x4x16xf32>,
    %523 = vector.shape_cast %504 : vector<4x1xi1> to vector<4x1xi1>
    %524 = vector.broadcast %523 : vector<4x1xi1> to vector<4x16xi1>
    %525 = arith.select %524, %477, %432 : vector<4x16xi1>, vector<4x16xf32>
    %526 = vector.shape_cast %504 : vector<4x1xi1> to vector<4x1xi1>
    %527 = vector.broadcast %526 : vector<4x1xi1> to vector<4x16xi1>
    %528 = arith.select %527, %475, %435 : vector<4x16xi1>, vector<4x16xf32>
    %529 = vector.shape_cast %506 : vector<4x1xi1> to vector<4x1xi1>
    %530 = vector.broadcast %529 : vector<4x1xi1> to vector<4x16xi1>
    %531 = arith.select %530, %502, %438 : vector<4x16xi1>, vector<4x16xf32>
    %532 = vector.shape_cast %506 : vector<4x1xi1> to vector<4x1xi1>
    %533 = vector.broadcast %532 : vector<4x1xi1> to vector<4x16xi1>
    %534 = arith.select %533, %500, %441 : vector<4x16xi1>, vector<4x16xf32>
    %c5_i32 = arith.constant 5 : i32
    %c7_i32_150 = arith.constant 7 : i32
    %535 = arith.subi %c7_i32_150, %c5_i32 : i32
    %536 = arith.index_cast %c5_i32 : i32 to index
    %c0_151 = arith.constant 0 : index
    %c0_152 = arith.constant 0 : index
    %537 = vector.load %arg12[%536, %c0_151, %c0_152] : memref<8x4x128xf32, #tpu.memory_space<vmem>>, vector<1x4x64xf32>
    %538 = vector.shape_cast %537 : vector<1x4x64xf32> to vector<4x64xf32>
    %cst_153 = arith.constant dense<0.000000e+00> : vector<4x64xf32>
    %539 = tpu.matmul %525, %67, %cst_153 {dimension_numbers = #tpu.dot_dimension_numbers<[1], [0], [0], [1], [0, 0, 1, 1], [], []>} : vector<4x16xf32>, vector<16x64xf32>, vector<4x64xf32> -> vector<4x64xf32>
    %540 = arith.addf %538, %539 : vector<4x64xf32>
    %541 = arith.index_cast %535 : i32 to index
    %c0_154 = arith.constant 0 : index
    %c64_155 = arith.constant 64 : index
    %542 = vector.load %arg12[%541, %c0_154, %c64_155] : memref<8x4x128xf32, #tpu.memory_space<vmem>>, vector<1x4x64xf32>
    %543 = vector.shape_cast %542 : vector<1x4x64xf32> to vector<4x64xf32>
    %cst_156 = arith.constant dense<0.000000e+00> : vector<4x64xf32>
    %544 = tpu.matmul %531, %68, %cst_156 {dimension_numbers = #tpu.dot_dimension_numbers<[1], [0], [0], [1], [0, 0, 1, 1], [], []>} : vector<4x16xf32>, vector<16x64xf32>, vector<4x64xf32> -> vector<4x64xf32>
    %545 = arith.addf %543, %544 : vector<4x64xf32>
    %546 = vector.extract_strided_slice %540 {offsets = [0, 0], sizes = [4, 16], strides = [1, 1]} : vector<4x64xf32> to vector<4x16xf32>
    %547 = arith.negf %546 : vector<4x16xf32>
    %548 = math.exp %547 : vector<4x16xf32>
    %cst_157 = arith.constant 1.000000e+00 : f32
    %549 = vector.broadcast %cst_157 : f32 to vector<4x16xf32>
    %550 = arith.addf %549, %548 : vector<4x16xf32>
    %551 = arith.divf %549, %550 : vector<4x16xf32>
    %552 = vector.extract_strided_slice %540 {offsets = [0, 16], sizes = [4, 16], strides = [1, 1]} : vector<4x64xf32> to vector<4x16xf32>
    %553 = arith.negf %552 : vector<4x16xf32>
    %554 = math.exp %553 : vector<4x16xf32>
    %cst_158 = arith.constant 1.000000e+00 : f32
    %555 = vector.broadcast %cst_158 : f32 to vector<4x16xf32>
    %556 = arith.addf %555, %554 : vector<4x16xf32>
    %557 = arith.divf %555, %556 : vector<4x16xf32>
    %558 = vector.extract_strided_slice %540 {offsets = [0, 32], sizes = [4, 16], strides = [1, 1]} : vector<4x64xf32> to vector<4x16xf32>
    %559 = math.tanh %558 : vector<4x16xf32>
    %560 = vector.extract_strided_slice %540 {offsets = [0, 48], sizes = [4, 16], strides = [1, 1]} : vector<4x64xf32> to vector<4x16xf32>
    %561 = arith.negf %560 : vector<4x16xf32>
    %562 = math.exp %561 : vector<4x16xf32>
    %cst_159 = arith.constant 1.000000e+00 : f32
    %563 = vector.broadcast %cst_159 : f32 to vector<4x16xf32>
    %564 = arith.addf %563, %562 : vector<4x16xf32>
    %565 = arith.divf %563, %564 : vector<4x16xf32>
    %566 = arith.mulf %557, %528 : vector<4x16xf32>
    %567 = arith.mulf %551, %559 : vector<4x16xf32>
    %568 = arith.addf %566, %567 : vector<4x16xf32>
    %569 = math.tanh %568 : vector<4x16xf32>
    %570 = arith.mulf %565, %569 : vector<4x16xf32>
    %571 = vector.extract_strided_slice %545 {offsets = [0, 0], sizes = [4, 16], strides = [1, 1]} : vector<4x64xf32> to vector<4x16xf32>
    %572 = arith.negf %571 : vector<4x16xf32>
    %573 = math.exp %572 : vector<4x16xf32>
    %cst_160 = arith.constant 1.000000e+00 : f32
    %574 = vector.broadcast %cst_160 : f32 to vector<4x16xf32>
    %575 = arith.addf %574, %573 : vector<4x16xf32>
    %576 = arith.divf %574, %575 : vector<4x16xf32>
    %577 = vector.extract_strided_slice %545 {offsets = [0, 16], sizes = [4, 16], strides = [1, 1]} : vector<4x64xf32> to vector<4x16xf32>
    %578 = arith.negf %577 : vector<4x16xf32>
    %579 = math.exp %578 : vector<4x16xf32>
    %cst_161 = arith.constant 1.000000e+00 : f32
    %580 = vector.broadcast %cst_161 : f32 to vector<4x16xf32>
    %581 = arith.addf %580, %579 : vector<4x16xf32>
    %582 = arith.divf %580, %581 : vector<4x16xf32>
    %583 = vector.extract_strided_slice %545 {offsets = [0, 32], sizes = [4, 16], strides = [1, 1]} : vector<4x64xf32> to vector<4x16xf32>
    %584 = math.tanh %583 : vector<4x16xf32>
    %585 = vector.extract_strided_slice %545 {offsets = [0, 48], sizes = [4, 16], strides = [1, 1]} : vector<4x64xf32> to vector<4x16xf32>
    %586 = arith.negf %585 : vector<4x16xf32>
    %587 = math.exp %586 : vector<4x16xf32>
    %cst_162 = arith.constant 1.000000e+00 : f32
    %588 = vector.broadcast %cst_162 : f32 to vector<4x16xf32>
    %589 = arith.addf %588, %587 : vector<4x16xf32>
    %590 = arith.divf %588, %589 : vector<4x16xf32>
    %591 = arith.mulf %582, %534 : vector<4x16xf32>
    %592 = arith.mulf %576, %584 : vector<4x16xf32>
    %593 = arith.addf %591, %592 : vector<4x16xf32>
    %594 = math.tanh %593 : vector<4x16xf32>
    %595 = arith.mulf %590, %594 : vector<4x16xf32>
    %596 = vector.broadcast %c5_i32 : i32 to vector<4x1xi32>
    %597 = arith.cmpi slt, %596, %0 : vector<4x1xi32>
    %598 = vector.broadcast %535 : i32 to vector<4x1xi32>
    %599 = arith.cmpi slt, %598, %0 : vector<4x1xi32>
    %cst_163 = arith.constant 0.000000e+00 : f32
    %600 = vector.shape_cast %597 : vector<4x1xi1> to vector<4x1xi1>
    %601 = vector.broadcast %600 : vector<4x1xi1> to vector<4x16xi1>
    %602 = vector.broadcast %cst_163 : f32 to vector<4x16xf32>
    %603 = arith.select %601, %570, %602 : vector<4x16xi1>, vector<4x16xf32>
    %604 = arith.index_cast %c5_i32 : i32 to index
    %c0_164 = arith.constant 0 : index
    %c0_165 = arith.constant 0 : index
    %605 = vector.load %arg13[%604, %c0_164, %c0_165] : memref<8x4x32xf32, #tpu.memory_space<vmem>>, vector<1x4x16xf32>
    %606 = vector.shape_cast %605 : vector<1x4x16xf32> to vector<4x16xf32>
    %607 = vector.shape_cast %603 : vector<4x16xf32> to vector<1x4x16xf32>
    tpu.vector_store %arg13[%604, %c0_164, %c0_165], %607 {strides = array<i32>} : memref<8x4x32xf32, #tpu.memory_space<vmem>>, vector<1x4x16xf32>,
    %cst_166 = arith.constant 0.000000e+00 : f32
    %608 = vector.shape_cast %599 : vector<4x1xi1> to vector<4x1xi1>
    %609 = vector.broadcast %608 : vector<4x1xi1> to vector<4x16xi1>
    %610 = vector.broadcast %cst_166 : f32 to vector<4x16xf32>
    %611 = arith.select %609, %595, %610 : vector<4x16xi1>, vector<4x16xf32>
    %612 = arith.index_cast %535 : i32 to index
    %c0_167 = arith.constant 0 : index
    %c16_168 = arith.constant 16 : index
    %613 = vector.load %arg13[%612, %c0_167, %c16_168] : memref<8x4x32xf32, #tpu.memory_space<vmem>>, vector<1x4x16xf32>
    %614 = vector.shape_cast %613 : vector<1x4x16xf32> to vector<4x16xf32>
    %615 = vector.shape_cast %611 : vector<4x16xf32> to vector<1x4x16xf32>
    tpu.vector_store %arg13[%612, %c0_167, %c16_168], %615 {strides = array<i32>} : memref<8x4x32xf32, #tpu.memory_space<vmem>>, vector<1x4x16xf32>,
    %616 = vector.shape_cast %597 : vector<4x1xi1> to vector<4x1xi1>
    %617 = vector.broadcast %616 : vector<4x1xi1> to vector<4x16xi1>
    %618 = arith.select %617, %570, %525 : vector<4x16xi1>, vector<4x16xf32>
    %619 = vector.shape_cast %597 : vector<4x1xi1> to vector<4x1xi1>
    %620 = vector.broadcast %619 : vector<4x1xi1> to vector<4x16xi1>
    %621 = arith.select %620, %568, %528 : vector<4x16xi1>, vector<4x16xf32>
    %622 = vector.shape_cast %599 : vector<4x1xi1> to vector<4x1xi1>
    %623 = vector.broadcast %622 : vector<4x1xi1> to vector<4x16xi1>
    %624 = arith.select %623, %595, %531 : vector<4x16xi1>, vector<4x16xf32>
    %625 = vector.shape_cast %599 : vector<4x1xi1> to vector<4x1xi1>
    %626 = vector.broadcast %625 : vector<4x1xi1> to vector<4x16xi1>
    %627 = arith.select %626, %593, %534 : vector<4x16xi1>, vector<4x16xf32>
    %c6_i32 = arith.constant 6 : i32
    %c7_i32_169 = arith.constant 7 : i32
    %628 = arith.subi %c7_i32_169, %c6_i32 : i32
    %629 = arith.index_cast %c6_i32 : i32 to index
    %c0_170 = arith.constant 0 : index
    %c0_171 = arith.constant 0 : index
    %630 = vector.load %arg12[%629, %c0_170, %c0_171] : memref<8x4x128xf32, #tpu.memory_space<vmem>>, vector<1x4x64xf32>
    %631 = vector.shape_cast %630 : vector<1x4x64xf32> to vector<4x64xf32>
    %cst_172 = arith.constant dense<0.000000e+00> : vector<4x64xf32>
    %632 = tpu.matmul %618, %67, %cst_172 {dimension_numbers = #tpu.dot_dimension_numbers<[1], [0], [0], [1], [0, 0, 1, 1], [], []>} : vector<4x16xf32>, vector<16x64xf32>, vector<4x64xf32> -> vector<4x64xf32>
    %633 = arith.addf %631, %632 : vector<4x64xf32>
    %634 = arith.index_cast %628 : i32 to index
    %c0_173 = arith.constant 0 : index
    %c64_174 = arith.constant 64 : index
    %635 = vector.load %arg12[%634, %c0_173, %c64_174] : memref<8x4x128xf32, #tpu.memory_space<vmem>>, vector<1x4x64xf32>
    %636 = vector.shape_cast %635 : vector<1x4x64xf32> to vector<4x64xf32>
    %cst_175 = arith.constant dense<0.000000e+00> : vector<4x64xf32>
    %637 = tpu.matmul %624, %68, %cst_175 {dimension_numbers = #tpu.dot_dimension_numbers<[1], [0], [0], [1], [0, 0, 1, 1], [], []>} : vector<4x16xf32>, vector<16x64xf32>, vector<4x64xf32> -> vector<4x64xf32>
    %638 = arith.addf %636, %637 : vector<4x64xf32>
    %639 = vector.extract_strided_slice %633 {offsets = [0, 0], sizes = [4, 16], strides = [1, 1]} : vector<4x64xf32> to vector<4x16xf32>
    %640 = arith.negf %639 : vector<4x16xf32>
    %641 = math.exp %640 : vector<4x16xf32>
    %cst_176 = arith.constant 1.000000e+00 : f32
    %642 = vector.broadcast %cst_176 : f32 to vector<4x16xf32>
    %643 = arith.addf %642, %641 : vector<4x16xf32>
    %644 = arith.divf %642, %643 : vector<4x16xf32>
    %645 = vector.extract_strided_slice %633 {offsets = [0, 16], sizes = [4, 16], strides = [1, 1]} : vector<4x64xf32> to vector<4x16xf32>
    %646 = arith.negf %645 : vector<4x16xf32>
    %647 = math.exp %646 : vector<4x16xf32>
    %cst_177 = arith.constant 1.000000e+00 : f32
    %648 = vector.broadcast %cst_177 : f32 to vector<4x16xf32>
    %649 = arith.addf %648, %647 : vector<4x16xf32>
    %650 = arith.divf %648, %649 : vector<4x16xf32>
    %651 = vector.extract_strided_slice %633 {offsets = [0, 32], sizes = [4, 16], strides = [1, 1]} : vector<4x64xf32> to vector<4x16xf32>
    %652 = math.tanh %651 : vector<4x16xf32>
    %653 = vector.extract_strided_slice %633 {offsets = [0, 48], sizes = [4, 16], strides = [1, 1]} : vector<4x64xf32> to vector<4x16xf32>
    %654 = arith.negf %653 : vector<4x16xf32>
    %655 = math.exp %654 : vector<4x16xf32>
    %cst_178 = arith.constant 1.000000e+00 : f32
    %656 = vector.broadcast %cst_178 : f32 to vector<4x16xf32>
    %657 = arith.addf %656, %655 : vector<4x16xf32>
    %658 = arith.divf %656, %657 : vector<4x16xf32>
    %659 = arith.mulf %650, %621 : vector<4x16xf32>
    %660 = arith.mulf %644, %652 : vector<4x16xf32>
    %661 = arith.addf %659, %660 : vector<4x16xf32>
    %662 = math.tanh %661 : vector<4x16xf32>
    %663 = arith.mulf %658, %662 : vector<4x16xf32>
    %664 = vector.extract_strided_slice %638 {offsets = [0, 0], sizes = [4, 16], strides = [1, 1]} : vector<4x64xf32> to vector<4x16xf32>
    %665 = arith.negf %664 : vector<4x16xf32>
    %666 = math.exp %665 : vector<4x16xf32>
    %cst_179 = arith.constant 1.000000e+00 : f32
    %667 = vector.broadcast %cst_179 : f32 to vector<4x16xf32>
    %668 = arith.addf %667, %666 : vector<4x16xf32>
    %669 = arith.divf %667, %668 : vector<4x16xf32>
    %670 = vector.extract_strided_slice %638 {offsets = [0, 16], sizes = [4, 16], strides = [1, 1]} : vector<4x64xf32> to vector<4x16xf32>
    %671 = arith.negf %670 : vector<4x16xf32>
    %672 = math.exp %671 : vector<4x16xf32>
    %cst_180 = arith.constant 1.000000e+00 : f32
    %673 = vector.broadcast %cst_180 : f32 to vector<4x16xf32>
    %674 = arith.addf %673, %672 : vector<4x16xf32>
    %675 = arith.divf %673, %674 : vector<4x16xf32>
    %676 = vector.extract_strided_slice %638 {offsets = [0, 32], sizes = [4, 16], strides = [1, 1]} : vector<4x64xf32> to vector<4x16xf32>
    %677 = math.tanh %676 : vector<4x16xf32>
    %678 = vector.extract_strided_slice %638 {offsets = [0, 48], sizes = [4, 16], strides = [1, 1]} : vector<4x64xf32> to vector<4x16xf32>
    %679 = arith.negf %678 : vector<4x16xf32>
    %680 = math.exp %679 : vector<4x16xf32>
    %cst_181 = arith.constant 1.000000e+00 : f32
    %681 = vector.broadcast %cst_181 : f32 to vector<4x16xf32>
    %682 = arith.addf %681, %680 : vector<4x16xf32>
    %683 = arith.divf %681, %682 : vector<4x16xf32>
    %684 = arith.mulf %675, %627 : vector<4x16xf32>
    %685 = arith.mulf %669, %677 : vector<4x16xf32>
    %686 = arith.addf %684, %685 : vector<4x16xf32>
    %687 = math.tanh %686 : vector<4x16xf32>
    %688 = arith.mulf %683, %687 : vector<4x16xf32>
    %689 = vector.broadcast %c6_i32 : i32 to vector<4x1xi32>
    %690 = arith.cmpi slt, %689, %0 : vector<4x1xi32>
    %691 = vector.broadcast %628 : i32 to vector<4x1xi32>
    %692 = arith.cmpi slt, %691, %0 : vector<4x1xi32>
    %cst_182 = arith.constant 0.000000e+00 : f32
    %693 = vector.shape_cast %690 : vector<4x1xi1> to vector<4x1xi1>
    %694 = vector.broadcast %693 : vector<4x1xi1> to vector<4x16xi1>
    %695 = vector.broadcast %cst_182 : f32 to vector<4x16xf32>
    %696 = arith.select %694, %663, %695 : vector<4x16xi1>, vector<4x16xf32>
    %697 = arith.index_cast %c6_i32 : i32 to index
    %c0_183 = arith.constant 0 : index
    %c0_184 = arith.constant 0 : index
    %698 = vector.load %arg13[%697, %c0_183, %c0_184] : memref<8x4x32xf32, #tpu.memory_space<vmem>>, vector<1x4x16xf32>
    %699 = vector.shape_cast %698 : vector<1x4x16xf32> to vector<4x16xf32>
    %700 = vector.shape_cast %696 : vector<4x16xf32> to vector<1x4x16xf32>
    tpu.vector_store %arg13[%697, %c0_183, %c0_184], %700 {strides = array<i32>} : memref<8x4x32xf32, #tpu.memory_space<vmem>>, vector<1x4x16xf32>,
    %cst_185 = arith.constant 0.000000e+00 : f32
    %701 = vector.shape_cast %692 : vector<4x1xi1> to vector<4x1xi1>
    %702 = vector.broadcast %701 : vector<4x1xi1> to vector<4x16xi1>
    %703 = vector.broadcast %cst_185 : f32 to vector<4x16xf32>
    %704 = arith.select %702, %688, %703 : vector<4x16xi1>, vector<4x16xf32>
    %705 = arith.index_cast %628 : i32 to index
    %c0_186 = arith.constant 0 : index
    %c16_187 = arith.constant 16 : index
    %706 = vector.load %arg13[%705, %c0_186, %c16_187] : memref<8x4x32xf32, #tpu.memory_space<vmem>>, vector<1x4x16xf32>
    %707 = vector.shape_cast %706 : vector<1x4x16xf32> to vector<4x16xf32>
    %708 = vector.shape_cast %704 : vector<4x16xf32> to vector<1x4x16xf32>
    tpu.vector_store %arg13[%705, %c0_186, %c16_187], %708 {strides = array<i32>} : memref<8x4x32xf32, #tpu.memory_space<vmem>>, vector<1x4x16xf32>,
    %709 = vector.shape_cast %690 : vector<4x1xi1> to vector<4x1xi1>
    %710 = vector.broadcast %709 : vector<4x1xi1> to vector<4x16xi1>
    %711 = arith.select %710, %663, %618 : vector<4x16xi1>, vector<4x16xf32>
    %712 = vector.shape_cast %690 : vector<4x1xi1> to vector<4x1xi1>
    %713 = vector.broadcast %712 : vector<4x1xi1> to vector<4x16xi1>
    %714 = arith.select %713, %661, %621 : vector<4x16xi1>, vector<4x16xf32>
    %715 = vector.shape_cast %692 : vector<4x1xi1> to vector<4x1xi1>
    %716 = vector.broadcast %715 : vector<4x1xi1> to vector<4x16xi1>
    %717 = arith.select %716, %688, %624 : vector<4x16xi1>, vector<4x16xf32>
    %718 = vector.shape_cast %692 : vector<4x1xi1> to vector<4x1xi1>
    %719 = vector.broadcast %718 : vector<4x1xi1> to vector<4x16xi1>
    %720 = arith.select %719, %686, %627 : vector<4x16xi1>, vector<4x16xf32>
    %c7_i32_188 = arith.constant 7 : i32
    %c7_i32_189 = arith.constant 7 : i32
    %721 = arith.subi %c7_i32_189, %c7_i32_188 : i32
    %722 = arith.index_cast %c7_i32_188 : i32 to index
    %c0_190 = arith.constant 0 : index
    %c0_191 = arith.constant 0 : index
    %723 = vector.load %arg12[%722, %c0_190, %c0_191] : memref<8x4x128xf32, #tpu.memory_space<vmem>>, vector<1x4x64xf32>
    %724 = vector.shape_cast %723 : vector<1x4x64xf32> to vector<4x64xf32>
    %cst_192 = arith.constant dense<0.000000e+00> : vector<4x64xf32>
    %725 = tpu.matmul %711, %67, %cst_192 {dimension_numbers = #tpu.dot_dimension_numbers<[1], [0], [0], [1], [0, 0, 1, 1], [], []>} : vector<4x16xf32>, vector<16x64xf32>, vector<4x64xf32> -> vector<4x64xf32>
    %726 = arith.addf %724, %725 : vector<4x64xf32>
    %727 = arith.index_cast %721 : i32 to index
    %c0_193 = arith.constant 0 : index
    %c64_194 = arith.constant 64 : index
    %728 = vector.load %arg12[%727, %c0_193, %c64_194] : memref<8x4x128xf32, #tpu.memory_space<vmem>>, vector<1x4x64xf32>
    %729 = vector.shape_cast %728 : vector<1x4x64xf32> to vector<4x64xf32>
    %cst_195 = arith.constant dense<0.000000e+00> : vector<4x64xf32>
    %730 = tpu.matmul %717, %68, %cst_195 {dimension_numbers = #tpu.dot_dimension_numbers<[1], [0], [0], [1], [0, 0, 1, 1], [], []>} : vector<4x16xf32>, vector<16x64xf32>, vector<4x64xf32> -> vector<4x64xf32>
    %731 = arith.addf %729, %730 : vector<4x64xf32>
    %732 = vector.extract_strided_slice %726 {offsets = [0, 0], sizes = [4, 16], strides = [1, 1]} : vector<4x64xf32> to vector<4x16xf32>
    %733 = arith.negf %732 : vector<4x16xf32>
    %734 = math.exp %733 : vector<4x16xf32>
    %cst_196 = arith.constant 1.000000e+00 : f32
    %735 = vector.broadcast %cst_196 : f32 to vector<4x16xf32>
    %736 = arith.addf %735, %734 : vector<4x16xf32>
    %737 = arith.divf %735, %736 : vector<4x16xf32>
    %738 = vector.extract_strided_slice %726 {offsets = [0, 16], sizes = [4, 16], strides = [1, 1]} : vector<4x64xf32> to vector<4x16xf32>
    %739 = arith.negf %738 : vector<4x16xf32>
    %740 = math.exp %739 : vector<4x16xf32>
    %cst_197 = arith.constant 1.000000e+00 : f32
    %741 = vector.broadcast %cst_197 : f32 to vector<4x16xf32>
    %742 = arith.addf %741, %740 : vector<4x16xf32>
    %743 = arith.divf %741, %742 : vector<4x16xf32>
    %744 = vector.extract_strided_slice %726 {offsets = [0, 32], sizes = [4, 16], strides = [1, 1]} : vector<4x64xf32> to vector<4x16xf32>
    %745 = math.tanh %744 : vector<4x16xf32>
    %746 = vector.extract_strided_slice %726 {offsets = [0, 48], sizes = [4, 16], strides = [1, 1]} : vector<4x64xf32> to vector<4x16xf32>
    %747 = arith.negf %746 : vector<4x16xf32>
    %748 = math.exp %747 : vector<4x16xf32>
    %cst_198 = arith.constant 1.000000e+00 : f32
    %749 = vector.broadcast %cst_198 : f32 to vector<4x16xf32>
    %750 = arith.addf %749, %748 : vector<4x16xf32>
    %751 = arith.divf %749, %750 : vector<4x16xf32>
    %752 = arith.mulf %743, %714 : vector<4x16xf32>
    %753 = arith.mulf %737, %745 : vector<4x16xf32>
    %754 = arith.addf %752, %753 : vector<4x16xf32>
    %755 = math.tanh %754 : vector<4x16xf32>
    %756 = arith.mulf %751, %755 : vector<4x16xf32>
    %757 = vector.extract_strided_slice %731 {offsets = [0, 0], sizes = [4, 16], strides = [1, 1]} : vector<4x64xf32> to vector<4x16xf32>
    %758 = arith.negf %757 : vector<4x16xf32>
    %759 = math.exp %758 : vector<4x16xf32>
    %cst_199 = arith.constant 1.000000e+00 : f32
    %760 = vector.broadcast %cst_199 : f32 to vector<4x16xf32>
    %761 = arith.addf %760, %759 : vector<4x16xf32>
    %762 = arith.divf %760, %761 : vector<4x16xf32>
    %763 = vector.extract_strided_slice %731 {offsets = [0, 16], sizes = [4, 16], strides = [1, 1]} : vector<4x64xf32> to vector<4x16xf32>
    %764 = arith.negf %763 : vector<4x16xf32>
    %765 = math.exp %764 : vector<4x16xf32>
    %cst_200 = arith.constant 1.000000e+00 : f32
    %766 = vector.broadcast %cst_200 : f32 to vector<4x16xf32>
    %767 = arith.addf %766, %765 : vector<4x16xf32>
    %768 = arith.divf %766, %767 : vector<4x16xf32>
    %769 = vector.extract_strided_slice %731 {offsets = [0, 32], sizes = [4, 16], strides = [1, 1]} : vector<4x64xf32> to vector<4x16xf32>
    %770 = math.tanh %769 : vector<4x16xf32>
    %771 = vector.extract_strided_slice %731 {offsets = [0, 48], sizes = [4, 16], strides = [1, 1]} : vector<4x64xf32> to vector<4x16xf32>
    %772 = arith.negf %771 : vector<4x16xf32>
    %773 = math.exp %772 : vector<4x16xf32>
    %cst_201 = arith.constant 1.000000e+00 : f32
    %774 = vector.broadcast %cst_201 : f32 to vector<4x16xf32>
    %775 = arith.addf %774, %773 : vector<4x16xf32>
    %776 = arith.divf %774, %775 : vector<4x16xf32>
    %777 = arith.mulf %768, %720 : vector<4x16xf32>
    %778 = arith.mulf %762, %770 : vector<4x16xf32>
    %779 = arith.addf %777, %778 : vector<4x16xf32>
    %780 = math.tanh %779 : vector<4x16xf32>
    %781 = arith.mulf %776, %780 : vector<4x16xf32>
    %782 = vector.broadcast %c7_i32_188 : i32 to vector<4x1xi32>
    %783 = arith.cmpi slt, %782, %0 : vector<4x1xi32>
    %784 = vector.broadcast %721 : i32 to vector<4x1xi32>
    %785 = arith.cmpi slt, %784, %0 : vector<4x1xi32>
    %cst_202 = arith.constant 0.000000e+00 : f32
    %786 = vector.shape_cast %783 : vector<4x1xi1> to vector<4x1xi1>
    %787 = vector.broadcast %786 : vector<4x1xi1> to vector<4x16xi1>
    %788 = vector.broadcast %cst_202 : f32 to vector<4x16xf32>
    %789 = arith.select %787, %756, %788 : vector<4x16xi1>, vector<4x16xf32>
    %790 = arith.index_cast %c7_i32_188 : i32 to index
    %c0_203 = arith.constant 0 : index
    %c0_204 = arith.constant 0 : index
    %791 = vector.load %arg13[%790, %c0_203, %c0_204] : memref<8x4x32xf32, #tpu.memory_space<vmem>>, vector<1x4x16xf32>
    %792 = vector.shape_cast %791 : vector<1x4x16xf32> to vector<4x16xf32>
    %793 = vector.shape_cast %789 : vector<4x16xf32> to vector<1x4x16xf32>
    tpu.vector_store %arg13[%790, %c0_203, %c0_204], %793 {strides = array<i32>} : memref<8x4x32xf32, #tpu.memory_space<vmem>>, vector<1x4x16xf32>,
    %cst_205 = arith.constant 0.000000e+00 : f32
    %794 = vector.shape_cast %785 : vector<4x1xi1> to vector<4x1xi1>
    %795 = vector.broadcast %794 : vector<4x1xi1> to vector<4x16xi1>
    %796 = vector.broadcast %cst_205 : f32 to vector<4x16xf32>
    %797 = arith.select %795, %781, %796 : vector<4x16xi1>, vector<4x16xf32>
    %798 = arith.index_cast %721 : i32 to index
    %c0_206 = arith.constant 0 : index
    %c16_207 = arith.constant 16 : index
    %799 = vector.load %arg13[%798, %c0_206, %c16_207] : memref<8x4x32xf32, #tpu.memory_space<vmem>>, vector<1x4x16xf32>
    %800 = vector.shape_cast %799 : vector<1x4x16xf32> to vector<4x16xf32>
    %801 = vector.shape_cast %797 : vector<4x16xf32> to vector<1x4x16xf32>
    tpu.vector_store %arg13[%798, %c0_206, %c16_207], %801 {strides = array<i32>} : memref<8x4x32xf32, #tpu.memory_space<vmem>>, vector<1x4x16xf32>,
    %802 = vector.shape_cast %783 : vector<4x1xi1> to vector<4x1xi1>
    %803 = vector.broadcast %802 : vector<4x1xi1> to vector<4x16xi1>
    %804 = arith.select %803, %756, %711 : vector<4x16xi1>, vector<4x16xf32>
    %805 = vector.shape_cast %783 : vector<4x1xi1> to vector<4x1xi1>
    %806 = vector.broadcast %805 : vector<4x1xi1> to vector<4x16xi1>
    %807 = arith.select %806, %754, %714 : vector<4x16xi1>, vector<4x16xf32>
    %808 = vector.shape_cast %785 : vector<4x1xi1> to vector<4x1xi1>
    %809 = vector.broadcast %808 : vector<4x1xi1> to vector<4x16xi1>
    %810 = arith.select %809, %781, %717 : vector<4x16xi1>, vector<4x16xf32>
    %811 = vector.shape_cast %785 : vector<4x1xi1> to vector<4x1xi1>
    %812 = vector.broadcast %811 : vector<4x1xi1> to vector<4x16xi1>
    %813 = arith.select %812, %779, %720 : vector<4x16xi1>, vector<4x16xf32>
    %c8_i32 = arith.constant 8 : i32
    %c0_208 = arith.constant 0 : index
    %c0_209 = arith.constant 0 : index
    %814 = vector.load %arg7[%c0_208, %c0_209] : memref<32x128xf32, #tpu.memory_space<vmem>>, vector<32x128xf32>
    %c0_210 = arith.constant 0 : index
    %c0_211 = arith.constant 0 : index
    %815 = vector.load %arg10[%c0_210, %c0_211] : memref<1x128xf32, #tpu.memory_space<vmem>>, vector<1x128xf32>
    %c0_212 = arith.constant 0 : index
    %c0_213 = arith.constant 0 : index
    %c0_214 = arith.constant 0 : index
    %816 = vector.load %arg13[%c0_212, %c0_213, %c0_214] : memref<8x4x32xf32, #tpu.memory_space<vmem>>, vector<1x4x32xf32>
    %817 = vector.shape_cast %816 : vector<1x4x32xf32> to vector<4x32xf32>
    %cst_215 = arith.constant dense<0.000000e+00> : vector<4x128xf32>
    %818 = tpu.matmul %817, %814, %cst_215 {dimension_numbers = #tpu.dot_dimension_numbers<[1], [0], [0], [1], [0, 0, 1, 1], [], []>} : vector<4x32xf32>, vector<32x128xf32>, vector<4x128xf32> -> vector<4x128xf32>
    %819 = vector.broadcast %815 : vector<1x128xf32> to vector<4x128xf32>
    %820 = arith.addf %818, %819 : vector<4x128xf32>
    %c0_216 = arith.constant 0 : index
    %c0_217 = arith.constant 0 : index
    %c0_218 = arith.constant 0 : index
    %821 = vector.load %arg12[%c0_216, %c0_217, %c0_218] : memref<8x4x128xf32, #tpu.memory_space<vmem>>, vector<1x4x128xf32>
    %822 = vector.shape_cast %821 : vector<1x4x128xf32> to vector<4x128xf32>
    %823 = vector.shape_cast %820 : vector<4x128xf32> to vector<1x4x128xf32>
    tpu.vector_store %arg12[%c0_216, %c0_217, %c0_218], %823 {strides = array<i32>} : memref<8x4x128xf32, #tpu.memory_space<vmem>>, vector<1x4x128xf32>,
    %c1_219 = arith.constant 1 : index
    %c0_220 = arith.constant 0 : index
    %c0_221 = arith.constant 0 : index
    %824 = vector.load %arg13[%c1_219, %c0_220, %c0_221] : memref<8x4x32xf32, #tpu.memory_space<vmem>>, vector<1x4x32xf32>
    %825 = vector.shape_cast %824 : vector<1x4x32xf32> to vector<4x32xf32>
    %cst_222 = arith.constant dense<0.000000e+00> : vector<4x128xf32>
    %826 = tpu.matmul %825, %814, %cst_222 {dimension_numbers = #tpu.dot_dimension_numbers<[1], [0], [0], [1], [0, 0, 1, 1], [], []>} : vector<4x32xf32>, vector<32x128xf32>, vector<4x128xf32> -> vector<4x128xf32>
    %827 = vector.broadcast %815 : vector<1x128xf32> to vector<4x128xf32>
    %828 = arith.addf %826, %827 : vector<4x128xf32>
    %c1_223 = arith.constant 1 : index
    %c0_224 = arith.constant 0 : index
    %c0_225 = arith.constant 0 : index
    %829 = vector.load %arg12[%c1_223, %c0_224, %c0_225] : memref<8x4x128xf32, #tpu.memory_space<vmem>>, vector<1x4x128xf32>
    %830 = vector.shape_cast %829 : vector<1x4x128xf32> to vector<4x128xf32>
    %831 = vector.shape_cast %828 : vector<4x128xf32> to vector<1x4x128xf32>
    tpu.vector_store %arg12[%c1_223, %c0_224, %c0_225], %831 {strides = array<i32>} : memref<8x4x128xf32, #tpu.memory_space<vmem>>, vector<1x4x128xf32>,
    %c2_226 = arith.constant 2 : index
    %c0_227 = arith.constant 0 : index
    %c0_228 = arith.constant 0 : index
    %832 = vector.load %arg13[%c2_226, %c0_227, %c0_228] : memref<8x4x32xf32, #tpu.memory_space<vmem>>, vector<1x4x32xf32>
    %833 = vector.shape_cast %832 : vector<1x4x32xf32> to vector<4x32xf32>
    %cst_229 = arith.constant dense<0.000000e+00> : vector<4x128xf32>
    %834 = tpu.matmul %833, %814, %cst_229 {dimension_numbers = #tpu.dot_dimension_numbers<[1], [0], [0], [1], [0, 0, 1, 1], [], []>} : vector<4x32xf32>, vector<32x128xf32>, vector<4x128xf32> -> vector<4x128xf32>
    %835 = vector.broadcast %815 : vector<1x128xf32> to vector<4x128xf32>
    %836 = arith.addf %834, %835 : vector<4x128xf32>
    %c2_230 = arith.constant 2 : index
    %c0_231 = arith.constant 0 : index
    %c0_232 = arith.constant 0 : index
    %837 = vector.load %arg12[%c2_230, %c0_231, %c0_232] : memref<8x4x128xf32, #tpu.memory_space<vmem>>, vector<1x4x128xf32>
    %838 = vector.shape_cast %837 : vector<1x4x128xf32> to vector<4x128xf32>
    %839 = vector.shape_cast %836 : vector<4x128xf32> to vector<1x4x128xf32>
    tpu.vector_store %arg12[%c2_230, %c0_231, %c0_232], %839 {strides = array<i32>} : memref<8x4x128xf32, #tpu.memory_space<vmem>>, vector<1x4x128xf32>,
    %c3_233 = arith.constant 3 : index
    %c0_234 = arith.constant 0 : index
    %c0_235 = arith.constant 0 : index
    %840 = vector.load %arg13[%c3_233, %c0_234, %c0_235] : memref<8x4x32xf32, #tpu.memory_space<vmem>>, vector<1x4x32xf32>
    %841 = vector.shape_cast %840 : vector<1x4x32xf32> to vector<4x32xf32>
    %cst_236 = arith.constant dense<0.000000e+00> : vector<4x128xf32>
    %842 = tpu.matmul %841, %814, %cst_236 {dimension_numbers = #tpu.dot_dimension_numbers<[1], [0], [0], [1], [0, 0, 1, 1], [], []>} : vector<4x32xf32>, vector<32x128xf32>, vector<4x128xf32> -> vector<4x128xf32>
    %843 = vector.broadcast %815 : vector<1x128xf32> to vector<4x128xf32>
    %844 = arith.addf %842, %843 : vector<4x128xf32>
    %c3_237 = arith.constant 3 : index
    %c0_238 = arith.constant 0 : index
    %c0_239 = arith.constant 0 : index
    %845 = vector.load %arg12[%c3_237, %c0_238, %c0_239] : memref<8x4x128xf32, #tpu.memory_space<vmem>>, vector<1x4x128xf32>
    %846 = vector.shape_cast %845 : vector<1x4x128xf32> to vector<4x128xf32>
    %847 = vector.shape_cast %844 : vector<4x128xf32> to vector<1x4x128xf32>
    tpu.vector_store %arg12[%c3_237, %c0_238, %c0_239], %847 {strides = array<i32>} : memref<8x4x128xf32, #tpu.memory_space<vmem>>, vector<1x4x128xf32>,
    %c4_240 = arith.constant 4 : index
    %c0_241 = arith.constant 0 : index
    %c0_242 = arith.constant 0 : index
    %848 = vector.load %arg13[%c4_240, %c0_241, %c0_242] : memref<8x4x32xf32, #tpu.memory_space<vmem>>, vector<1x4x32xf32>
    %849 = vector.shape_cast %848 : vector<1x4x32xf32> to vector<4x32xf32>
    %cst_243 = arith.constant dense<0.000000e+00> : vector<4x128xf32>
    %850 = tpu.matmul %849, %814, %cst_243 {dimension_numbers = #tpu.dot_dimension_numbers<[1], [0], [0], [1], [0, 0, 1, 1], [], []>} : vector<4x32xf32>, vector<32x128xf32>, vector<4x128xf32> -> vector<4x128xf32>
    %851 = vector.broadcast %815 : vector<1x128xf32> to vector<4x128xf32>
    %852 = arith.addf %850, %851 : vector<4x128xf32>
    %c4_244 = arith.constant 4 : index
    %c0_245 = arith.constant 0 : index
    %c0_246 = arith.constant 0 : index
    %853 = vector.load %arg12[%c4_244, %c0_245, %c0_246] : memref<8x4x128xf32, #tpu.memory_space<vmem>>, vector<1x4x128xf32>
    %854 = vector.shape_cast %853 : vector<1x4x128xf32> to vector<4x128xf32>
    %855 = vector.shape_cast %852 : vector<4x128xf32> to vector<1x4x128xf32>
    tpu.vector_store %arg12[%c4_244, %c0_245, %c0_246], %855 {strides = array<i32>} : memref<8x4x128xf32, #tpu.memory_space<vmem>>, vector<1x4x128xf32>,
    %c5_247 = arith.constant 5 : index
    %c0_248 = arith.constant 0 : index
    %c0_249 = arith.constant 0 : index
    %856 = vector.load %arg13[%c5_247, %c0_248, %c0_249] : memref<8x4x32xf32, #tpu.memory_space<vmem>>, vector<1x4x32xf32>
    %857 = vector.shape_cast %856 : vector<1x4x32xf32> to vector<4x32xf32>
    %cst_250 = arith.constant dense<0.000000e+00> : vector<4x128xf32>
    %858 = tpu.matmul %857, %814, %cst_250 {dimension_numbers = #tpu.dot_dimension_numbers<[1], [0], [0], [1], [0, 0, 1, 1], [], []>} : vector<4x32xf32>, vector<32x128xf32>, vector<4x128xf32> -> vector<4x128xf32>
    %859 = vector.broadcast %815 : vector<1x128xf32> to vector<4x128xf32>
    %860 = arith.addf %858, %859 : vector<4x128xf32>
    %c5_251 = arith.constant 5 : index
    %c0_252 = arith.constant 0 : index
    %c0_253 = arith.constant 0 : index
    %861 = vector.load %arg12[%c5_251, %c0_252, %c0_253] : memref<8x4x128xf32, #tpu.memory_space<vmem>>, vector<1x4x128xf32>
    %862 = vector.shape_cast %861 : vector<1x4x128xf32> to vector<4x128xf32>
    %863 = vector.shape_cast %860 : vector<4x128xf32> to vector<1x4x128xf32>
    tpu.vector_store %arg12[%c5_251, %c0_252, %c0_253], %863 {strides = array<i32>} : memref<8x4x128xf32, #tpu.memory_space<vmem>>, vector<1x4x128xf32>,
    %c6_254 = arith.constant 6 : index
    %c0_255 = arith.constant 0 : index
    %c0_256 = arith.constant 0 : index
    %864 = vector.load %arg13[%c6_254, %c0_255, %c0_256] : memref<8x4x32xf32, #tpu.memory_space<vmem>>, vector<1x4x32xf32>
    %865 = vector.shape_cast %864 : vector<1x4x32xf32> to vector<4x32xf32>
    %cst_257 = arith.constant dense<0.000000e+00> : vector<4x128xf32>
    %866 = tpu.matmul %865, %814, %cst_257 {dimension_numbers = #tpu.dot_dimension_numbers<[1], [0], [0], [1], [0, 0, 1, 1], [], []>} : vector<4x32xf32>, vector<32x128xf32>, vector<4x128xf32> -> vector<4x128xf32>
    %867 = vector.broadcast %815 : vector<1x128xf32> to vector<4x128xf32>
    %868 = arith.addf %866, %867 : vector<4x128xf32>
    %c6_258 = arith.constant 6 : index
    %c0_259 = arith.constant 0 : index
    %c0_260 = arith.constant 0 : index
    %869 = vector.load %arg12[%c6_258, %c0_259, %c0_260] : memref<8x4x128xf32, #tpu.memory_space<vmem>>, vector<1x4x128xf32>
    %870 = vector.shape_cast %869 : vector<1x4x128xf32> to vector<4x128xf32>
    %871 = vector.shape_cast %868 : vector<4x128xf32> to vector<1x4x128xf32>
    tpu.vector_store %arg12[%c6_258, %c0_259, %c0_260], %871 {strides = array<i32>} : memref<8x4x128xf32, #tpu.memory_space<vmem>>, vector<1x4x128xf32>,
    %c7_261 = arith.constant 7 : index
    %c0_262 = arith.constant 0 : index
    %c0_263 = arith.constant 0 : index
    %872 = vector.load %arg13[%c7_261, %c0_262, %c0_263] : memref<8x4x32xf32, #tpu.memory_space<vmem>>, vector<1x4x32xf32>
    %873 = vector.shape_cast %872 : vector<1x4x32xf32> to vector<4x32xf32>
    %cst_264 = arith.constant dense<0.000000e+00> : vector<4x128xf32>
    %874 = tpu.matmul %873, %814, %cst_264 {dimension_numbers = #tpu.dot_dimension_numbers<[1], [0], [0], [1], [0, 0, 1, 1], [], []>} : vector<4x32xf32>, vector<32x128xf32>, vector<4x128xf32> -> vector<4x128xf32>
    %875 = vector.broadcast %815 : vector<1x128xf32> to vector<4x128xf32>
    %876 = arith.addf %874, %875 : vector<4x128xf32>
    %c7_265 = arith.constant 7 : index
    %c0_266 = arith.constant 0 : index
    %c0_267 = arith.constant 0 : index
    %877 = vector.load %arg12[%c7_265, %c0_266, %c0_267] : memref<8x4x128xf32, #tpu.memory_space<vmem>>, vector<1x4x128xf32>
    %878 = vector.shape_cast %877 : vector<1x4x128xf32> to vector<4x128xf32>
    %879 = vector.shape_cast %876 : vector<4x128xf32> to vector<1x4x128xf32>
    tpu.vector_store %arg12[%c7_265, %c0_266, %c0_267], %879 {strides = array<i32>} : memref<8x4x128xf32, #tpu.memory_space<vmem>>, vector<1x4x128xf32>,
    %c0_268 = arith.constant 0 : index
    %c0_269 = arith.constant 0 : index
    %880 = vector.load %arg8[%c0_268, %c0_269] : memref<16x64xf32, #tpu.memory_space<vmem>>, vector<16x64xf32>
    %c0_270 = arith.constant 0 : index
    %c0_271 = arith.constant 0 : index
    %881 = vector.load %arg9[%c0_270, %c0_271] : memref<16x64xf32, #tpu.memory_space<vmem>>, vector<16x64xf32>
    %cst_272 = arith.constant 0.000000e+00 : f32
    %882 = vector.broadcast %cst_272 : f32 to vector<4x16xf32>
    %c0_i32_273 = arith.constant 0 : i32
    %c7_i32_274 = arith.constant 7 : i32
    %883 = arith.subi %c7_i32_274, %c0_i32_273 : i32
    %884 = arith.index_cast %c0_i32_273 : i32 to index
    %c0_275 = arith.constant 0 : index
    %c0_276 = arith.constant 0 : index
    %885 = vector.load %arg12[%884, %c0_275, %c0_276] : memref<8x4x128xf32, #tpu.memory_space<vmem>>, vector<1x4x64xf32>
    %886 = vector.shape_cast %885 : vector<1x4x64xf32> to vector<4x64xf32>
    %cst_277 = arith.constant dense<0.000000e+00> : vector<4x64xf32>
    %887 = tpu.matmul %882, %880, %cst_277 {dimension_numbers = #tpu.dot_dimension_numbers<[1], [0], [0], [1], [0, 0, 1, 1], [], []>} : vector<4x16xf32>, vector<16x64xf32>, vector<4x64xf32> -> vector<4x64xf32>
    %888 = arith.addf %886, %887 : vector<4x64xf32>
    %889 = arith.index_cast %883 : i32 to index
    %c0_278 = arith.constant 0 : index
    %c64_279 = arith.constant 64 : index
    %890 = vector.load %arg12[%889, %c0_278, %c64_279] : memref<8x4x128xf32, #tpu.memory_space<vmem>>, vector<1x4x64xf32>
    %891 = vector.shape_cast %890 : vector<1x4x64xf32> to vector<4x64xf32>
    %cst_280 = arith.constant dense<0.000000e+00> : vector<4x64xf32>
    %892 = tpu.matmul %882, %881, %cst_280 {dimension_numbers = #tpu.dot_dimension_numbers<[1], [0], [0], [1], [0, 0, 1, 1], [], []>} : vector<4x16xf32>, vector<16x64xf32>, vector<4x64xf32> -> vector<4x64xf32>
    %893 = arith.addf %891, %892 : vector<4x64xf32>
    %894 = vector.extract_strided_slice %888 {offsets = [0, 0], sizes = [4, 16], strides = [1, 1]} : vector<4x64xf32> to vector<4x16xf32>
    %895 = arith.negf %894 : vector<4x16xf32>
    %896 = math.exp %895 : vector<4x16xf32>
    %cst_281 = arith.constant 1.000000e+00 : f32
    %897 = vector.broadcast %cst_281 : f32 to vector<4x16xf32>
    %898 = arith.addf %897, %896 : vector<4x16xf32>
    %899 = arith.divf %897, %898 : vector<4x16xf32>
    %900 = vector.extract_strided_slice %888 {offsets = [0, 16], sizes = [4, 16], strides = [1, 1]} : vector<4x64xf32> to vector<4x16xf32>
    %901 = arith.negf %900 : vector<4x16xf32>
    %902 = math.exp %901 : vector<4x16xf32>
    %cst_282 = arith.constant 1.000000e+00 : f32
    %903 = vector.broadcast %cst_282 : f32 to vector<4x16xf32>
    %904 = arith.addf %903, %902 : vector<4x16xf32>
    %905 = arith.divf %903, %904 : vector<4x16xf32>
    %906 = vector.extract_strided_slice %888 {offsets = [0, 32], sizes = [4, 16], strides = [1, 1]} : vector<4x64xf32> to vector<4x16xf32>
    %907 = math.tanh %906 : vector<4x16xf32>
    %908 = vector.extract_strided_slice %888 {offsets = [0, 48], sizes = [4, 16], strides = [1, 1]} : vector<4x64xf32> to vector<4x16xf32>
    %909 = arith.negf %908 : vector<4x16xf32>
    %910 = math.exp %909 : vector<4x16xf32>
    %cst_283 = arith.constant 1.000000e+00 : f32
    %911 = vector.broadcast %cst_283 : f32 to vector<4x16xf32>
    %912 = arith.addf %911, %910 : vector<4x16xf32>
    %913 = arith.divf %911, %912 : vector<4x16xf32>
    %914 = arith.mulf %905, %882 : vector<4x16xf32>
    %915 = arith.mulf %899, %907 : vector<4x16xf32>
    %916 = arith.addf %914, %915 : vector<4x16xf32>
    %917 = math.tanh %916 : vector<4x16xf32>
    %918 = arith.mulf %913, %917 : vector<4x16xf32>
    %919 = vector.extract_strided_slice %893 {offsets = [0, 0], sizes = [4, 16], strides = [1, 1]} : vector<4x64xf32> to vector<4x16xf32>
    %920 = arith.negf %919 : vector<4x16xf32>
    %921 = math.exp %920 : vector<4x16xf32>
    %cst_284 = arith.constant 1.000000e+00 : f32
    %922 = vector.broadcast %cst_284 : f32 to vector<4x16xf32>
    %923 = arith.addf %922, %921 : vector<4x16xf32>
    %924 = arith.divf %922, %923 : vector<4x16xf32>
    %925 = vector.extract_strided_slice %893 {offsets = [0, 16], sizes = [4, 16], strides = [1, 1]} : vector<4x64xf32> to vector<4x16xf32>
    %926 = arith.negf %925 : vector<4x16xf32>
    %927 = math.exp %926 : vector<4x16xf32>
    %cst_285 = arith.constant 1.000000e+00 : f32
    %928 = vector.broadcast %cst_285 : f32 to vector<4x16xf32>
    %929 = arith.addf %928, %927 : vector<4x16xf32>
    %930 = arith.divf %928, %929 : vector<4x16xf32>
    %931 = vector.extract_strided_slice %893 {offsets = [0, 32], sizes = [4, 16], strides = [1, 1]} : vector<4x64xf32> to vector<4x16xf32>
    %932 = math.tanh %931 : vector<4x16xf32>
    %933 = vector.extract_strided_slice %893 {offsets = [0, 48], sizes = [4, 16], strides = [1, 1]} : vector<4x64xf32> to vector<4x16xf32>
    %934 = arith.negf %933 : vector<4x16xf32>
    %935 = math.exp %934 : vector<4x16xf32>
    %cst_286 = arith.constant 1.000000e+00 : f32
    %936 = vector.broadcast %cst_286 : f32 to vector<4x16xf32>
    %937 = arith.addf %936, %935 : vector<4x16xf32>
    %938 = arith.divf %936, %937 : vector<4x16xf32>
    %939 = arith.mulf %930, %882 : vector<4x16xf32>
    %940 = arith.mulf %924, %932 : vector<4x16xf32>
    %941 = arith.addf %939, %940 : vector<4x16xf32>
    %942 = math.tanh %941 : vector<4x16xf32>
    %943 = arith.mulf %938, %942 : vector<4x16xf32>
    %944 = vector.broadcast %c0_i32_273 : i32 to vector<4x1xi32>
    %945 = arith.cmpi slt, %944, %0 : vector<4x1xi32>
    %946 = vector.broadcast %883 : i32 to vector<4x1xi32>
    %947 = arith.cmpi slt, %946, %0 : vector<4x1xi32>
    %cst_287 = arith.constant 0.000000e+00 : f32
    %948 = vector.shape_cast %945 : vector<4x1xi1> to vector<4x1xi1>
    %949 = vector.broadcast %948 : vector<4x1xi1> to vector<4x16xi1>
    %950 = vector.broadcast %cst_287 : f32 to vector<4x16xf32>
    %951 = arith.select %949, %918, %950 : vector<4x16xi1>, vector<4x16xf32>
    %952 = arith.index_cast %c0_i32_273 : i32 to index
    %c0_288 = arith.constant 0 : index
    %c0_289 = arith.constant 0 : index
    %953 = vector.load %arg11[%952, %c0_288, %c0_289] : memref<8x4x32xf32, #tpu.memory_space<vmem>>, vector<1x4x16xf32>
    %954 = vector.shape_cast %953 : vector<1x4x16xf32> to vector<4x16xf32>
    %955 = vector.shape_cast %951 : vector<4x16xf32> to vector<1x4x16xf32>
    tpu.vector_store %arg11[%952, %c0_288, %c0_289], %955 {strides = array<i32>} : memref<8x4x32xf32, #tpu.memory_space<vmem>>, vector<1x4x16xf32>,
    %cst_290 = arith.constant 0.000000e+00 : f32
    %956 = vector.shape_cast %947 : vector<4x1xi1> to vector<4x1xi1>
    %957 = vector.broadcast %956 : vector<4x1xi1> to vector<4x16xi1>
    %958 = vector.broadcast %cst_290 : f32 to vector<4x16xf32>
    %959 = arith.select %957, %943, %958 : vector<4x16xi1>, vector<4x16xf32>
    %960 = arith.index_cast %883 : i32 to index
    %c0_291 = arith.constant 0 : index
    %c16_292 = arith.constant 16 : index
    %961 = vector.load %arg11[%960, %c0_291, %c16_292] : memref<8x4x32xf32, #tpu.memory_space<vmem>>, vector<1x4x16xf32>
    %962 = vector.shape_cast %961 : vector<1x4x16xf32> to vector<4x16xf32>
    %963 = vector.shape_cast %959 : vector<4x16xf32> to vector<1x4x16xf32>
    tpu.vector_store %arg11[%960, %c0_291, %c16_292], %963 {strides = array<i32>} : memref<8x4x32xf32, #tpu.memory_space<vmem>>, vector<1x4x16xf32>,
    %964 = vector.shape_cast %945 : vector<4x1xi1> to vector<4x1xi1>
    %965 = vector.broadcast %964 : vector<4x1xi1> to vector<4x16xi1>
    %966 = arith.select %965, %918, %882 : vector<4x16xi1>, vector<4x16xf32>
    %967 = vector.shape_cast %945 : vector<4x1xi1> to vector<4x1xi1>
    %968 = vector.broadcast %967 : vector<4x1xi1> to vector<4x16xi1>
    %969 = arith.select %968, %916, %882 : vector<4x16xi1>, vector<4x16xf32>
    %970 = vector.shape_cast %947 : vector<4x1xi1> to vector<4x1xi1>
    %971 = vector.broadcast %970 : vector<4x1xi1> to vector<4x16xi1>
    %972 = arith.select %971, %943, %882 : vector<4x16xi1>, vector<4x16xf32>
    %973 = vector.shape_cast %947 : vector<4x1xi1> to vector<4x1xi1>
    %974 = vector.broadcast %973 : vector<4x1xi1> to vector<4x16xi1>
    %975 = arith.select %974, %941, %882 : vector<4x16xi1>, vector<4x16xf32>
    %c1_i32_293 = arith.constant 1 : i32
    %c7_i32_294 = arith.constant 7 : i32
    %976 = arith.subi %c7_i32_294, %c1_i32_293 : i32
    %977 = arith.index_cast %c1_i32_293 : i32 to index
    %c0_295 = arith.constant 0 : index
    %c0_296 = arith.constant 0 : index
    %978 = vector.load %arg12[%977, %c0_295, %c0_296] : memref<8x4x128xf32, #tpu.memory_space<vmem>>, vector<1x4x64xf32>
    %979 = vector.shape_cast %978 : vector<1x4x64xf32> to vector<4x64xf32>
    %cst_297 = arith.constant dense<0.000000e+00> : vector<4x64xf32>
    %980 = tpu.matmul %966, %880, %cst_297 {dimension_numbers = #tpu.dot_dimension_numbers<[1], [0], [0], [1], [0, 0, 1, 1], [], []>} : vector<4x16xf32>, vector<16x64xf32>, vector<4x64xf32> -> vector<4x64xf32>
    %981 = arith.addf %979, %980 : vector<4x64xf32>
    %982 = arith.index_cast %976 : i32 to index
    %c0_298 = arith.constant 0 : index
    %c64_299 = arith.constant 64 : index
    %983 = vector.load %arg12[%982, %c0_298, %c64_299] : memref<8x4x128xf32, #tpu.memory_space<vmem>>, vector<1x4x64xf32>
    %984 = vector.shape_cast %983 : vector<1x4x64xf32> to vector<4x64xf32>
    %cst_300 = arith.constant dense<0.000000e+00> : vector<4x64xf32>
    %985 = tpu.matmul %972, %881, %cst_300 {dimension_numbers = #tpu.dot_dimension_numbers<[1], [0], [0], [1], [0, 0, 1, 1], [], []>} : vector<4x16xf32>, vector<16x64xf32>, vector<4x64xf32> -> vector<4x64xf32>
    %986 = arith.addf %984, %985 : vector<4x64xf32>
    %987 = vector.extract_strided_slice %981 {offsets = [0, 0], sizes = [4, 16], strides = [1, 1]} : vector<4x64xf32> to vector<4x16xf32>
    %988 = arith.negf %987 : vector<4x16xf32>
    %989 = math.exp %988 : vector<4x16xf32>
    %cst_301 = arith.constant 1.000000e+00 : f32
    %990 = vector.broadcast %cst_301 : f32 to vector<4x16xf32>
    %991 = arith.addf %990, %989 : vector<4x16xf32>
    %992 = arith.divf %990, %991 : vector<4x16xf32>
    %993 = vector.extract_strided_slice %981 {offsets = [0, 16], sizes = [4, 16], strides = [1, 1]} : vector<4x64xf32> to vector<4x16xf32>
    %994 = arith.negf %993 : vector<4x16xf32>
    %995 = math.exp %994 : vector<4x16xf32>
    %cst_302 = arith.constant 1.000000e+00 : f32
    %996 = vector.broadcast %cst_302 : f32 to vector<4x16xf32>
    %997 = arith.addf %996, %995 : vector<4x16xf32>
    %998 = arith.divf %996, %997 : vector<4x16xf32>
    %999 = vector.extract_strided_slice %981 {offsets = [0, 32], sizes = [4, 16], strides = [1, 1]} : vector<4x64xf32> to vector<4x16xf32>
    %1000 = math.tanh %999 : vector<4x16xf32>
    %1001 = vector.extract_strided_slice %981 {offsets = [0, 48], sizes = [4, 16], strides = [1, 1]} : vector<4x64xf32> to vector<4x16xf32>
    %1002 = arith.negf %1001 : vector<4x16xf32>
    %1003 = math.exp %1002 : vector<4x16xf32>
    %cst_303 = arith.constant 1.000000e+00 : f32
    %1004 = vector.broadcast %cst_303 : f32 to vector<4x16xf32>
    %1005 = arith.addf %1004, %1003 : vector<4x16xf32>
    %1006 = arith.divf %1004, %1005 : vector<4x16xf32>
    %1007 = arith.mulf %998, %969 : vector<4x16xf32>
    %1008 = arith.mulf %992, %1000 : vector<4x16xf32>
    %1009 = arith.addf %1007, %1008 : vector<4x16xf32>
    %1010 = math.tanh %1009 : vector<4x16xf32>
    %1011 = arith.mulf %1006, %1010 : vector<4x16xf32>
    %1012 = vector.extract_strided_slice %986 {offsets = [0, 0], sizes = [4, 16], strides = [1, 1]} : vector<4x64xf32> to vector<4x16xf32>
    %1013 = arith.negf %1012 : vector<4x16xf32>
    %1014 = math.exp %1013 : vector<4x16xf32>
    %cst_304 = arith.constant 1.000000e+00 : f32
    %1015 = vector.broadcast %cst_304 : f32 to vector<4x16xf32>
    %1016 = arith.addf %1015, %1014 : vector<4x16xf32>
    %1017 = arith.divf %1015, %1016 : vector<4x16xf32>
    %1018 = vector.extract_strided_slice %986 {offsets = [0, 16], sizes = [4, 16], strides = [1, 1]} : vector<4x64xf32> to vector<4x16xf32>
    %1019 = arith.negf %1018 : vector<4x16xf32>
    %1020 = math.exp %1019 : vector<4x16xf32>
    %cst_305 = arith.constant 1.000000e+00 : f32
    %1021 = vector.broadcast %cst_305 : f32 to vector<4x16xf32>
    %1022 = arith.addf %1021, %1020 : vector<4x16xf32>
    %1023 = arith.divf %1021, %1022 : vector<4x16xf32>
    %1024 = vector.extract_strided_slice %986 {offsets = [0, 32], sizes = [4, 16], strides = [1, 1]} : vector<4x64xf32> to vector<4x16xf32>
    %1025 = math.tanh %1024 : vector<4x16xf32>
    %1026 = vector.extract_strided_slice %986 {offsets = [0, 48], sizes = [4, 16], strides = [1, 1]} : vector<4x64xf32> to vector<4x16xf32>
    %1027 = arith.negf %1026 : vector<4x16xf32>
    %1028 = math.exp %1027 : vector<4x16xf32>
    %cst_306 = arith.constant 1.000000e+00 : f32
    %1029 = vector.broadcast %cst_306 : f32 to vector<4x16xf32>
    %1030 = arith.addf %1029, %1028 : vector<4x16xf32>
    %1031 = arith.divf %1029, %1030 : vector<4x16xf32>
    %1032 = arith.mulf %1023, %975 : vector<4x16xf32>
    %1033 = arith.mulf %1017, %1025 : vector<4x16xf32>
    %1034 = arith.addf %1032, %1033 : vector<4x16xf32>
    %1035 = math.tanh %1034 : vector<4x16xf32>
    %1036 = arith.mulf %1031, %1035 : vector<4x16xf32>
    %1037 = vector.broadcast %c1_i32_293 : i32 to vector<4x1xi32>
    %1038 = arith.cmpi slt, %1037, %0 : vector<4x1xi32>
    %1039 = vector.broadcast %976 : i32 to vector<4x1xi32>
    %1040 = arith.cmpi slt, %1039, %0 : vector<4x1xi32>
    %cst_307 = arith.constant 0.000000e+00 : f32
    %1041 = vector.shape_cast %1038 : vector<4x1xi1> to vector<4x1xi1>
    %1042 = vector.broadcast %1041 : vector<4x1xi1> to vector<4x16xi1>
    %1043 = vector.broadcast %cst_307 : f32 to vector<4x16xf32>
    %1044 = arith.select %1042, %1011, %1043 : vector<4x16xi1>, vector<4x16xf32>
    %1045 = arith.index_cast %c1_i32_293 : i32 to index
    %c0_308 = arith.constant 0 : index
    %c0_309 = arith.constant 0 : index
    %1046 = vector.load %arg11[%1045, %c0_308, %c0_309] : memref<8x4x32xf32, #tpu.memory_space<vmem>>, vector<1x4x16xf32>
    %1047 = vector.shape_cast %1046 : vector<1x4x16xf32> to vector<4x16xf32>
    %1048 = vector.shape_cast %1044 : vector<4x16xf32> to vector<1x4x16xf32>
    tpu.vector_store %arg11[%1045, %c0_308, %c0_309], %1048 {strides = array<i32>} : memref<8x4x32xf32, #tpu.memory_space<vmem>>, vector<1x4x16xf32>,
    %cst_310 = arith.constant 0.000000e+00 : f32
    %1049 = vector.shape_cast %1040 : vector<4x1xi1> to vector<4x1xi1>
    %1050 = vector.broadcast %1049 : vector<4x1xi1> to vector<4x16xi1>
    %1051 = vector.broadcast %cst_310 : f32 to vector<4x16xf32>
    %1052 = arith.select %1050, %1036, %1051 : vector<4x16xi1>, vector<4x16xf32>
    %1053 = arith.index_cast %976 : i32 to index
    %c0_311 = arith.constant 0 : index
    %c16_312 = arith.constant 16 : index
    %1054 = vector.load %arg11[%1053, %c0_311, %c16_312] : memref<8x4x32xf32, #tpu.memory_space<vmem>>, vector<1x4x16xf32>
    %1055 = vector.shape_cast %1054 : vector<1x4x16xf32> to vector<4x16xf32>
    %1056 = vector.shape_cast %1052 : vector<4x16xf32> to vector<1x4x16xf32>
    tpu.vector_store %arg11[%1053, %c0_311, %c16_312], %1056 {strides = array<i32>} : memref<8x4x32xf32, #tpu.memory_space<vmem>>, vector<1x4x16xf32>,
    %1057 = vector.shape_cast %1038 : vector<4x1xi1> to vector<4x1xi1>
    %1058 = vector.broadcast %1057 : vector<4x1xi1> to vector<4x16xi1>
    %1059 = arith.select %1058, %1011, %966 : vector<4x16xi1>, vector<4x16xf32>
    %1060 = vector.shape_cast %1038 : vector<4x1xi1> to vector<4x1xi1>
    %1061 = vector.broadcast %1060 : vector<4x1xi1> to vector<4x16xi1>
    %1062 = arith.select %1061, %1009, %969 : vector<4x16xi1>, vector<4x16xf32>
    %1063 = vector.shape_cast %1040 : vector<4x1xi1> to vector<4x1xi1>
    %1064 = vector.broadcast %1063 : vector<4x1xi1> to vector<4x16xi1>
    %1065 = arith.select %1064, %1036, %972 : vector<4x16xi1>, vector<4x16xf32>
    %1066 = vector.shape_cast %1040 : vector<4x1xi1> to vector<4x1xi1>
    %1067 = vector.broadcast %1066 : vector<4x1xi1> to vector<4x16xi1>
    %1068 = arith.select %1067, %1034, %975 : vector<4x16xi1>, vector<4x16xf32>
    %c2_i32_313 = arith.constant 2 : i32
    %c7_i32_314 = arith.constant 7 : i32
    %1069 = arith.subi %c7_i32_314, %c2_i32_313 : i32
    %1070 = arith.index_cast %c2_i32_313 : i32 to index
    %c0_315 = arith.constant 0 : index
    %c0_316 = arith.constant 0 : index
    %1071 = vector.load %arg12[%1070, %c0_315, %c0_316] : memref<8x4x128xf32, #tpu.memory_space<vmem>>, vector<1x4x64xf32>
    %1072 = vector.shape_cast %1071 : vector<1x4x64xf32> to vector<4x64xf32>
    %cst_317 = arith.constant dense<0.000000e+00> : vector<4x64xf32>
    %1073 = tpu.matmul %1059, %880, %cst_317 {dimension_numbers = #tpu.dot_dimension_numbers<[1], [0], [0], [1], [0, 0, 1, 1], [], []>} : vector<4x16xf32>, vector<16x64xf32>, vector<4x64xf32> -> vector<4x64xf32>
    %1074 = arith.addf %1072, %1073 : vector<4x64xf32>
    %1075 = arith.index_cast %1069 : i32 to index
    %c0_318 = arith.constant 0 : index
    %c64_319 = arith.constant 64 : index
    %1076 = vector.load %arg12[%1075, %c0_318, %c64_319] : memref<8x4x128xf32, #tpu.memory_space<vmem>>, vector<1x4x64xf32>
    %1077 = vector.shape_cast %1076 : vector<1x4x64xf32> to vector<4x64xf32>
    %cst_320 = arith.constant dense<0.000000e+00> : vector<4x64xf32>
    %1078 = tpu.matmul %1065, %881, %cst_320 {dimension_numbers = #tpu.dot_dimension_numbers<[1], [0], [0], [1], [0, 0, 1, 1], [], []>} : vector<4x16xf32>, vector<16x64xf32>, vector<4x64xf32> -> vector<4x64xf32>
    %1079 = arith.addf %1077, %1078 : vector<4x64xf32>
    %1080 = vector.extract_strided_slice %1074 {offsets = [0, 0], sizes = [4, 16], strides = [1, 1]} : vector<4x64xf32> to vector<4x16xf32>
    %1081 = arith.negf %1080 : vector<4x16xf32>
    %1082 = math.exp %1081 : vector<4x16xf32>
    %cst_321 = arith.constant 1.000000e+00 : f32
    %1083 = vector.broadcast %cst_321 : f32 to vector<4x16xf32>
    %1084 = arith.addf %1083, %1082 : vector<4x16xf32>
    %1085 = arith.divf %1083, %1084 : vector<4x16xf32>
    %1086 = vector.extract_strided_slice %1074 {offsets = [0, 16], sizes = [4, 16], strides = [1, 1]} : vector<4x64xf32> to vector<4x16xf32>
    %1087 = arith.negf %1086 : vector<4x16xf32>
    %1088 = math.exp %1087 : vector<4x16xf32>
    %cst_322 = arith.constant 1.000000e+00 : f32
    %1089 = vector.broadcast %cst_322 : f32 to vector<4x16xf32>
    %1090 = arith.addf %1089, %1088 : vector<4x16xf32>
    %1091 = arith.divf %1089, %1090 : vector<4x16xf32>
    %1092 = vector.extract_strided_slice %1074 {offsets = [0, 32], sizes = [4, 16], strides = [1, 1]} : vector<4x64xf32> to vector<4x16xf32>
    %1093 = math.tanh %1092 : vector<4x16xf32>
    %1094 = vector.extract_strided_slice %1074 {offsets = [0, 48], sizes = [4, 16], strides = [1, 1]} : vector<4x64xf32> to vector<4x16xf32>
    %1095 = arith.negf %1094 : vector<4x16xf32>
    %1096 = math.exp %1095 : vector<4x16xf32>
    %cst_323 = arith.constant 1.000000e+00 : f32
    %1097 = vector.broadcast %cst_323 : f32 to vector<4x16xf32>
    %1098 = arith.addf %1097, %1096 : vector<4x16xf32>
    %1099 = arith.divf %1097, %1098 : vector<4x16xf32>
    %1100 = arith.mulf %1091, %1062 : vector<4x16xf32>
    %1101 = arith.mulf %1085, %1093 : vector<4x16xf32>
    %1102 = arith.addf %1100, %1101 : vector<4x16xf32>
    %1103 = math.tanh %1102 : vector<4x16xf32>
    %1104 = arith.mulf %1099, %1103 : vector<4x16xf32>
    %1105 = vector.extract_strided_slice %1079 {offsets = [0, 0], sizes = [4, 16], strides = [1, 1]} : vector<4x64xf32> to vector<4x16xf32>
    %1106 = arith.negf %1105 : vector<4x16xf32>
    %1107 = math.exp %1106 : vector<4x16xf32>
    %cst_324 = arith.constant 1.000000e+00 : f32
    %1108 = vector.broadcast %cst_324 : f32 to vector<4x16xf32>
    %1109 = arith.addf %1108, %1107 : vector<4x16xf32>
    %1110 = arith.divf %1108, %1109 : vector<4x16xf32>
    %1111 = vector.extract_strided_slice %1079 {offsets = [0, 16], sizes = [4, 16], strides = [1, 1]} : vector<4x64xf32> to vector<4x16xf32>
    %1112 = arith.negf %1111 : vector<4x16xf32>
    %1113 = math.exp %1112 : vector<4x16xf32>
    %cst_325 = arith.constant 1.000000e+00 : f32
    %1114 = vector.broadcast %cst_325 : f32 to vector<4x16xf32>
    %1115 = arith.addf %1114, %1113 : vector<4x16xf32>
    %1116 = arith.divf %1114, %1115 : vector<4x16xf32>
    %1117 = vector.extract_strided_slice %1079 {offsets = [0, 32], sizes = [4, 16], strides = [1, 1]} : vector<4x64xf32> to vector<4x16xf32>
    %1118 = math.tanh %1117 : vector<4x16xf32>
    %1119 = vector.extract_strided_slice %1079 {offsets = [0, 48], sizes = [4, 16], strides = [1, 1]} : vector<4x64xf32> to vector<4x16xf32>
    %1120 = arith.negf %1119 : vector<4x16xf32>
    %1121 = math.exp %1120 : vector<4x16xf32>
    %cst_326 = arith.constant 1.000000e+00 : f32
    %1122 = vector.broadcast %cst_326 : f32 to vector<4x16xf32>
    %1123 = arith.addf %1122, %1121 : vector<4x16xf32>
    %1124 = arith.divf %1122, %1123 : vector<4x16xf32>
    %1125 = arith.mulf %1116, %1068 : vector<4x16xf32>
    %1126 = arith.mulf %1110, %1118 : vector<4x16xf32>
    %1127 = arith.addf %1125, %1126 : vector<4x16xf32>
    %1128 = math.tanh %1127 : vector<4x16xf32>
    %1129 = arith.mulf %1124, %1128 : vector<4x16xf32>
    %1130 = vector.broadcast %c2_i32_313 : i32 to vector<4x1xi32>
    %1131 = arith.cmpi slt, %1130, %0 : vector<4x1xi32>
    %1132 = vector.broadcast %1069 : i32 to vector<4x1xi32>
    %1133 = arith.cmpi slt, %1132, %0 : vector<4x1xi32>
    %cst_327 = arith.constant 0.000000e+00 : f32
    %1134 = vector.shape_cast %1131 : vector<4x1xi1> to vector<4x1xi1>
    %1135 = vector.broadcast %1134 : vector<4x1xi1> to vector<4x16xi1>
    %1136 = vector.broadcast %cst_327 : f32 to vector<4x16xf32>
    %1137 = arith.select %1135, %1104, %1136 : vector<4x16xi1>, vector<4x16xf32>
    %1138 = arith.index_cast %c2_i32_313 : i32 to index
    %c0_328 = arith.constant 0 : index
    %c0_329 = arith.constant 0 : index
    %1139 = vector.load %arg11[%1138, %c0_328, %c0_329] : memref<8x4x32xf32, #tpu.memory_space<vmem>>, vector<1x4x16xf32>
    %1140 = vector.shape_cast %1139 : vector<1x4x16xf32> to vector<4x16xf32>
    %1141 = vector.shape_cast %1137 : vector<4x16xf32> to vector<1x4x16xf32>
    tpu.vector_store %arg11[%1138, %c0_328, %c0_329], %1141 {strides = array<i32>} : memref<8x4x32xf32, #tpu.memory_space<vmem>>, vector<1x4x16xf32>,
    %cst_330 = arith.constant 0.000000e+00 : f32
    %1142 = vector.shape_cast %1133 : vector<4x1xi1> to vector<4x1xi1>
    %1143 = vector.broadcast %1142 : vector<4x1xi1> to vector<4x16xi1>
    %1144 = vector.broadcast %cst_330 : f32 to vector<4x16xf32>
    %1145 = arith.select %1143, %1129, %1144 : vector<4x16xi1>, vector<4x16xf32>
    %1146 = arith.index_cast %1069 : i32 to index
    %c0_331 = arith.constant 0 : index
    %c16_332 = arith.constant 16 : index
    %1147 = vector.load %arg11[%1146, %c0_331, %c16_332] : memref<8x4x32xf32, #tpu.memory_space<vmem>>, vector<1x4x16xf32>
    %1148 = vector.shape_cast %1147 : vector<1x4x16xf32> to vector<4x16xf32>
    %1149 = vector.shape_cast %1145 : vector<4x16xf32> to vector<1x4x16xf32>
    tpu.vector_store %arg11[%1146, %c0_331, %c16_332], %1149 {strides = array<i32>} : memref<8x4x32xf32, #tpu.memory_space<vmem>>, vector<1x4x16xf32>,
    %1150 = vector.shape_cast %1131 : vector<4x1xi1> to vector<4x1xi1>
    %1151 = vector.broadcast %1150 : vector<4x1xi1> to vector<4x16xi1>
    %1152 = arith.select %1151, %1104, %1059 : vector<4x16xi1>, vector<4x16xf32>
    %1153 = vector.shape_cast %1131 : vector<4x1xi1> to vector<4x1xi1>
    %1154 = vector.broadcast %1153 : vector<4x1xi1> to vector<4x16xi1>
    %1155 = arith.select %1154, %1102, %1062 : vector<4x16xi1>, vector<4x16xf32>
    %1156 = vector.shape_cast %1133 : vector<4x1xi1> to vector<4x1xi1>
    %1157 = vector.broadcast %1156 : vector<4x1xi1> to vector<4x16xi1>
    %1158 = arith.select %1157, %1129, %1065 : vector<4x16xi1>, vector<4x16xf32>
    %1159 = vector.shape_cast %1133 : vector<4x1xi1> to vector<4x1xi1>
    %1160 = vector.broadcast %1159 : vector<4x1xi1> to vector<4x16xi1>
    %1161 = arith.select %1160, %1127, %1068 : vector<4x16xi1>, vector<4x16xf32>
    %c3_i32_333 = arith.constant 3 : i32
    %c7_i32_334 = arith.constant 7 : i32
    %1162 = arith.subi %c7_i32_334, %c3_i32_333 : i32
    %1163 = arith.index_cast %c3_i32_333 : i32 to index
    %c0_335 = arith.constant 0 : index
    %c0_336 = arith.constant 0 : index
    %1164 = vector.load %arg12[%1163, %c0_335, %c0_336] : memref<8x4x128xf32, #tpu.memory_space<vmem>>, vector<1x4x64xf32>
    %1165 = vector.shape_cast %1164 : vector<1x4x64xf32> to vector<4x64xf32>
    %cst_337 = arith.constant dense<0.000000e+00> : vector<4x64xf32>
    %1166 = tpu.matmul %1152, %880, %cst_337 {dimension_numbers = #tpu.dot_dimension_numbers<[1], [0], [0], [1], [0, 0, 1, 1], [], []>} : vector<4x16xf32>, vector<16x64xf32>, vector<4x64xf32> -> vector<4x64xf32>
    %1167 = arith.addf %1165, %1166 : vector<4x64xf32>
    %1168 = arith.index_cast %1162 : i32 to index
    %c0_338 = arith.constant 0 : index
    %c64_339 = arith.constant 64 : index
    %1169 = vector.load %arg12[%1168, %c0_338, %c64_339] : memref<8x4x128xf32, #tpu.memory_space<vmem>>, vector<1x4x64xf32>
    %1170 = vector.shape_cast %1169 : vector<1x4x64xf32> to vector<4x64xf32>
    %cst_340 = arith.constant dense<0.000000e+00> : vector<4x64xf32>
    %1171 = tpu.matmul %1158, %881, %cst_340 {dimension_numbers = #tpu.dot_dimension_numbers<[1], [0], [0], [1], [0, 0, 1, 1], [], []>} : vector<4x16xf32>, vector<16x64xf32>, vector<4x64xf32> -> vector<4x64xf32>
    %1172 = arith.addf %1170, %1171 : vector<4x64xf32>
    %1173 = vector.extract_strided_slice %1167 {offsets = [0, 0], sizes = [4, 16], strides = [1, 1]} : vector<4x64xf32> to vector<4x16xf32>
    %1174 = arith.negf %1173 : vector<4x16xf32>
    %1175 = math.exp %1174 : vector<4x16xf32>
    %cst_341 = arith.constant 1.000000e+00 : f32
    %1176 = vector.broadcast %cst_341 : f32 to vector<4x16xf32>
    %1177 = arith.addf %1176, %1175 : vector<4x16xf32>
    %1178 = arith.divf %1176, %1177 : vector<4x16xf32>
    %1179 = vector.extract_strided_slice %1167 {offsets = [0, 16], sizes = [4, 16], strides = [1, 1]} : vector<4x64xf32> to vector<4x16xf32>
    %1180 = arith.negf %1179 : vector<4x16xf32>
    %1181 = math.exp %1180 : vector<4x16xf32>
    %cst_342 = arith.constant 1.000000e+00 : f32
    %1182 = vector.broadcast %cst_342 : f32 to vector<4x16xf32>
    %1183 = arith.addf %1182, %1181 : vector<4x16xf32>
    %1184 = arith.divf %1182, %1183 : vector<4x16xf32>
    %1185 = vector.extract_strided_slice %1167 {offsets = [0, 32], sizes = [4, 16], strides = [1, 1]} : vector<4x64xf32> to vector<4x16xf32>
    %1186 = math.tanh %1185 : vector<4x16xf32>
    %1187 = vector.extract_strided_slice %1167 {offsets = [0, 48], sizes = [4, 16], strides = [1, 1]} : vector<4x64xf32> to vector<4x16xf32>
    %1188 = arith.negf %1187 : vector<4x16xf32>
    %1189 = math.exp %1188 : vector<4x16xf32>
    %cst_343 = arith.constant 1.000000e+00 : f32
    %1190 = vector.broadcast %cst_343 : f32 to vector<4x16xf32>
    %1191 = arith.addf %1190, %1189 : vector<4x16xf32>
    %1192 = arith.divf %1190, %1191 : vector<4x16xf32>
    %1193 = arith.mulf %1184, %1155 : vector<4x16xf32>
    %1194 = arith.mulf %1178, %1186 : vector<4x16xf32>
    %1195 = arith.addf %1193, %1194 : vector<4x16xf32>
    %1196 = math.tanh %1195 : vector<4x16xf32>
    %1197 = arith.mulf %1192, %1196 : vector<4x16xf32>
    %1198 = vector.extract_strided_slice %1172 {offsets = [0, 0], sizes = [4, 16], strides = [1, 1]} : vector<4x64xf32> to vector<4x16xf32>
    %1199 = arith.negf %1198 : vector<4x16xf32>
    %1200 = math.exp %1199 : vector<4x16xf32>
    %cst_344 = arith.constant 1.000000e+00 : f32
    %1201 = vector.broadcast %cst_344 : f32 to vector<4x16xf32>
    %1202 = arith.addf %1201, %1200 : vector<4x16xf32>
    %1203 = arith.divf %1201, %1202 : vector<4x16xf32>
    %1204 = vector.extract_strided_slice %1172 {offsets = [0, 16], sizes = [4, 16], strides = [1, 1]} : vector<4x64xf32> to vector<4x16xf32>
    %1205 = arith.negf %1204 : vector<4x16xf32>
    %1206 = math.exp %1205 : vector<4x16xf32>
    %cst_345 = arith.constant 1.000000e+00 : f32
    %1207 = vector.broadcast %cst_345 : f32 to vector<4x16xf32>
    %1208 = arith.addf %1207, %1206 : vector<4x16xf32>
    %1209 = arith.divf %1207, %1208 : vector<4x16xf32>
    %1210 = vector.extract_strided_slice %1172 {offsets = [0, 32], sizes = [4, 16], strides = [1, 1]} : vector<4x64xf32> to vector<4x16xf32>
    %1211 = math.tanh %1210 : vector<4x16xf32>
    %1212 = vector.extract_strided_slice %1172 {offsets = [0, 48], sizes = [4, 16], strides = [1, 1]} : vector<4x64xf32> to vector<4x16xf32>
    %1213 = arith.negf %1212 : vector<4x16xf32>
    %1214 = math.exp %1213 : vector<4x16xf32>
    %cst_346 = arith.constant 1.000000e+00 : f32
    %1215 = vector.broadcast %cst_346 : f32 to vector<4x16xf32>
    %1216 = arith.addf %1215, %1214 : vector<4x16xf32>
    %1217 = arith.divf %1215, %1216 : vector<4x16xf32>
    %1218 = arith.mulf %1209, %1161 : vector<4x16xf32>
    %1219 = arith.mulf %1203, %1211 : vector<4x16xf32>
    %1220 = arith.addf %1218, %1219 : vector<4x16xf32>
    %1221 = math.tanh %1220 : vector<4x16xf32>
    %1222 = arith.mulf %1217, %1221 : vector<4x16xf32>
    %1223 = vector.broadcast %c3_i32_333 : i32 to vector<4x1xi32>
    %1224 = arith.cmpi slt, %1223, %0 : vector<4x1xi32>
    %1225 = vector.broadcast %1162 : i32 to vector<4x1xi32>
    %1226 = arith.cmpi slt, %1225, %0 : vector<4x1xi32>
    %cst_347 = arith.constant 0.000000e+00 : f32
    %1227 = vector.shape_cast %1224 : vector<4x1xi1> to vector<4x1xi1>
    %1228 = vector.broadcast %1227 : vector<4x1xi1> to vector<4x16xi1>
    %1229 = vector.broadcast %cst_347 : f32 to vector<4x16xf32>
    %1230 = arith.select %1228, %1197, %1229 : vector<4x16xi1>, vector<4x16xf32>
    %1231 = arith.index_cast %c3_i32_333 : i32 to index
    %c0_348 = arith.constant 0 : index
    %c0_349 = arith.constant 0 : index
    %1232 = vector.load %arg11[%1231, %c0_348, %c0_349] : memref<8x4x32xf32, #tpu.memory_space<vmem>>, vector<1x4x16xf32>
    %1233 = vector.shape_cast %1232 : vector<1x4x16xf32> to vector<4x16xf32>
    %1234 = vector.shape_cast %1230 : vector<4x16xf32> to vector<1x4x16xf32>
    tpu.vector_store %arg11[%1231, %c0_348, %c0_349], %1234 {strides = array<i32>} : memref<8x4x32xf32, #tpu.memory_space<vmem>>, vector<1x4x16xf32>,
    %cst_350 = arith.constant 0.000000e+00 : f32
    %1235 = vector.shape_cast %1226 : vector<4x1xi1> to vector<4x1xi1>
    %1236 = vector.broadcast %1235 : vector<4x1xi1> to vector<4x16xi1>
    %1237 = vector.broadcast %cst_350 : f32 to vector<4x16xf32>
    %1238 = arith.select %1236, %1222, %1237 : vector<4x16xi1>, vector<4x16xf32>
    %1239 = arith.index_cast %1162 : i32 to index
    %c0_351 = arith.constant 0 : index
    %c16_352 = arith.constant 16 : index
    %1240 = vector.load %arg11[%1239, %c0_351, %c16_352] : memref<8x4x32xf32, #tpu.memory_space<vmem>>, vector<1x4x16xf32>
    %1241 = vector.shape_cast %1240 : vector<1x4x16xf32> to vector<4x16xf32>
    %1242 = vector.shape_cast %1238 : vector<4x16xf32> to vector<1x4x16xf32>
    tpu.vector_store %arg11[%1239, %c0_351, %c16_352], %1242 {strides = array<i32>} : memref<8x4x32xf32, #tpu.memory_space<vmem>>, vector<1x4x16xf32>,
    %1243 = vector.shape_cast %1224 : vector<4x1xi1> to vector<4x1xi1>
    %1244 = vector.broadcast %1243 : vector<4x1xi1> to vector<4x16xi1>
    %1245 = arith.select %1244, %1197, %1152 : vector<4x16xi1>, vector<4x16xf32>
    %1246 = vector.shape_cast %1224 : vector<4x1xi1> to vector<4x1xi1>
    %1247 = vector.broadcast %1246 : vector<4x1xi1> to vector<4x16xi1>
    %1248 = arith.select %1247, %1195, %1155 : vector<4x16xi1>, vector<4x16xf32>
    %1249 = vector.shape_cast %1226 : vector<4x1xi1> to vector<4x1xi1>
    %1250 = vector.broadcast %1249 : vector<4x1xi1> to vector<4x16xi1>
    %1251 = arith.select %1250, %1222, %1158 : vector<4x16xi1>, vector<4x16xf32>
    %1252 = vector.shape_cast %1226 : vector<4x1xi1> to vector<4x1xi1>
    %1253 = vector.broadcast %1252 : vector<4x1xi1> to vector<4x16xi1>
    %1254 = arith.select %1253, %1220, %1161 : vector<4x16xi1>, vector<4x16xf32>
    %c4_i32_353 = arith.constant 4 : i32
    %c7_i32_354 = arith.constant 7 : i32
    %1255 = arith.subi %c7_i32_354, %c4_i32_353 : i32
    %1256 = arith.index_cast %c4_i32_353 : i32 to index
    %c0_355 = arith.constant 0 : index
    %c0_356 = arith.constant 0 : index
    %1257 = vector.load %arg12[%1256, %c0_355, %c0_356] : memref<8x4x128xf32, #tpu.memory_space<vmem>>, vector<1x4x64xf32>
    %1258 = vector.shape_cast %1257 : vector<1x4x64xf32> to vector<4x64xf32>
    %cst_357 = arith.constant dense<0.000000e+00> : vector<4x64xf32>
    %1259 = tpu.matmul %1245, %880, %cst_357 {dimension_numbers = #tpu.dot_dimension_numbers<[1], [0], [0], [1], [0, 0, 1, 1], [], []>} : vector<4x16xf32>, vector<16x64xf32>, vector<4x64xf32> -> vector<4x64xf32>
    %1260 = arith.addf %1258, %1259 : vector<4x64xf32>
    %1261 = arith.index_cast %1255 : i32 to index
    %c0_358 = arith.constant 0 : index
    %c64_359 = arith.constant 64 : index
    %1262 = vector.load %arg12[%1261, %c0_358, %c64_359] : memref<8x4x128xf32, #tpu.memory_space<vmem>>, vector<1x4x64xf32>
    %1263 = vector.shape_cast %1262 : vector<1x4x64xf32> to vector<4x64xf32>
    %cst_360 = arith.constant dense<0.000000e+00> : vector<4x64xf32>
    %1264 = tpu.matmul %1251, %881, %cst_360 {dimension_numbers = #tpu.dot_dimension_numbers<[1], [0], [0], [1], [0, 0, 1, 1], [], []>} : vector<4x16xf32>, vector<16x64xf32>, vector<4x64xf32> -> vector<4x64xf32>
    %1265 = arith.addf %1263, %1264 : vector<4x64xf32>
    %1266 = vector.extract_strided_slice %1260 {offsets = [0, 0], sizes = [4, 16], strides = [1, 1]} : vector<4x64xf32> to vector<4x16xf32>
    %1267 = arith.negf %1266 : vector<4x16xf32>
    %1268 = math.exp %1267 : vector<4x16xf32>
    %cst_361 = arith.constant 1.000000e+00 : f32
    %1269 = vector.broadcast %cst_361 : f32 to vector<4x16xf32>
    %1270 = arith.addf %1269, %1268 : vector<4x16xf32>
    %1271 = arith.divf %1269, %1270 : vector<4x16xf32>
    %1272 = vector.extract_strided_slice %1260 {offsets = [0, 16], sizes = [4, 16], strides = [1, 1]} : vector<4x64xf32> to vector<4x16xf32>
    %1273 = arith.negf %1272 : vector<4x16xf32>
    %1274 = math.exp %1273 : vector<4x16xf32>
    %cst_362 = arith.constant 1.000000e+00 : f32
    %1275 = vector.broadcast %cst_362 : f32 to vector<4x16xf32>
    %1276 = arith.addf %1275, %1274 : vector<4x16xf32>
    %1277 = arith.divf %1275, %1276 : vector<4x16xf32>
    %1278 = vector.extract_strided_slice %1260 {offsets = [0, 32], sizes = [4, 16], strides = [1, 1]} : vector<4x64xf32> to vector<4x16xf32>
    %1279 = math.tanh %1278 : vector<4x16xf32>
    %1280 = vector.extract_strided_slice %1260 {offsets = [0, 48], sizes = [4, 16], strides = [1, 1]} : vector<4x64xf32> to vector<4x16xf32>
    %1281 = arith.negf %1280 : vector<4x16xf32>
    %1282 = math.exp %1281 : vector<4x16xf32>
    %cst_363 = arith.constant 1.000000e+00 : f32
    %1283 = vector.broadcast %cst_363 : f32 to vector<4x16xf32>
    %1284 = arith.addf %1283, %1282 : vector<4x16xf32>
    %1285 = arith.divf %1283, %1284 : vector<4x16xf32>
    %1286 = arith.mulf %1277, %1248 : vector<4x16xf32>
    %1287 = arith.mulf %1271, %1279 : vector<4x16xf32>
    %1288 = arith.addf %1286, %1287 : vector<4x16xf32>
    %1289 = math.tanh %1288 : vector<4x16xf32>
    %1290 = arith.mulf %1285, %1289 : vector<4x16xf32>
    %1291 = vector.extract_strided_slice %1265 {offsets = [0, 0], sizes = [4, 16], strides = [1, 1]} : vector<4x64xf32> to vector<4x16xf32>
    %1292 = arith.negf %1291 : vector<4x16xf32>
    %1293 = math.exp %1292 : vector<4x16xf32>
    %cst_364 = arith.constant 1.000000e+00 : f32
    %1294 = vector.broadcast %cst_364 : f32 to vector<4x16xf32>
    %1295 = arith.addf %1294, %1293 : vector<4x16xf32>
    %1296 = arith.divf %1294, %1295 : vector<4x16xf32>
    %1297 = vector.extract_strided_slice %1265 {offsets = [0, 16], sizes = [4, 16], strides = [1, 1]} : vector<4x64xf32> to vector<4x16xf32>
    %1298 = arith.negf %1297 : vector<4x16xf32>
    %1299 = math.exp %1298 : vector<4x16xf32>
    %cst_365 = arith.constant 1.000000e+00 : f32
    %1300 = vector.broadcast %cst_365 : f32 to vector<4x16xf32>
    %1301 = arith.addf %1300, %1299 : vector<4x16xf32>
    %1302 = arith.divf %1300, %1301 : vector<4x16xf32>
    %1303 = vector.extract_strided_slice %1265 {offsets = [0, 32], sizes = [4, 16], strides = [1, 1]} : vector<4x64xf32> to vector<4x16xf32>
    %1304 = math.tanh %1303 : vector<4x16xf32>
    %1305 = vector.extract_strided_slice %1265 {offsets = [0, 48], sizes = [4, 16], strides = [1, 1]} : vector<4x64xf32> to vector<4x16xf32>
    %1306 = arith.negf %1305 : vector<4x16xf32>
    %1307 = math.exp %1306 : vector<4x16xf32>
    %cst_366 = arith.constant 1.000000e+00 : f32
    %1308 = vector.broadcast %cst_366 : f32 to vector<4x16xf32>
    %1309 = arith.addf %1308, %1307 : vector<4x16xf32>
    %1310 = arith.divf %1308, %1309 : vector<4x16xf32>
    %1311 = arith.mulf %1302, %1254 : vector<4x16xf32>
    %1312 = arith.mulf %1296, %1304 : vector<4x16xf32>
    %1313 = arith.addf %1311, %1312 : vector<4x16xf32>
    %1314 = math.tanh %1313 : vector<4x16xf32>
    %1315 = arith.mulf %1310, %1314 : vector<4x16xf32>
    %1316 = vector.broadcast %c4_i32_353 : i32 to vector<4x1xi32>
    %1317 = arith.cmpi slt, %1316, %0 : vector<4x1xi32>
    %1318 = vector.broadcast %1255 : i32 to vector<4x1xi32>
    %1319 = arith.cmpi slt, %1318, %0 : vector<4x1xi32>
    %cst_367 = arith.constant 0.000000e+00 : f32
    %1320 = vector.shape_cast %1317 : vector<4x1xi1> to vector<4x1xi1>
    %1321 = vector.broadcast %1320 : vector<4x1xi1> to vector<4x16xi1>
    %1322 = vector.broadcast %cst_367 : f32 to vector<4x16xf32>
    %1323 = arith.select %1321, %1290, %1322 : vector<4x16xi1>, vector<4x16xf32>
    %1324 = arith.index_cast %c4_i32_353 : i32 to index
    %c0_368 = arith.constant 0 : index
    %c0_369 = arith.constant 0 : index
    %1325 = vector.load %arg11[%1324, %c0_368, %c0_369] : memref<8x4x32xf32, #tpu.memory_space<vmem>>, vector<1x4x16xf32>
    %1326 = vector.shape_cast %1325 : vector<1x4x16xf32> to vector<4x16xf32>
    %1327 = vector.shape_cast %1323 : vector<4x16xf32> to vector<1x4x16xf32>
    tpu.vector_store %arg11[%1324, %c0_368, %c0_369], %1327 {strides = array<i32>} : memref<8x4x32xf32, #tpu.memory_space<vmem>>, vector<1x4x16xf32>,
    %cst_370 = arith.constant 0.000000e+00 : f32
    %1328 = vector.shape_cast %1319 : vector<4x1xi1> to vector<4x1xi1>
    %1329 = vector.broadcast %1328 : vector<4x1xi1> to vector<4x16xi1>
    %1330 = vector.broadcast %cst_370 : f32 to vector<4x16xf32>
    %1331 = arith.select %1329, %1315, %1330 : vector<4x16xi1>, vector<4x16xf32>
    %1332 = arith.index_cast %1255 : i32 to index
    %c0_371 = arith.constant 0 : index
    %c16_372 = arith.constant 16 : index
    %1333 = vector.load %arg11[%1332, %c0_371, %c16_372] : memref<8x4x32xf32, #tpu.memory_space<vmem>>, vector<1x4x16xf32>
    %1334 = vector.shape_cast %1333 : vector<1x4x16xf32> to vector<4x16xf32>
    %1335 = vector.shape_cast %1331 : vector<4x16xf32> to vector<1x4x16xf32>
    tpu.vector_store %arg11[%1332, %c0_371, %c16_372], %1335 {strides = array<i32>} : memref<8x4x32xf32, #tpu.memory_space<vmem>>, vector<1x4x16xf32>,
    %1336 = vector.shape_cast %1317 : vector<4x1xi1> to vector<4x1xi1>
    %1337 = vector.broadcast %1336 : vector<4x1xi1> to vector<4x16xi1>
    %1338 = arith.select %1337, %1290, %1245 : vector<4x16xi1>, vector<4x16xf32>
    %1339 = vector.shape_cast %1317 : vector<4x1xi1> to vector<4x1xi1>
    %1340 = vector.broadcast %1339 : vector<4x1xi1> to vector<4x16xi1>
    %1341 = arith.select %1340, %1288, %1248 : vector<4x16xi1>, vector<4x16xf32>
    %1342 = vector.shape_cast %1319 : vector<4x1xi1> to vector<4x1xi1>
    %1343 = vector.broadcast %1342 : vector<4x1xi1> to vector<4x16xi1>
    %1344 = arith.select %1343, %1315, %1251 : vector<4x16xi1>, vector<4x16xf32>
    %1345 = vector.shape_cast %1319 : vector<4x1xi1> to vector<4x1xi1>
    %1346 = vector.broadcast %1345 : vector<4x1xi1> to vector<4x16xi1>
    %1347 = arith.select %1346, %1313, %1254 : vector<4x16xi1>, vector<4x16xf32>
    %c5_i32_373 = arith.constant 5 : i32
    %c7_i32_374 = arith.constant 7 : i32
    %1348 = arith.subi %c7_i32_374, %c5_i32_373 : i32
    %1349 = arith.index_cast %c5_i32_373 : i32 to index
    %c0_375 = arith.constant 0 : index
    %c0_376 = arith.constant 0 : index
    %1350 = vector.load %arg12[%1349, %c0_375, %c0_376] : memref<8x4x128xf32, #tpu.memory_space<vmem>>, vector<1x4x64xf32>
    %1351 = vector.shape_cast %1350 : vector<1x4x64xf32> to vector<4x64xf32>
    %cst_377 = arith.constant dense<0.000000e+00> : vector<4x64xf32>
    %1352 = tpu.matmul %1338, %880, %cst_377 {dimension_numbers = #tpu.dot_dimension_numbers<[1], [0], [0], [1], [0, 0, 1, 1], [], []>} : vector<4x16xf32>, vector<16x64xf32>, vector<4x64xf32> -> vector<4x64xf32>
    %1353 = arith.addf %1351, %1352 : vector<4x64xf32>
    %1354 = arith.index_cast %1348 : i32 to index
    %c0_378 = arith.constant 0 : index
    %c64_379 = arith.constant 64 : index
    %1355 = vector.load %arg12[%1354, %c0_378, %c64_379] : memref<8x4x128xf32, #tpu.memory_space<vmem>>, vector<1x4x64xf32>
    %1356 = vector.shape_cast %1355 : vector<1x4x64xf32> to vector<4x64xf32>
    %cst_380 = arith.constant dense<0.000000e+00> : vector<4x64xf32>
    %1357 = tpu.matmul %1344, %881, %cst_380 {dimension_numbers = #tpu.dot_dimension_numbers<[1], [0], [0], [1], [0, 0, 1, 1], [], []>} : vector<4x16xf32>, vector<16x64xf32>, vector<4x64xf32> -> vector<4x64xf32>
    %1358 = arith.addf %1356, %1357 : vector<4x64xf32>
    %1359 = vector.extract_strided_slice %1353 {offsets = [0, 0], sizes = [4, 16], strides = [1, 1]} : vector<4x64xf32> to vector<4x16xf32>
    %1360 = arith.negf %1359 : vector<4x16xf32>
    %1361 = math.exp %1360 : vector<4x16xf32>
    %cst_381 = arith.constant 1.000000e+00 : f32
    %1362 = vector.broadcast %cst_381 : f32 to vector<4x16xf32>
    %1363 = arith.addf %1362, %1361 : vector<4x16xf32>
    %1364 = arith.divf %1362, %1363 : vector<4x16xf32>
    %1365 = vector.extract_strided_slice %1353 {offsets = [0, 16], sizes = [4, 16], strides = [1, 1]} : vector<4x64xf32> to vector<4x16xf32>
    %1366 = arith.negf %1365 : vector<4x16xf32>
    %1367 = math.exp %1366 : vector<4x16xf32>
    %cst_382 = arith.constant 1.000000e+00 : f32
    %1368 = vector.broadcast %cst_382 : f32 to vector<4x16xf32>
    %1369 = arith.addf %1368, %1367 : vector<4x16xf32>
    %1370 = arith.divf %1368, %1369 : vector<4x16xf32>
    %1371 = vector.extract_strided_slice %1353 {offsets = [0, 32], sizes = [4, 16], strides = [1, 1]} : vector<4x64xf32> to vector<4x16xf32>
    %1372 = math.tanh %1371 : vector<4x16xf32>
    %1373 = vector.extract_strided_slice %1353 {offsets = [0, 48], sizes = [4, 16], strides = [1, 1]} : vector<4x64xf32> to vector<4x16xf32>
    %1374 = arith.negf %1373 : vector<4x16xf32>
    %1375 = math.exp %1374 : vector<4x16xf32>
    %cst_383 = arith.constant 1.000000e+00 : f32
    %1376 = vector.broadcast %cst_383 : f32 to vector<4x16xf32>
    %1377 = arith.addf %1376, %1375 : vector<4x16xf32>
    %1378 = arith.divf %1376, %1377 : vector<4x16xf32>
    %1379 = arith.mulf %1370, %1341 : vector<4x16xf32>
    %1380 = arith.mulf %1364, %1372 : vector<4x16xf32>
    %1381 = arith.addf %1379, %1380 : vector<4x16xf32>
    %1382 = math.tanh %1381 : vector<4x16xf32>
    %1383 = arith.mulf %1378, %1382 : vector<4x16xf32>
    %1384 = vector.extract_strided_slice %1358 {offsets = [0, 0], sizes = [4, 16], strides = [1, 1]} : vector<4x64xf32> to vector<4x16xf32>
    %1385 = arith.negf %1384 : vector<4x16xf32>
    %1386 = math.exp %1385 : vector<4x16xf32>
    %cst_384 = arith.constant 1.000000e+00 : f32
    %1387 = vector.broadcast %cst_384 : f32 to vector<4x16xf32>
    %1388 = arith.addf %1387, %1386 : vector<4x16xf32>
    %1389 = arith.divf %1387, %1388 : vector<4x16xf32>
    %1390 = vector.extract_strided_slice %1358 {offsets = [0, 16], sizes = [4, 16], strides = [1, 1]} : vector<4x64xf32> to vector<4x16xf32>
    %1391 = arith.negf %1390 : vector<4x16xf32>
    %1392 = math.exp %1391 : vector<4x16xf32>
    %cst_385 = arith.constant 1.000000e+00 : f32
    %1393 = vector.broadcast %cst_385 : f32 to vector<4x16xf32>
    %1394 = arith.addf %1393, %1392 : vector<4x16xf32>
    %1395 = arith.divf %1393, %1394 : vector<4x16xf32>
    %1396 = vector.extract_strided_slice %1358 {offsets = [0, 32], sizes = [4, 16], strides = [1, 1]} : vector<4x64xf32> to vector<4x16xf32>
    %1397 = math.tanh %1396 : vector<4x16xf32>
    %1398 = vector.extract_strided_slice %1358 {offsets = [0, 48], sizes = [4, 16], strides = [1, 1]} : vector<4x64xf32> to vector<4x16xf32>
    %1399 = arith.negf %1398 : vector<4x16xf32>
    %1400 = math.exp %1399 : vector<4x16xf32>
    %cst_386 = arith.constant 1.000000e+00 : f32
    %1401 = vector.broadcast %cst_386 : f32 to vector<4x16xf32>
    %1402 = arith.addf %1401, %1400 : vector<4x16xf32>
    %1403 = arith.divf %1401, %1402 : vector<4x16xf32>
    %1404 = arith.mulf %1395, %1347 : vector<4x16xf32>
    %1405 = arith.mulf %1389, %1397 : vector<4x16xf32>
    %1406 = arith.addf %1404, %1405 : vector<4x16xf32>
    %1407 = math.tanh %1406 : vector<4x16xf32>
    %1408 = arith.mulf %1403, %1407 : vector<4x16xf32>
    %1409 = vector.broadcast %c5_i32_373 : i32 to vector<4x1xi32>
    %1410 = arith.cmpi slt, %1409, %0 : vector<4x1xi32>
    %1411 = vector.broadcast %1348 : i32 to vector<4x1xi32>
    %1412 = arith.cmpi slt, %1411, %0 : vector<4x1xi32>
    %cst_387 = arith.constant 0.000000e+00 : f32
    %1413 = vector.shape_cast %1410 : vector<4x1xi1> to vector<4x1xi1>
    %1414 = vector.broadcast %1413 : vector<4x1xi1> to vector<4x16xi1>
    %1415 = vector.broadcast %cst_387 : f32 to vector<4x16xf32>
    %1416 = arith.select %1414, %1383, %1415 : vector<4x16xi1>, vector<4x16xf32>
    %1417 = arith.index_cast %c5_i32_373 : i32 to index
    %c0_388 = arith.constant 0 : index
    %c0_389 = arith.constant 0 : index
    %1418 = vector.load %arg11[%1417, %c0_388, %c0_389] : memref<8x4x32xf32, #tpu.memory_space<vmem>>, vector<1x4x16xf32>
    %1419 = vector.shape_cast %1418 : vector<1x4x16xf32> to vector<4x16xf32>
    %1420 = vector.shape_cast %1416 : vector<4x16xf32> to vector<1x4x16xf32>
    tpu.vector_store %arg11[%1417, %c0_388, %c0_389], %1420 {strides = array<i32>} : memref<8x4x32xf32, #tpu.memory_space<vmem>>, vector<1x4x16xf32>,
    %cst_390 = arith.constant 0.000000e+00 : f32
    %1421 = vector.shape_cast %1412 : vector<4x1xi1> to vector<4x1xi1>
    %1422 = vector.broadcast %1421 : vector<4x1xi1> to vector<4x16xi1>
    %1423 = vector.broadcast %cst_390 : f32 to vector<4x16xf32>
    %1424 = arith.select %1422, %1408, %1423 : vector<4x16xi1>, vector<4x16xf32>
    %1425 = arith.index_cast %1348 : i32 to index
    %c0_391 = arith.constant 0 : index
    %c16_392 = arith.constant 16 : index
    %1426 = vector.load %arg11[%1425, %c0_391, %c16_392] : memref<8x4x32xf32, #tpu.memory_space<vmem>>, vector<1x4x16xf32>
    %1427 = vector.shape_cast %1426 : vector<1x4x16xf32> to vector<4x16xf32>
    %1428 = vector.shape_cast %1424 : vector<4x16xf32> to vector<1x4x16xf32>
    tpu.vector_store %arg11[%1425, %c0_391, %c16_392], %1428 {strides = array<i32>} : memref<8x4x32xf32, #tpu.memory_space<vmem>>, vector<1x4x16xf32>,
    %1429 = vector.shape_cast %1410 : vector<4x1xi1> to vector<4x1xi1>
    %1430 = vector.broadcast %1429 : vector<4x1xi1> to vector<4x16xi1>
    %1431 = arith.select %1430, %1383, %1338 : vector<4x16xi1>, vector<4x16xf32>
    %1432 = vector.shape_cast %1410 : vector<4x1xi1> to vector<4x1xi1>
    %1433 = vector.broadcast %1432 : vector<4x1xi1> to vector<4x16xi1>
    %1434 = arith.select %1433, %1381, %1341 : vector<4x16xi1>, vector<4x16xf32>
    %1435 = vector.shape_cast %1412 : vector<4x1xi1> to vector<4x1xi1>
    %1436 = vector.broadcast %1435 : vector<4x1xi1> to vector<4x16xi1>
    %1437 = arith.select %1436, %1408, %1344 : vector<4x16xi1>, vector<4x16xf32>
    %1438 = vector.shape_cast %1412 : vector<4x1xi1> to vector<4x1xi1>
    %1439 = vector.broadcast %1438 : vector<4x1xi1> to vector<4x16xi1>
    %1440 = arith.select %1439, %1406, %1347 : vector<4x16xi1>, vector<4x16xf32>
    %c6_i32_393 = arith.constant 6 : i32
    %c7_i32_394 = arith.constant 7 : i32
    %1441 = arith.subi %c7_i32_394, %c6_i32_393 : i32
    %1442 = arith.index_cast %c6_i32_393 : i32 to index
    %c0_395 = arith.constant 0 : index
    %c0_396 = arith.constant 0 : index
    %1443 = vector.load %arg12[%1442, %c0_395, %c0_396] : memref<8x4x128xf32, #tpu.memory_space<vmem>>, vector<1x4x64xf32>
    %1444 = vector.shape_cast %1443 : vector<1x4x64xf32> to vector<4x64xf32>
    %cst_397 = arith.constant dense<0.000000e+00> : vector<4x64xf32>
    %1445 = tpu.matmul %1431, %880, %cst_397 {dimension_numbers = #tpu.dot_dimension_numbers<[1], [0], [0], [1], [0, 0, 1, 1], [], []>} : vector<4x16xf32>, vector<16x64xf32>, vector<4x64xf32> -> vector<4x64xf32>
    %1446 = arith.addf %1444, %1445 : vector<4x64xf32>
    %1447 = arith.index_cast %1441 : i32 to index
    %c0_398 = arith.constant 0 : index
    %c64_399 = arith.constant 64 : index
    %1448 = vector.load %arg12[%1447, %c0_398, %c64_399] : memref<8x4x128xf32, #tpu.memory_space<vmem>>, vector<1x4x64xf32>
    %1449 = vector.shape_cast %1448 : vector<1x4x64xf32> to vector<4x64xf32>
    %cst_400 = arith.constant dense<0.000000e+00> : vector<4x64xf32>
    %1450 = tpu.matmul %1437, %881, %cst_400 {dimension_numbers = #tpu.dot_dimension_numbers<[1], [0], [0], [1], [0, 0, 1, 1], [], []>} : vector<4x16xf32>, vector<16x64xf32>, vector<4x64xf32> -> vector<4x64xf32>
    %1451 = arith.addf %1449, %1450 : vector<4x64xf32>
    %1452 = vector.extract_strided_slice %1446 {offsets = [0, 0], sizes = [4, 16], strides = [1, 1]} : vector<4x64xf32> to vector<4x16xf32>
    %1453 = arith.negf %1452 : vector<4x16xf32>
    %1454 = math.exp %1453 : vector<4x16xf32>
    %cst_401 = arith.constant 1.000000e+00 : f32
    %1455 = vector.broadcast %cst_401 : f32 to vector<4x16xf32>
    %1456 = arith.addf %1455, %1454 : vector<4x16xf32>
    %1457 = arith.divf %1455, %1456 : vector<4x16xf32>
    %1458 = vector.extract_strided_slice %1446 {offsets = [0, 16], sizes = [4, 16], strides = [1, 1]} : vector<4x64xf32> to vector<4x16xf32>
    %1459 = arith.negf %1458 : vector<4x16xf32>
    %1460 = math.exp %1459 : vector<4x16xf32>
    %cst_402 = arith.constant 1.000000e+00 : f32
    %1461 = vector.broadcast %cst_402 : f32 to vector<4x16xf32>
    %1462 = arith.addf %1461, %1460 : vector<4x16xf32>
    %1463 = arith.divf %1461, %1462 : vector<4x16xf32>
    %1464 = vector.extract_strided_slice %1446 {offsets = [0, 32], sizes = [4, 16], strides = [1, 1]} : vector<4x64xf32> to vector<4x16xf32>
    %1465 = math.tanh %1464 : vector<4x16xf32>
    %1466 = vector.extract_strided_slice %1446 {offsets = [0, 48], sizes = [4, 16], strides = [1, 1]} : vector<4x64xf32> to vector<4x16xf32>
    %1467 = arith.negf %1466 : vector<4x16xf32>
    %1468 = math.exp %1467 : vector<4x16xf32>
    %cst_403 = arith.constant 1.000000e+00 : f32
    %1469 = vector.broadcast %cst_403 : f32 to vector<4x16xf32>
    %1470 = arith.addf %1469, %1468 : vector<4x16xf32>
    %1471 = arith.divf %1469, %1470 : vector<4x16xf32>
    %1472 = arith.mulf %1463, %1434 : vector<4x16xf32>
    %1473 = arith.mulf %1457, %1465 : vector<4x16xf32>
    %1474 = arith.addf %1472, %1473 : vector<4x16xf32>
    %1475 = math.tanh %1474 : vector<4x16xf32>
    %1476 = arith.mulf %1471, %1475 : vector<4x16xf32>
    %1477 = vector.extract_strided_slice %1451 {offsets = [0, 0], sizes = [4, 16], strides = [1, 1]} : vector<4x64xf32> to vector<4x16xf32>
    %1478 = arith.negf %1477 : vector<4x16xf32>
    %1479 = math.exp %1478 : vector<4x16xf32>
    %cst_404 = arith.constant 1.000000e+00 : f32
    %1480 = vector.broadcast %cst_404 : f32 to vector<4x16xf32>
    %1481 = arith.addf %1480, %1479 : vector<4x16xf32>
    %1482 = arith.divf %1480, %1481 : vector<4x16xf32>
    %1483 = vector.extract_strided_slice %1451 {offsets = [0, 16], sizes = [4, 16], strides = [1, 1]} : vector<4x64xf32> to vector<4x16xf32>
    %1484 = arith.negf %1483 : vector<4x16xf32>
    %1485 = math.exp %1484 : vector<4x16xf32>
    %cst_405 = arith.constant 1.000000e+00 : f32
    %1486 = vector.broadcast %cst_405 : f32 to vector<4x16xf32>
    %1487 = arith.addf %1486, %1485 : vector<4x16xf32>
    %1488 = arith.divf %1486, %1487 : vector<4x16xf32>
    %1489 = vector.extract_strided_slice %1451 {offsets = [0, 32], sizes = [4, 16], strides = [1, 1]} : vector<4x64xf32> to vector<4x16xf32>
    %1490 = math.tanh %1489 : vector<4x16xf32>
    %1491 = vector.extract_strided_slice %1451 {offsets = [0, 48], sizes = [4, 16], strides = [1, 1]} : vector<4x64xf32> to vector<4x16xf32>
    %1492 = arith.negf %1491 : vector<4x16xf32>
    %1493 = math.exp %1492 : vector<4x16xf32>
    %cst_406 = arith.constant 1.000000e+00 : f32
    %1494 = vector.broadcast %cst_406 : f32 to vector<4x16xf32>
    %1495 = arith.addf %1494, %1493 : vector<4x16xf32>
    %1496 = arith.divf %1494, %1495 : vector<4x16xf32>
    %1497 = arith.mulf %1488, %1440 : vector<4x16xf32>
    %1498 = arith.mulf %1482, %1490 : vector<4x16xf32>
    %1499 = arith.addf %1497, %1498 : vector<4x16xf32>
    %1500 = math.tanh %1499 : vector<4x16xf32>
    %1501 = arith.mulf %1496, %1500 : vector<4x16xf32>
    %1502 = vector.broadcast %c6_i32_393 : i32 to vector<4x1xi32>
    %1503 = arith.cmpi slt, %1502, %0 : vector<4x1xi32>
    %1504 = vector.broadcast %1441 : i32 to vector<4x1xi32>
    %1505 = arith.cmpi slt, %1504, %0 : vector<4x1xi32>
    %cst_407 = arith.constant 0.000000e+00 : f32
    %1506 = vector.shape_cast %1503 : vector<4x1xi1> to vector<4x1xi1>
    %1507 = vector.broadcast %1506 : vector<4x1xi1> to vector<4x16xi1>
    %1508 = vector.broadcast %cst_407 : f32 to vector<4x16xf32>
    %1509 = arith.select %1507, %1476, %1508 : vector<4x16xi1>, vector<4x16xf32>
    %1510 = arith.index_cast %c6_i32_393 : i32 to index
    %c0_408 = arith.constant 0 : index
    %c0_409 = arith.constant 0 : index
    %1511 = vector.load %arg11[%1510, %c0_408, %c0_409] : memref<8x4x32xf32, #tpu.memory_space<vmem>>, vector<1x4x16xf32>
    %1512 = vector.shape_cast %1511 : vector<1x4x16xf32> to vector<4x16xf32>
    %1513 = vector.shape_cast %1509 : vector<4x16xf32> to vector<1x4x16xf32>
    tpu.vector_store %arg11[%1510, %c0_408, %c0_409], %1513 {strides = array<i32>} : memref<8x4x32xf32, #tpu.memory_space<vmem>>, vector<1x4x16xf32>,
    %cst_410 = arith.constant 0.000000e+00 : f32
    %1514 = vector.shape_cast %1505 : vector<4x1xi1> to vector<4x1xi1>
    %1515 = vector.broadcast %1514 : vector<4x1xi1> to vector<4x16xi1>
    %1516 = vector.broadcast %cst_410 : f32 to vector<4x16xf32>
    %1517 = arith.select %1515, %1501, %1516 : vector<4x16xi1>, vector<4x16xf32>
    %1518 = arith.index_cast %1441 : i32 to index
    %c0_411 = arith.constant 0 : index
    %c16_412 = arith.constant 16 : index
    %1519 = vector.load %arg11[%1518, %c0_411, %c16_412] : memref<8x4x32xf32, #tpu.memory_space<vmem>>, vector<1x4x16xf32>
    %1520 = vector.shape_cast %1519 : vector<1x4x16xf32> to vector<4x16xf32>
    %1521 = vector.shape_cast %1517 : vector<4x16xf32> to vector<1x4x16xf32>
    tpu.vector_store %arg11[%1518, %c0_411, %c16_412], %1521 {strides = array<i32>} : memref<8x4x32xf32, #tpu.memory_space<vmem>>, vector<1x4x16xf32>,
    %1522 = vector.shape_cast %1503 : vector<4x1xi1> to vector<4x1xi1>
    %1523 = vector.broadcast %1522 : vector<4x1xi1> to vector<4x16xi1>
    %1524 = arith.select %1523, %1476, %1431 : vector<4x16xi1>, vector<4x16xf32>
    %1525 = vector.shape_cast %1503 : vector<4x1xi1> to vector<4x1xi1>
    %1526 = vector.broadcast %1525 : vector<4x1xi1> to vector<4x16xi1>
    %1527 = arith.select %1526, %1474, %1434 : vector<4x16xi1>, vector<4x16xf32>
    %1528 = vector.shape_cast %1505 : vector<4x1xi1> to vector<4x1xi1>
    %1529 = vector.broadcast %1528 : vector<4x1xi1> to vector<4x16xi1>
    %1530 = arith.select %1529, %1501, %1437 : vector<4x16xi1>, vector<4x16xf32>
    %1531 = vector.shape_cast %1505 : vector<4x1xi1> to vector<4x1xi1>
    %1532 = vector.broadcast %1531 : vector<4x1xi1> to vector<4x16xi1>
    %1533 = arith.select %1532, %1499, %1440 : vector<4x16xi1>, vector<4x16xf32>
    %c7_i32_413 = arith.constant 7 : i32
    %c7_i32_414 = arith.constant 7 : i32
    %1534 = arith.subi %c7_i32_414, %c7_i32_413 : i32
    %1535 = arith.index_cast %c7_i32_413 : i32 to index
    %c0_415 = arith.constant 0 : index
    %c0_416 = arith.constant 0 : index
    %1536 = vector.load %arg12[%1535, %c0_415, %c0_416] : memref<8x4x128xf32, #tpu.memory_space<vmem>>, vector<1x4x64xf32>
    %1537 = vector.shape_cast %1536 : vector<1x4x64xf32> to vector<4x64xf32>
    %cst_417 = arith.constant dense<0.000000e+00> : vector<4x64xf32>
    %1538 = tpu.matmul %1524, %880, %cst_417 {dimension_numbers = #tpu.dot_dimension_numbers<[1], [0], [0], [1], [0, 0, 1, 1], [], []>} : vector<4x16xf32>, vector<16x64xf32>, vector<4x64xf32> -> vector<4x64xf32>
    %1539 = arith.addf %1537, %1538 : vector<4x64xf32>
    %1540 = arith.index_cast %1534 : i32 to index
    %c0_418 = arith.constant 0 : index
    %c64_419 = arith.constant 64 : index
    %1541 = vector.load %arg12[%1540, %c0_418, %c64_419] : memref<8x4x128xf32, #tpu.memory_space<vmem>>, vector<1x4x64xf32>
    %1542 = vector.shape_cast %1541 : vector<1x4x64xf32> to vector<4x64xf32>
    %cst_420 = arith.constant dense<0.000000e+00> : vector<4x64xf32>
    %1543 = tpu.matmul %1530, %881, %cst_420 {dimension_numbers = #tpu.dot_dimension_numbers<[1], [0], [0], [1], [0, 0, 1, 1], [], []>} : vector<4x16xf32>, vector<16x64xf32>, vector<4x64xf32> -> vector<4x64xf32>
    %1544 = arith.addf %1542, %1543 : vector<4x64xf32>
    %1545 = vector.extract_strided_slice %1539 {offsets = [0, 0], sizes = [4, 16], strides = [1, 1]} : vector<4x64xf32> to vector<4x16xf32>
    %1546 = arith.negf %1545 : vector<4x16xf32>
    %1547 = math.exp %1546 : vector<4x16xf32>
    %cst_421 = arith.constant 1.000000e+00 : f32
    %1548 = vector.broadcast %cst_421 : f32 to vector<4x16xf32>
    %1549 = arith.addf %1548, %1547 : vector<4x16xf32>
    %1550 = arith.divf %1548, %1549 : vector<4x16xf32>
    %1551 = vector.extract_strided_slice %1539 {offsets = [0, 16], sizes = [4, 16], strides = [1, 1]} : vector<4x64xf32> to vector<4x16xf32>
    %1552 = arith.negf %1551 : vector<4x16xf32>
    %1553 = math.exp %1552 : vector<4x16xf32>
    %cst_422 = arith.constant 1.000000e+00 : f32
    %1554 = vector.broadcast %cst_422 : f32 to vector<4x16xf32>
    %1555 = arith.addf %1554, %1553 : vector<4x16xf32>
    %1556 = arith.divf %1554, %1555 : vector<4x16xf32>
    %1557 = vector.extract_strided_slice %1539 {offsets = [0, 32], sizes = [4, 16], strides = [1, 1]} : vector<4x64xf32> to vector<4x16xf32>
    %1558 = math.tanh %1557 : vector<4x16xf32>
    %1559 = vector.extract_strided_slice %1539 {offsets = [0, 48], sizes = [4, 16], strides = [1, 1]} : vector<4x64xf32> to vector<4x16xf32>
    %1560 = arith.negf %1559 : vector<4x16xf32>
    %1561 = math.exp %1560 : vector<4x16xf32>
    %cst_423 = arith.constant 1.000000e+00 : f32
    %1562 = vector.broadcast %cst_423 : f32 to vector<4x16xf32>
    %1563 = arith.addf %1562, %1561 : vector<4x16xf32>
    %1564 = arith.divf %1562, %1563 : vector<4x16xf32>
    %1565 = arith.mulf %1556, %1527 : vector<4x16xf32>
    %1566 = arith.mulf %1550, %1558 : vector<4x16xf32>
    %1567 = arith.addf %1565, %1566 : vector<4x16xf32>
    %1568 = math.tanh %1567 : vector<4x16xf32>
    %1569 = arith.mulf %1564, %1568 : vector<4x16xf32>
    %1570 = vector.extract_strided_slice %1544 {offsets = [0, 0], sizes = [4, 16], strides = [1, 1]} : vector<4x64xf32> to vector<4x16xf32>
    %1571 = arith.negf %1570 : vector<4x16xf32>
    %1572 = math.exp %1571 : vector<4x16xf32>
    %cst_424 = arith.constant 1.000000e+00 : f32
    %1573 = vector.broadcast %cst_424 : f32 to vector<4x16xf32>
    %1574 = arith.addf %1573, %1572 : vector<4x16xf32>
    %1575 = arith.divf %1573, %1574 : vector<4x16xf32>
    %1576 = vector.extract_strided_slice %1544 {offsets = [0, 16], sizes = [4, 16], strides = [1, 1]} : vector<4x64xf32> to vector<4x16xf32>
    %1577 = arith.negf %1576 : vector<4x16xf32>
    %1578 = math.exp %1577 : vector<4x16xf32>
    %cst_425 = arith.constant 1.000000e+00 : f32
    %1579 = vector.broadcast %cst_425 : f32 to vector<4x16xf32>
    %1580 = arith.addf %1579, %1578 : vector<4x16xf32>
    %1581 = arith.divf %1579, %1580 : vector<4x16xf32>
    %1582 = vector.extract_strided_slice %1544 {offsets = [0, 32], sizes = [4, 16], strides = [1, 1]} : vector<4x64xf32> to vector<4x16xf32>
    %1583 = math.tanh %1582 : vector<4x16xf32>
    %1584 = vector.extract_strided_slice %1544 {offsets = [0, 48], sizes = [4, 16], strides = [1, 1]} : vector<4x64xf32> to vector<4x16xf32>
    %1585 = arith.negf %1584 : vector<4x16xf32>
    %1586 = math.exp %1585 : vector<4x16xf32>
    %cst_426 = arith.constant 1.000000e+00 : f32
    %1587 = vector.broadcast %cst_426 : f32 to vector<4x16xf32>
    %1588 = arith.addf %1587, %1586 : vector<4x16xf32>
    %1589 = arith.divf %1587, %1588 : vector<4x16xf32>
    %1590 = arith.mulf %1581, %1533 : vector<4x16xf32>
    %1591 = arith.mulf %1575, %1583 : vector<4x16xf32>
    %1592 = arith.addf %1590, %1591 : vector<4x16xf32>
    %1593 = math.tanh %1592 : vector<4x16xf32>
    %1594 = arith.mulf %1589, %1593 : vector<4x16xf32>
    %1595 = vector.broadcast %c7_i32_413 : i32 to vector<4x1xi32>
    %1596 = arith.cmpi slt, %1595, %0 : vector<4x1xi32>
    %1597 = vector.broadcast %1534 : i32 to vector<4x1xi32>
    %1598 = arith.cmpi slt, %1597, %0 : vector<4x1xi32>
    %cst_427 = arith.constant 0.000000e+00 : f32
    %1599 = vector.shape_cast %1596 : vector<4x1xi1> to vector<4x1xi1>
    %1600 = vector.broadcast %1599 : vector<4x1xi1> to vector<4x16xi1>
    %1601 = vector.broadcast %cst_427 : f32 to vector<4x16xf32>
    %1602 = arith.select %1600, %1569, %1601 : vector<4x16xi1>, vector<4x16xf32>
    %1603 = arith.index_cast %c7_i32_413 : i32 to index
    %c0_428 = arith.constant 0 : index
    %c0_429 = arith.constant 0 : index
    %1604 = vector.load %arg11[%1603, %c0_428, %c0_429] : memref<8x4x32xf32, #tpu.memory_space<vmem>>, vector<1x4x16xf32>
    %1605 = vector.shape_cast %1604 : vector<1x4x16xf32> to vector<4x16xf32>
    %1606 = vector.shape_cast %1602 : vector<4x16xf32> to vector<1x4x16xf32>
    tpu.vector_store %arg11[%1603, %c0_428, %c0_429], %1606 {strides = array<i32>} : memref<8x4x32xf32, #tpu.memory_space<vmem>>, vector<1x4x16xf32>,
    %cst_430 = arith.constant 0.000000e+00 : f32
    %1607 = vector.shape_cast %1598 : vector<4x1xi1> to vector<4x1xi1>
    %1608 = vector.broadcast %1607 : vector<4x1xi1> to vector<4x16xi1>
    %1609 = vector.broadcast %cst_430 : f32 to vector<4x16xf32>
    %1610 = arith.select %1608, %1594, %1609 : vector<4x16xi1>, vector<4x16xf32>
    %1611 = arith.index_cast %1534 : i32 to index
    %c0_431 = arith.constant 0 : index
    %c16_432 = arith.constant 16 : index
    %1612 = vector.load %arg11[%1611, %c0_431, %c16_432] : memref<8x4x32xf32, #tpu.memory_space<vmem>>, vector<1x4x16xf32>
    %1613 = vector.shape_cast %1612 : vector<1x4x16xf32> to vector<4x16xf32>
    %1614 = vector.shape_cast %1610 : vector<4x16xf32> to vector<1x4x16xf32>
    tpu.vector_store %arg11[%1611, %c0_431, %c16_432], %1614 {strides = array<i32>} : memref<8x4x32xf32, #tpu.memory_space<vmem>>, vector<1x4x16xf32>,
    %1615 = vector.shape_cast %1596 : vector<4x1xi1> to vector<4x1xi1>
    %1616 = vector.broadcast %1615 : vector<4x1xi1> to vector<4x16xi1>
    %1617 = arith.select %1616, %1569, %1524 : vector<4x16xi1>, vector<4x16xf32>
    %1618 = vector.shape_cast %1596 : vector<4x1xi1> to vector<4x1xi1>
    %1619 = vector.broadcast %1618 : vector<4x1xi1> to vector<4x16xi1>
    %1620 = arith.select %1619, %1567, %1527 : vector<4x16xi1>, vector<4x16xf32>
    %1621 = vector.shape_cast %1598 : vector<4x1xi1> to vector<4x1xi1>
    %1622 = vector.broadcast %1621 : vector<4x1xi1> to vector<4x16xi1>
    %1623 = arith.select %1622, %1594, %1530 : vector<4x16xi1>, vector<4x16xf32>
    %1624 = vector.shape_cast %1598 : vector<4x1xi1> to vector<4x1xi1>
    %1625 = vector.broadcast %1624 : vector<4x1xi1> to vector<4x16xi1>
    %1626 = arith.select %1625, %1592, %1533 : vector<4x16xi1>, vector<4x16xf32>
    %c8_i32_433 = arith.constant 8 : i32
    return
  }
  func.func @transform_0(%arg0: i32) -> (i32, i32) {
    %c0_i32 = arith.constant 0 : i32
    %c0_i32_0 = arith.constant 0 : i32
    %c0_i32_1 = arith.constant 0 : i32
    return %c0_i32, %c0_i32_0 : i32, i32
  }
  func.func @transform_1(%arg0: i32) -> (i32, i32, i32) {
    %c0_i32 = arith.constant 0 : i32
    %c0_i32_0 = arith.constant 0 : i32
    %c0_i32_1 = arith.constant 0 : i32
    %c0_i32_2 = arith.constant 0 : i32
    return %c0_i32, %c0_i32_0, %c0_i32_1 : i32, i32, i32
  }
  func.func @transform_2(%arg0: i32) -> (i32, i32) {
    %c0_i32 = arith.constant 0 : i32
    %c0_i32_0 = arith.constant 0 : i32
    %c0_i32_1 = arith.constant 0 : i32
    return %c0_i32, %c0_i32_0 : i32, i32
  }
  func.func @transform_3(%arg0: i32) -> (i32, i32) {
    %c0_i32 = arith.constant 0 : i32
    %c0_i32_0 = arith.constant 0 : i32
    %c0_i32_1 = arith.constant 0 : i32
    return %c0_i32, %c0_i32_0 : i32, i32
  }
  func.func @transform_4(%arg0: i32) -> (i32, i32) {
    %c0_i32 = arith.constant 0 : i32
    %c0_i32_0 = arith.constant 0 : i32
    %c0_i32_1 = arith.constant 0 : i32
    return %c0_i32, %c0_i32_0 : i32, i32
  }
  func.func @transform_5(%arg0: i32) -> (i32, i32) {
    %c0_i32 = arith.constant 0 : i32
    %c0_i32_0 = arith.constant 0 : i32
    %c0_i32_1 = arith.constant 0 : i32
    return %c0_i32, %c0_i32_0 : i32, i32
  }
  func.func @transform_6(%arg0: i32) -> (i32, i32) {
    %c0_i32 = arith.constant 0 : i32
    %c0_i32_0 = arith.constant 0 : i32
    %c0_i32_1 = arith.constant 0 : i32
    return %c0_i32, %c0_i32_0 : i32, i32
  }
  func.func @transform_7(%arg0: i32) -> (i32, i32) {
    %c0_i32 = arith.constant 0 : i32
    %c0_i32_0 = arith.constant 0 : i32
    %c0_i32_1 = arith.constant 0 : i32
    return %c0_i32, %c0_i32_0 : i32, i32
  }
  func.func @transform_8(%arg0: i32) -> (i32, i32) {
    %c0_i32 = arith.constant 0 : i32
    %c0_i32_0 = arith.constant 0 : i32
    %c0_i32_1 = arith.constant 0 : i32
    return %c0_i32, %c0_i32_0 : i32, i32
  }
  func.func @transform_9(%arg0: i32) -> (i32, i32) {
    %c0_i32 = arith.constant 0 : i32
    %c0_i32_0 = arith.constant 0 : i32
    %c0_i32_1 = arith.constant 0 : i32
    return %c0_i32, %c0_i32_0 : i32, i32
  }
  func.func @transform_10(%arg0: i32) -> (i32, i32, i32) {
    %c0_i32 = arith.constant 0 : i32
    %c0_i32_0 = arith.constant 0 : i32
    %c0_i32_1 = arith.constant 0 : i32
    %c0_i32_2 = arith.constant 0 : i32
    return %c0_i32, %c0_i32_0, %c0_i32_1 : i32, i32, i32
  }
}

</mosaic_0001>

<llo_original>
// kernel: bilstm_layer_forward.1
$region0: #{bilstm_layer_forward.1}
  #allocation0 [shape = 'u32[]', space=smem, size = 0x4, offset = 0x4, fixed_abs, tag = 'smem constant byte address 0x4 - core index']
  #allocation1 [shape = 'u32[72,128]{1,0:T(1,128)}', space=vmem, size = 0x9000, scoped, tag = 'internal scratch']
  #allocation2 [shape = 'f32[8,4,128]{2,1,0:T(4,128)}', space=vmem, size = 0x4000, scoped, tag = 'scratch operand']
  #allocation3 [shape = 'f32[8,4,32]{2,1,0:T(4,128)}', space=vmem, size = 0x4000, scoped, tag = 'scratch operand']
  %s0 = inlined_call_operand.vmem [shape: s32[4,1], index: 0, kind: input, shape index: {}]
  %s1 = inlined_call_operand.vmem [shape: f32[8,4,16], index: 1, kind: input, shape index: {}]
  %s2 = inlined_call_operand.vmem [shape: f32[16,128], index: 2, kind: input, shape index: {}]
  %s3 = inlined_call_operand.vmem [shape: f32[16,64], index: 3, kind: input, shape index: {}]
  %s4 = inlined_call_operand.hbm [shape: f32[16,64], index: 4, kind: input, shape index: {}]
  %s5 = inlined_call_operand.vmem [shape: f32[1,128], index: 5, kind: input, shape index: {}]
  %s6 = inlined_call_operand.vmem [shape: f32[32,128], index: 6, kind: input, shape index: {}]
  %s7 = inlined_call_operand.hbm [shape: f32[16,64], index: 7, kind: input, shape index: {}]
  %s8 = inlined_call_operand.hbm [shape: f32[16,64], index: 8, kind: input, shape index: {}]
  %s9 = inlined_call_operand.vmem [shape: f32[1,128], index: 9, kind: input, shape index: {}]
  %s10 = inlined_call_operand.vmem [shape: f32[8,4,32], index: 10, kind: output, shape index: {}]
  %s11 = sld [smem:[#allocation0]]
  $region62: #{bilstm_layer_forward.1} parent=0
    _
  %s13 = ssub.s32 1, %s11
  %s14 = scalar_select 0, %s13, %s11
  $region1: #{bilstm_layer_forward.1} parent=0
    #allocation4 [shape = 'u8[8192]{0}', space=vmem, size = 0x2000, scoped, tag = 'input window, operand 4, single buffered']
    #allocation5 [shape = 's32[1]{0}', space=sflag, size = 0x4, scoped, tag = 'scoped memory for bilstm_layer_forward.1']
    #allocation6 [shape = 'u8[8192]{0}', space=vmem, size = 0x2000, scoped, tag = 'input window, operand 7, single buffered']
    #allocation7 [shape = 's32[1]{0}', space=sflag, size = 0x4, scoped, tag = 'scoped memory for bilstm_layer_forward.1']
    #allocation8 [shape = 'u8[8192]{0}', space=vmem, size = 0x2000, scoped, tag = 'input window, operand 8, single buffered']
    %15 = vsyncpa [#allocation5], 0
    %16 = vsyncpa [#allocation7], 0
    // Predicated region
    $region2: #{bilstm_layer_forward.1} parent=1 // pred_check
      _
    $region3: #{bilstm_layer_forward.1} parent=1 // pred_check_branch
      %18 = sbr.rel (0) target = $region5
    $region4: #{bilstm_layer_forward.1} parent=1 // pred_region
      _
    $region5: #{bilstm_layer_forward.1} parent=1 // pred_fallthru
      _
    // Predicated region
    $region6: #{bilstm_layer_forward.1} parent=1 // pred_check
      _
    $region7: #{bilstm_layer_forward.1} parent=1 // pred_check_branch
      %20 = sbr.rel (0) target = $region9
    $region8: #{bilstm_layer_forward.1} parent=1 // pred_region
      _
    $region9: #{bilstm_layer_forward.1} parent=1 // pred_fallthru
      _
    // Predicated region
    $region10: #{bilstm_layer_forward.1} parent=1 // pred_check
      _
    $region11: #{bilstm_layer_forward.1} parent=1 // pred_check_branch
      %22 = sbr.rel (0) target = $region13
    $region12: #{bilstm_layer_forward.1} parent=1 // pred_region
      _
    $region13: #{bilstm_layer_forward.1} parent=1 // pred_fallthru
      _
    // Predicated region
    $region14: #{bilstm_layer_forward.1} parent=1 // pred_check
      _
    $region15: #{bilstm_layer_forward.1} parent=1 // pred_check_branch
      %24 = sbr.rel (0) target = $region17
    $region16: #{bilstm_layer_forward.1} parent=1 // pred_region
      _
    $region17: #{bilstm_layer_forward.1} parent=1 // pred_fallthru
      _
    // Predicated region
    $region18: #{bilstm_layer_forward.1} parent=1 // pred_check
      _
    $region19: #{bilstm_layer_forward.1} parent=1 // pred_check_branch
      %26 = sbr.rel (0) target = $region21
    $region20: #{bilstm_layer_forward.1} parent=1 // pred_region
      %28 = vsyncadd [#allocation5], 0
      %s29 = sshll.u32 %s4, 4
      %s30 = int_to_ptr.hbm [resolvable:$true] %s29
      %s31 = sshll.u32 [#allocation4], 4
      %s32 = int_to_ptr.vmem [resolvable:$true] %s31
      %37 = dma.hbm_to_vmem [thread:$0]  %s30, 256, %s32, [#allocation5], 128, 128, 8
    $region21: #{bilstm_layer_forward.1} parent=1 // pred_fallthru
      _
    // Predicated region
    $region22: #{bilstm_layer_forward.1} parent=1 // pred_check
      _
    $region23: #{bilstm_layer_forward.1} parent=1 // pred_check_branch
      %39 = sbr.rel (0) target = $region25
    $region24: #{bilstm_layer_forward.1} parent=1 // pred_region
      _
    $region25: #{bilstm_layer_forward.1} parent=1 // pred_fallthru
      _
    // Predicated region
    $region26: #{bilstm_layer_forward.1} parent=1 // pred_check
      _
    $region27: #{bilstm_layer_forward.1} parent=1 // pred_check_branch
      %41 = sbr.rel (0) target = $region29
    $region28: #{bilstm_layer_forward.1} parent=1 // pred_region
      _
    $region29: #{bilstm_layer_forward.1} parent=1 // pred_fallthru
      _
    // Predicated region
    $region30: #{bilstm_layer_forward.1} parent=1 // pred_check
      _
    $region31: #{bilstm_layer_forward.1} parent=1 // pred_check_branch
      %43 = sbr.rel (0) target = $region33
    $region32: #{bilstm_layer_forward.1} parent=1 // pred_region
      %45 = vsyncadd [#allocation7], 0
      %s46 = sshll.u32 %s7, 4
      %s47 = int_to_ptr.hbm [resolvable:$true] %s46
      %s48 = sshll.u32 [#allocation6], 4
      %s49 = int_to_ptr.vmem [resolvable:$true] %s48
      %54 = dma.hbm_to_vmem [thread:$0]  %s47, 256, %s49, [#allocation7], 128, 128, 8
    $region33: #{bilstm_layer_forward.1} parent=1 // pred_fallthru
      _
    // Predicated region
    $region34: #{bilstm_layer_forward.1} parent=1 // pred_check
      _
    $region35: #{bilstm_layer_forward.1} parent=1 // pred_check_branch
      %56 = sbr.rel (0) target = $region37
    $region36: #{bilstm_layer_forward.1} parent=1 // pred_region
      %58 = vsyncadd [#allocation7], 0
      %s59 = sshll.u32 %s8, 4
      %s60 = int_to_ptr.hbm [resolvable:$true] %s59
      %s61 = sshll.u32 [#allocation8], 4
      %s62 = int_to_ptr.vmem [resolvable:$true] %s61
      %67 = dma.hbm_to_vmem [thread:$0]  %s60, 256, %s62, [#allocation7], 128, 128, 8
    $region37: #{bilstm_layer_forward.1} parent=1 // pred_fallthru
      _
    // Predicated region
    $region38: #{bilstm_layer_forward.1} parent=1 // pred_check
      _
    $region39: #{bilstm_layer_forward.1} parent=1 // pred_check_branch
      %69 = sbr.rel (0) target = $region41
    $region40: #{bilstm_layer_forward.1} parent=1 // pred_region
      _
    $region41: #{bilstm_layer_forward.1} parent=1 // pred_fallthru
      _
    // Predicated region
    $region42: #{bilstm_layer_forward.1} parent=1 // pred_check
      _
    $region43: #{bilstm_layer_forward.1} parent=1 // pred_check_branch
      %71 = sbr.rel (0) target = $region45
    $region44: #{bilstm_layer_forward.1} parent=1 // pred_region
      %73 = dma.done [#allocation5], 256
    $region45: #{bilstm_layer_forward.1} parent=1 // pred_fallthru
      _
    // Predicated region
    $region46: #{bilstm_layer_forward.1} parent=1 // pred_check
      _
    $region47: #{bilstm_layer_forward.1} parent=1 // pred_check_branch
      %75 = sbr.rel (0) target = $region49
    $region48: #{bilstm_layer_forward.1} parent=1 // pred_region
      %77 = dma.done [#allocation7], 256
    $region49: #{bilstm_layer_forward.1} parent=1 // pred_fallthru
      _
    // Predicated region
    $region50: #{bilstm_layer_forward.1} parent=1 // pred_check
      _
    $region51: #{bilstm_layer_forward.1} parent=1 // pred_check_branch
      %79 = sbr.rel (0) target = $region53
    $region52: #{bilstm_layer_forward.1} parent=1 // pred_region
      %81 = dma.done [#allocation7], 256
    $region53: #{bilstm_layer_forward.1} parent=1 // pred_fallthru
      _
    %v82 = vld [vmem:[%s0] sm:$0xf]
    %v83 = vld [vmem:[%s2] sm:$0xff]
    %v84 = vld [vmem:[%s2 + $0x8] sm:$0xff]
    %v85 = vld [vmem:[%s5] sm:$0x1]
    %v86 = vld [vmem:[%s1] sm:$0xf]
    %v88 = vperm.slane %v85, 0
    %vm90 = vcmask 130048
    %v92 = vsel %vm90, %v86, 0
    %94 = vmatpush.msra.mxu0 0.0
    %95 = vmatpush.msra.mxu0 0.0
    %96 = vmatpush.msra.mxu0 0.0
    %97 = vmatpush.msra.mxu0 0.0
    %98 = vmatpush.msra.mxu0 0.0
    %99 = vmatpush.msra.mxu0 0.0
    %100 = vmatpush.msra.mxu0 0.0
    %101 = vmatpush.msra.mxu0 0.0
    %102 = vmatpush.msra.mxu0 0.0
    %103 = vmatpush.msra.mxu0 0.0
    %104 = vmatpush.msra.mxu0 0.0
    %105 = vmatpush.msra.mxu0 0.0
    %106 = vmatpush.msra.mxu0 0.0
    %107 = vmatpush.msra.mxu0 0.0
    %108 = vmatpush.msra.mxu0 %v84
    %109 = vmatpush.msra.mxu0 %v83
    %110 = vmatmul.f32.gmra.mxu0 %v92
    %v111 = vpop.f32.mrf.mxu0
    %v112 = vadd.f32 %v88, %v111
    %113 = vdwg.mxu0
    %114 = vst [vmem:[#allocation2] sm:$0xf] %v112
    %s115 = scalar_lea.vmem %s1, 4
    %v116 = vld [vmem:[%s115] sm:$0xf]
    %v118 = vsel %vm90, %v116, 0
    %120 = vmatpush.msra.mxu0 0.0
    %121 = vmatpush.msra.mxu0 0.0
    %122 = vmatpush.msra.mxu0 0.0
    %123 = vmatpush.msra.mxu0 0.0
    %124 = vmatpush.msra.mxu0 0.0
    %125 = vmatpush.msra.mxu0 0.0
    %126 = vmatpush.msra.mxu0 0.0
    %127 = vmatpush.msra.mxu0 0.0
    %128 = vmatpush.msra.mxu0 0.0
    %129 = vmatpush.msra.mxu0 0.0
    %130 = vmatpush.msra.mxu0 0.0
    %131 = vmatpush.msra.mxu0 0.0
    %132 = vmatpush.msra.mxu0 0.0
    %133 = vmatpush.msra.mxu0 0.0
    %134 = vmatpush.msra.mxu0 %v84
    %135 = vmatpush.msra.mxu0 %v83
    %136 = vmatmul.f32.gmra.mxu0 %v118
    %v137 = vpop.f32.mrf.mxu0
    %v138 = vadd.f32 %v88, %v137
    %139 = vdwg.mxu0
    %s140 = scalar_lea.vmem [#allocation2], 4
    %141 = vst [vmem:[%s140] sm:$0xf] %v138
    %s142 = scalar_lea.vmem %s1, 8
    %v143 = vld [vmem:[%s142] sm:$0xf]
    %v145 = vsel %vm90, %v143, 0
    %147 = vmatpush.msra.mxu0 0.0
    %148 = vmatpush.msra.mxu0 0.0
    %149 = vmatpush.msra.mxu0 0.0
    %150 = vmatpush.msra.mxu0 0.0
    %151 = vmatpush.msra.mxu0 0.0
    %152 = vmatpush.msra.mxu0 0.0
    %153 = vmatpush.msra.mxu0 0.0
    %154 = vmatpush.msra.mxu0 0.0
    %155 = vmatpush.msra.mxu0 0.0
    %156 = vmatpush.msra.mxu0 0.0
    %157 = vmatpush.msra.mxu0 0.0
    %158 = vmatpush.msra.mxu0 0.0
    %159 = vmatpush.msra.mxu0 0.0
    %160 = vmatpush.msra.mxu0 0.0
    %161 = vmatpush.msra.mxu0 %v84
    %162 = vmatpush.msra.mxu0 %v83
    %163 = vmatmul.f32.gmra.mxu0 %v145
    %v164 = vpop.f32.mrf.mxu0
    %v165 = vadd.f32 %v88, %v164
    %166 = vdwg.mxu0
    %s167 = scalar_lea.vmem [#allocation2], 8
    %168 = vst [vmem:[%s167] sm:$0xf] %v165
    %s169 = scalar_lea.vmem %s1, 12
    %v170 = vld [vmem:[%s169] sm:$0xf]
    %v172 = vsel %vm90, %v170, 0
    %174 = vmatpush.msra.mxu0 0.0
    %175 = vmatpush.msra.mxu0 0.0
    %176 = vmatpush.msra.mxu0 0.0
    %177 = vmatpush.msra.mxu0 0.0
    %178 = vmatpush.msra.mxu0 0.0
    %179 = vmatpush.msra.mxu0 0.0
    %180 = vmatpush.msra.mxu0 0.0
    %181 = vmatpush.msra.mxu0 0.0
    %182 = vmatpush.msra.mxu0 0.0
    %183 = vmatpush.msra.mxu0 0.0
    %184 = vmatpush.msra.mxu0 0.0
    %185 = vmatpush.msra.mxu0 0.0
    %186 = vmatpush.msra.mxu0 0.0
    %187 = vmatpush.msra.mxu0 0.0
    %188 = vmatpush.msra.mxu0 %v84
    %189 = vmatpush.msra.mxu0 %v83
    %190 = vmatmul.f32.gmra.mxu0 %v172
    %v191 = vpop.f32.mrf.mxu0
    %v192 = vadd.f32 %v88, %v191
    %193 = vdwg.mxu0
    %s194 = scalar_lea.vmem [#allocation2], 12
    %195 = vst [vmem:[%s194] sm:$0xf] %v192
    %s196 = scalar_lea.vmem %s1, 16
    %v197 = vld [vmem:[%s196] sm:$0xf]
    %v199 = vsel %vm90, %v197, 0
    %201 = vmatpush.msra.mxu0 0.0
    %202 = vmatpush.msra.mxu0 0.0
    %203 = vmatpush.msra.mxu0 0.0
    %204 = vmatpush.msra.mxu0 0.0
    %205 = vmatpush.msra.mxu0 0.0
    %206 = vmatpush.msra.mxu0 0.0
    %207 = vmatpush.msra.mxu0 0.0
    %208 = vmatpush.msra.mxu0 0.0
    %209 = vmatpush.msra.mxu0 0.0
    %210 = vmatpush.msra.mxu0 0.0
    %211 = vmatpush.msra.mxu0 0.0
    %212 = vmatpush.msra.mxu0 0.0
    %213 = vmatpush.msra.mxu0 0.0
    %214 = vmatpush.msra.mxu0 0.0
    %215 = vmatpush.msra.mxu0 %v84
    %216 = vmatpush.msra.mxu0 %v83
    %217 = vmatmul.f32.gmra.mxu0 %v199
    %v218 = vpop.f32.mrf.mxu0
    %v219 = vadd.f32 %v88, %v218
    %220 = vdwg.mxu0
    %s221 = scalar_lea.vmem [#allocation2], 16
    %222 = vst [vmem:[%s221] sm:$0xf] %v219
    %s223 = scalar_lea.vmem %s1, 20
    %v224 = vld [vmem:[%s223] sm:$0xf]
    %v226 = vsel %vm90, %v224, 0
    %228 = vmatpush.msra.mxu0 0.0
    %229 = vmatpush.msra.mxu0 0.0
    %230 = vmatpush.msra.mxu0 0.0
    %231 = vmatpush.msra.mxu0 0.0
    %232 = vmatpush.msra.mxu0 0.0
    %233 = vmatpush.msra.mxu0 0.0
    %234 = vmatpush.msra.mxu0 0.0
    %235 = vmatpush.msra.mxu0 0.0
    %236 = vmatpush.msra.mxu0 0.0
    %237 = vmatpush.msra.mxu0 0.0
    %238 = vmatpush.msra.mxu0 0.0
    %239 = vmatpush.msra.mxu0 0.0
    %240 = vmatpush.msra.mxu0 0.0
    %241 = vmatpush.msra.mxu0 0.0
    %242 = vmatpush.msra.mxu0 %v84
    %243 = vmatpush.msra.mxu0 %v83
    %244 = vmatmul.f32.gmra.mxu0 %v226
    %v245 = vpop.f32.mrf.mxu0
    %v246 = vadd.f32 %v88, %v245
    %247 = vdwg.mxu0
    %s248 = scalar_lea.vmem [#allocation2], 20
    %249 = vst [vmem:[%s248] sm:$0xf] %v246
    %s250 = scalar_lea.vmem %s1, 24
    %v251 = vld [vmem:[%s250] sm:$0xf]
    %v253 = vsel %vm90, %v251, 0
    %255 = vmatpush.msra.mxu0 0.0
    %256 = vmatpush.msra.mxu0 0.0
    %257 = vmatpush.msra.mxu0 0.0
    %258 = vmatpush.msra.mxu0 0.0
    %259 = vmatpush.msra.mxu0 0.0
    %260 = vmatpush.msra.mxu0 0.0
    %261 = vmatpush.msra.mxu0 0.0
    %262 = vmatpush.msra.mxu0 0.0
    %263 = vmatpush.msra.mxu0 0.0
    %264 = vmatpush.msra.mxu0 0.0
    %265 = vmatpush.msra.mxu0 0.0
    %266 = vmatpush.msra.mxu0 0.0
    %267 = vmatpush.msra.mxu0 0.0
    %268 = vmatpush.msra.mxu0 0.0
    %269 = vmatpush.msra.mxu0 %v84
    %270 = vmatpush.msra.mxu0 %v83
    %271 = vmatmul.f32.gmra.mxu0 %v253
    %v272 = vpop.f32.mrf.mxu0
    %v273 = vadd.f32 %v88, %v272
    %274 = vdwg.mxu0
    %s275 = scalar_lea.vmem [#allocation2], 24
    %276 = vst [vmem:[%s275] sm:$0xf] %v273
    %s277 = scalar_lea.vmem %s1, 28
    %v278 = vld [vmem:[%s277] sm:$0xf]
    %v280 = vsel %vm90, %v278, 0
    %282 = vmatpush.msra.mxu0 0.0
    %283 = vmatpush.msra.mxu0 0.0
    %284 = vmatpush.msra.mxu0 0.0
    %285 = vmatpush.msra.mxu0 0.0
    %286 = vmatpush.msra.mxu0 0.0
    %287 = vmatpush.msra.mxu0 0.0
    %288 = vmatpush.msra.mxu0 0.0
    %289 = vmatpush.msra.mxu0 0.0
    %290 = vmatpush.msra.mxu0 0.0
    %291 = vmatpush.msra.mxu0 0.0
    %292 = vmatpush.msra.mxu0 0.0
    %293 = vmatpush.msra.mxu0 0.0
    %294 = vmatpush.msra.mxu0 0.0
    %295 = vmatpush.msra.mxu0 0.0
    %296 = vmatpush.msra.mxu0 %v84
    %297 = vmatpush.msra.mxu0 %v83
    %298 = vmatmul.f32.gmra.mxu0 %v280
    %v299 = vpop.f32.mrf.mxu0
    %v300 = vadd.f32 %v88, %v299
    %301 = vdwg.mxu0
    %s302 = scalar_lea.vmem [#allocation2], 28
    %303 = vst [vmem:[%s302] sm:$0xf] %v300
    %v304 = vld [vmem:[%s3] sm:$0xff]
    %v305 = vld [vmem:[%s3 + $0x8] sm:$0xff]
    %v306 = vld [vmem:[#allocation4] sm:$0xff]
    %v307 = vld [vmem:[#allocation4 + $0x8] sm:$0xff]
    %v308 = vld [vmem:[#allocation2] sm:$0xf]
    %v310 = vsel %vm90, 0.0, 0
    %312 = vmatpush.msra.mxu0 0.0
    %313 = vmatpush.msra.mxu0 0.0
    %314 = vmatpush.msra.mxu0 0.0
    %315 = vmatpush.msra.mxu0 0.0
    %316 = vmatpush.msra.mxu0 0.0
    %317 = vmatpush.msra.mxu0 0.0
    %318 = vmatpush.msra.mxu0 0.0
    %319 = vmatpush.msra.mxu0 0.0
    %320 = vmatpush.msra.mxu0 0.0
    %321 = vmatpush.msra.mxu0 0.0
    %322 = vmatpush.msra.mxu0 0.0
    %323 = vmatpush.msra.mxu0 0.0
    %324 = vmatpush.msra.mxu0 0.0
    %325 = vmatpush.msra.mxu0 0.0
    %326 = vmatpush.msra.mxu0 %v305
    %327 = vmatpush.msra.mxu0 %v304
    %328 = vmatmul.f32.gmra.mxu0 %v310
    %v329 = vpop.f32.mrf.mxu0
    %v330 = vadd.f32 0.0, %v329
    %331 = vdwg.mxu0
    %v332 = vadd.f32 %v308, %v330
    %v333 = vld [vmem:[%s302] sm:$0xf]
    %334 = vmatpush.msra.mxu0 0.0
    %335 = vmatpush.msra.mxu0 0.0
    %336 = vmatpush.msra.mxu0 0.0
    %337 = vmatpush.msra.mxu0 0.0
    %338 = vmatpush.msra.mxu0 0.0
    %339 = vmatpush.msra.mxu0 0.0
    %340 = vmatpush.msra.mxu0 0.0
    %341 = vmatpush.msra.mxu0 0.0
    %342 = vmatpush.msra.mxu0 0.0
    %343 = vmatpush.msra.mxu0 0.0
    %344 = vmatpush.msra.mxu0 0.0
    %345 = vmatpush.msra.mxu0 0.0
    %346 = vmatpush.msra.mxu0 0.0
    %347 = vmatpush.msra.mxu0 0.0
    %348 = vmatpush.msra.mxu0 %v307
    %349 = vmatpush.msra.mxu0 %v306
    %350 = vmatmul.f32.gmra.mxu0 %v310
    %v351 = vpop.f32.mrf.mxu0
    %v352 = vadd.f32 0.0, %v351
    %353 = vdwg.mxu0
    %355 = vrot.lane.b32.xlu0 %v352, 64
    %v356 = vpop.permute.xlu0 %355
    %v358 = vadd.f32 %v333, %v356
    %v359 = vxor.u32 %v332, 2147483648
    %v360 = vmul.f32 %v359, 1.442695
    %v361 = vpow.pop %v360
    %v362 = vadd.f32 %v361, 1.0
    %v363 = vrcp.pop %v362
    %v364 = vmul.f32 %v362, %v363
    %v365 = vsub.f32 1.0, %v364
    %v366 = vmul.f32 %v363, %v365
    %v367 = vadd.f32 %v363, %v366
    %vm368 = vweird.f32 %v362
    %vm369 = vweird.f32 %v363
    %vm370 = vmor %vm368, %vm369
    %v371 = vsel %vm370, %v363, %v367
    %v372 = vand.u32 2147483647, %v362
    %vm373 = vcmp.eq.f32.partialorder %v372, 8.507059e+37
    %v374 = vand.u32 %v362, 2147483648
    %v375 = vor.u32 1.1754944e-38, %v374
    %v376 = vsel %vm373, %v375, %v371
    %v377 = vmul.f32 1.0, %v376
    %v378 = vtanh.pop %v332
    %v379 = vmul.f32 %v377, 0.0
    %381 = vrot.lane.b32.xlu0 %v378, 96
    %v382 = vpop.permute.xlu0 %381
    %v384 = vmul.f32 %v377, %v382
    %386 = vrot.lane.b32.xlu0 %v384, 16
    %v387 = vpop.permute.xlu0 %386
    %v389 = vadd.f32 %v379, %v387
    %v390 = vtanh.pop %v389
    %392 = vrot.lane.b32.xlu0 %v390, 32
    %v393 = vpop.permute.xlu0 %392
    %v395 = vmul.f32 %v377, %v393
    %v396 = vxor.u32 %v358, 2147483648
    %v397 = vmul.f32 %v396, 1.442695
    %v398 = vpow.pop %v397
    %v399 = vadd.f32 %v398, 1.0
    %v400 = vrcp.pop %v399
    %v401 = vmul.f32 %v399, %v400
    %v402 = vsub.f32 1.0, %v401
    %v403 = vmul.f32 %v400, %v402
    %v404 = vadd.f32 %v400, %v403
    %vm405 = vweird.f32 %v399
    %vm406 = vweird.f32 %v400
    %vm407 = vmor %vm405, %vm406
    %v408 = vsel %vm407, %v400, %v404
    %v409 = vand.u32 2147483647, %v399
    %vm410 = vcmp.eq.f32.partialorder %v409, 8.507059e+37
    %v411 = vand.u32 %v399, 2147483648
    %v412 = vor.u32 1.1754944e-38, %v411
    %v413 = vsel %vm410, %v412, %v408
    %v414 = vmul.f32 1.0, %v413
    %v415 = vtanh.pop %v358
    %v416 = vmul.f32 %v414, 0.0
    %418 = vrot.lane.b32.xlu0 %v415, 96
    %v419 = vpop.permute.xlu0 %418
    %v421 = vmul.f32 %v414, %v419
    %423 = vrot.lane.b32.xlu0 %v421, 16
    %v424 = vpop.permute.xlu0 %423
    %v426 = vadd.f32 %v416, %v424
    %v427 = vtanh.pop %v426
    %429 = vrot.lane.b32.xlu0 %v427, 32
    %v430 = vpop.permute.xlu0 %429
    %v432 = vmul.f32 %v414, %v430
    %vm433 = vcmp.gt.s32.totalorder %v82, 0
    %vm434 = vcmp.gt.s32.totalorder %v82, 7
    %v435 = vsel %vm433, 1, 0
    %436 = vset.pattern.permute.xlu0 0
    %437 = vperm.xlu0 %436, %v435
    %v438 = vpop.permute.xlu0 %437
    %vm439 = vcmp.eq.s32.totalorder %v438, 1
    %v440 = vsel %vm439, %v395, 0.0
    %442 = vrot.lane.b32.xlu0 %v440, 80
    %v443 = vpop.permute.xlu0 %442
    %vm445 = vcmask 125952
    %446 = vst.msk [vmem:[#allocation3] sm:$0xf] %vm445, %v443
    %v447 = vsel %vm434, 1, 0
    %448 = vset.pattern.permute.xlu0 0
    %449 = vperm.xlu0 %448, %v447
    %v450 = vpop.permute.xlu0 %449
    %vm451 = vcmp.eq.s32.totalorder %v450, 1
    %v452 = vsel %vm451, %v432, 0.0
    %454 = vrot.lane.b32.xlu0 %v452, 32
    %v455 = vpop.permute.xlu0 %454
    %s457 = scalar_lea.vmem [#allocation3], 28
    %vm458 = vcmask 257152
    %459 = vst.msk [vmem:[%s457] sm:$0xf] %vm458, %v455
    %v460 = vsel %vm439, %v389, 0.0
    %v461 = vsel %vm451, %v426, 0.0
    %v462 = vld [vmem:[%s140] sm:$0xf]
    %v463 = vsel %vm90, %v443, 0
    %465 = vmatpush.msra.mxu0 0.0
    %466 = vmatpush.msra.mxu0 0.0
    %467 = vmatpush.msra.mxu0 0.0
    %468 = vmatpush.msra.mxu0 0.0
    %469 = vmatpush.msra.mxu0 0.0
    %470 = vmatpush.msra.mxu0 0.0
    %471 = vmatpush.msra.mxu0 0.0
    %472 = vmatpush.msra.mxu0 0.0
    %473 = vmatpush.msra.mxu0 0.0
    %474 = vmatpush.msra.mxu0 0.0
    %475 = vmatpush.msra.mxu0 0.0
    %476 = vmatpush.msra.mxu0 0.0
    %477 = vmatpush.msra.mxu0 0.0
    %478 = vmatpush.msra.mxu0 0.0
    %479 = vmatpush.msra.mxu0 %v305
    %480 = vmatpush.msra.mxu0 %v304
    %481 = vmatmul.f32.gmra.mxu0 %v463
    %v482 = vpop.f32.mrf.mxu0
    %v483 = vadd.f32 0.0, %v482
    %484 = vdwg.mxu0
    %v485 = vadd.f32 %v462, %v483
    %v486 = vld [vmem:[%s275] sm:$0xf]
    %487 = vrot.lane.b32.xlu0 %v452, 16
    %v488 = vpop.permute.xlu0 %487
    %v489 = vsel %vm90, %v488, 0
    %491 = vmatpush.msra.mxu0 0.0
    %492 = vmatpush.msra.mxu0 0.0
    %493 = vmatpush.msra.mxu0 0.0
    %494 = vmatpush.msra.mxu0 0.0
    %495 = vmatpush.msra.mxu0 0.0
    %496 = vmatpush.msra.mxu0 0.0
    %497 = vmatpush.msra.mxu0 0.0
    %498 = vmatpush.msra.mxu0 0.0
    %499 = vmatpush.msra.mxu0 0.0
    %500 = vmatpush.msra.mxu0 0.0
    %501 = vmatpush.msra.mxu0 0.0
    %502 = vmatpush.msra.mxu0 0.0
    %503 = vmatpush.msra.mxu0 0.0
    %504 = vmatpush.msra.mxu0 0.0
    %505 = vmatpush.msra.mxu0 %v307
    %506 = vmatpush.msra.mxu0 %v306
    %507 = vmatmul.f32.gmra.mxu0 %v489
    %v508 = vpop.f32.mrf.mxu0
    %v509 = vadd.f32 0.0, %v508
    %510 = vdwg.mxu0
    %512 = vrot.lane.b32.xlu0 %v509, 64
    %v513 = vpop.permute.xlu0 %512
    %v515 = vadd.f32 %v486, %v513
    %v516 = vxor.u32 %v485, 2147483648
    %v517 = vmul.f32 %v516, 1.442695
    %v518 = vpow.pop %v517
    %v519 = vadd.f32 %v518, 1.0
    %v520 = vrcp.pop %v519
    %v521 = vmul.f32 %v519, %v520
    %v522 = vsub.f32 1.0, %v521
    %v523 = vmul.f32 %v520, %v522
    %v524 = vadd.f32 %v520, %v523
    %vm525 = vweird.f32 %v519
    %vm526 = vweird.f32 %v520
    %vm527 = vmor %vm525, %vm526
    %v528 = vsel %vm527, %v520, %v524
    %v529 = vand.u32 2147483647, %v519
    %vm530 = vcmp.eq.f32.partialorder %v529, 8.507059e+37
    %v531 = vand.u32 %v519, 2147483648
    %v532 = vor.u32 1.1754944e-38, %v531
    %v533 = vsel %vm530, %v532, %v528
    %v534 = vmul.f32 1.0, %v533
    %v535 = vtanh.pop %v485
    %v536 = vmul.f32 %v534, %v460
    %538 = vrot.lane.b32.xlu0 %v535, 96
    %v539 = vpop.permute.xlu0 %538
    %v541 = vmul.f32 %v534, %v539
    %543 = vrot.lane.b32.xlu0 %v541, 16
    %v544 = vpop.permute.xlu0 %543
    %v546 = vadd.f32 %v536, %v544
    %v547 = vtanh.pop %v546
    %549 = vrot.lane.b32.xlu0 %v547, 32
    %v550 = vpop.permute.xlu0 %549
    %v552 = vmul.f32 %v534, %v550
    %v553 = vxor.u32 %v515, 2147483648
    %v554 = vmul.f32 %v553, 1.442695
    %v555 = vpow.pop %v554
    %v556 = vadd.f32 %v555, 1.0
    %v557 = vrcp.pop %v556
    %v558 = vmul.f32 %v556, %v557
    %v559 = vsub.f32 1.0, %v558
    %v560 = vmul.f32 %v557, %v559
    %v561 = vadd.f32 %v557, %v560
    %vm562 = vweird.f32 %v556
    %vm563 = vweird.f32 %v557
    %vm564 = vmor %vm562, %vm563
    %v565 = vsel %vm564, %v557, %v561
    %v566 = vand.u32 2147483647, %v556
    %vm567 = vcmp.eq.f32.partialorder %v566, 8.507059e+37
    %v568 = vand.u32 %v556, 2147483648
    %v569 = vor.u32 1.1754944e-38, %v568
    %v570 = vsel %vm567, %v569, %v565
    %v571 = vmul.f32 1.0, %v570
    %v572 = vtanh.pop %v515
    %v573 = vmul.f32 %v571, %v461
    %575 = vrot.lane.b32.xlu0 %v572, 96
    %v576 = vpop.permute.xlu0 %575
    %v578 = vmul.f32 %v571, %v576
    %580 = vrot.lane.b32.xlu0 %v578, 16
    %v581 = vpop.permute.xlu0 %580
    %v583 = vadd.f32 %v573, %v581
    %v584 = vtanh.pop %v583
    %586 = vrot.lane.b32.xlu0 %v584, 32
    %v587 = vpop.permute.xlu0 %586
    %v589 = vmul.f32 %v571, %v587
    %vm590 = vcmp.gt.s32.totalorder %v82, 1
    %vm591 = vcmp.gt.s32.totalorder %v82, 6
    %v592 = vsel %vm590, 1, 0
    %593 = vset.pattern.permute.xlu0 0
    %594 = vperm.xlu0 %593, %v592
    %v595 = vpop.permute.xlu0 %594
    %vm596 = vcmp.eq.s32.totalorder %v595, 1
    %v597 = vsel %vm596, %v552, 0.0
    %599 = vrot.lane.b32.xlu0 %v597, 80
    %v600 = vpop.permute.xlu0 %599
    %s602 = scalar_lea.vmem [#allocation3], 4
    %603 = vst.msk [vmem:[%s602] sm:$0xf] %vm445, %v600
    %v604 = vsel %vm591, 1, 0
    %605 = vset.pattern.permute.xlu0 0
    %606 = vperm.xlu0 %605, %v604
    %v607 = vpop.permute.xlu0 %606
    %vm608 = vcmp.eq.s32.totalorder %v607, 1
    %v609 = vsel %vm608, %v589, 0.0
    %611 = vrot.lane.b32.xlu0 %v609, 32
    %v612 = vpop.permute.xlu0 %611
    %s614 = scalar_lea.vmem [#allocation3], 24
    %615 = vst.msk [vmem:[%s614] sm:$0xf] %vm458, %v612
    %v616 = vsel %vm596, %v552, %v440
    %v617 = vsel %vm596, %v546, %v460
    %v618 = vsel %vm608, %v589, %v452
    %v619 = vsel %vm608, %v583, %v461
    %v620 = vld [vmem:[%s167] sm:$0xf]
    %622 = vrot.lane.b32.xlu0 %v616, 80
    %v623 = vpop.permute.xlu0 %622
    %v624 = vsel %vm90, %v623, 0
    %626 = vmatpush.msra.mxu0 0.0
    %627 = vmatpush.msra.mxu0 0.0
    %628 = vmatpush.msra.mxu0 0.0
    %629 = vmatpush.msra.mxu0 0.0
    %630 = vmatpush.msra.mxu0 0.0
    %631 = vmatpush.msra.mxu0 0.0
    %632 = vmatpush.msra.mxu0 0.0
    %633 = vmatpush.msra.mxu0 0.0
    %634 = vmatpush.msra.mxu0 0.0
    %635 = vmatpush.msra.mxu0 0.0
    %636 = vmatpush.msra.mxu0 0.0
    %637 = vmatpush.msra.mxu0 0.0
    %638 = vmatpush.msra.mxu0 0.0
    %639 = vmatpush.msra.mxu0 0.0
    %640 = vmatpush.msra.mxu0 %v305
    %641 = vmatpush.msra.mxu0 %v304
    %642 = vmatmul.f32.gmra.mxu0 %v624
    %v643 = vpop.f32.mrf.mxu0
    %v644 = vadd.f32 0.0, %v643
    %645 = vdwg.mxu0
    %v646 = vadd.f32 %v620, %v644
    %v647 = vld [vmem:[%s248] sm:$0xf]
    %649 = vrot.lane.b32.xlu0 %v618, 16
    %v650 = vpop.permute.xlu0 %649
    %v651 = vsel %vm90, %v650, 0
    %653 = vmatpush.msra.mxu0 0.0
    %654 = vmatpush.msra.mxu0 0.0
    %655 = vmatpush.msra.mxu0 0.0
    %656 = vmatpush.msra.mxu0 0.0
    %657 = vmatpush.msra.mxu0 0.0
    %658 = vmatpush.msra.mxu0 0.0
    %659 = vmatpush.msra.mxu0 0.0
    %660 = vmatpush.msra.mxu0 0.0
    %661 = vmatpush.msra.mxu0 0.0
    %662 = vmatpush.msra.mxu0 0.0
    %663 = vmatpush.msra.mxu0 0.0
    %664 = vmatpush.msra.mxu0 0.0
    %665 = vmatpush.msra.mxu0 0.0
    %666 = vmatpush.msra.mxu0 0.0
    %667 = vmatpush.msra.mxu0 %v307
    %668 = vmatpush.msra.mxu0 %v306
    %669 = vmatmul.f32.gmra.mxu0 %v651
    %v670 = vpop.f32.mrf.mxu0
    %v671 = vadd.f32 0.0, %v670
    %672 = vdwg.mxu0
    %674 = vrot.lane.b32.xlu0 %v671, 64
    %v675 = vpop.permute.xlu0 %674
    %v677 = vadd.f32 %v647, %v675
    %v678 = vxor.u32 %v646, 2147483648
    %v679 = vmul.f32 %v678, 1.442695
    %v680 = vpow.pop %v679
    %v681 = vadd.f32 %v680, 1.0
    %v682 = vrcp.pop %v681
    %v683 = vmul.f32 %v681, %v682
    %v684 = vsub.f32 1.0, %v683
    %v685 = vmul.f32 %v682, %v684
    %v686 = vadd.f32 %v682, %v685
    %vm687 = vweird.f32 %v681
    %vm688 = vweird.f32 %v682
    %vm689 = vmor %vm687, %vm688
    %v690 = vsel %vm689, %v682, %v686
    %v691 = vand.u32 2147483647, %v681
    %vm692 = vcmp.eq.f32.partialorder %v691, 8.507059e+37
    %v693 = vand.u32 %v681, 2147483648
    %v694 = vor.u32 1.1754944e-38, %v693
    %v695 = vsel %vm692, %v694, %v690
    %v696 = vmul.f32 1.0, %v695
    %v697 = vtanh.pop %v646
    %v698 = vmul.f32 %v696, %v617
    %700 = vrot.lane.b32.xlu0 %v697, 96
    %v701 = vpop.permute.xlu0 %700
    %v703 = vmul.f32 %v696, %v701
    %705 = vrot.lane.b32.xlu0 %v703, 16
    %v706 = vpop.permute.xlu0 %705
    %v708 = vadd.f32 %v698, %v706
    %v709 = vtanh.pop %v708
    %711 = vrot.lane.b32.xlu0 %v709, 32
    %v712 = vpop.permute.xlu0 %711
    %v714 = vmul.f32 %v696, %v712
    %v715 = vxor.u32 %v677, 2147483648
    %v716 = vmul.f32 %v715, 1.442695
    %v717 = vpow.pop %v716
    %v718 = vadd.f32 %v717, 1.0
    %v719 = vrcp.pop %v718
    %v720 = vmul.f32 %v718, %v719
    %v721 = vsub.f32 1.0, %v720
    %v722 = vmul.f32 %v719, %v721
    %v723 = vadd.f32 %v719, %v722
    %vm724 = vweird.f32 %v718
    %vm725 = vweird.f32 %v719
    %vm726 = vmor %vm724, %vm725
    %v727 = vsel %vm726, %v719, %v723
    %v728 = vand.u32 2147483647, %v718
    %vm729 = vcmp.eq.f32.partialorder %v728, 8.507059e+37
    %v730 = vand.u32 %v718, 2147483648
    %v731 = vor.u32 1.1754944e-38, %v730
    %v732 = vsel %vm729, %v731, %v727
    %v733 = vmul.f32 1.0, %v732
    %v734 = vtanh.pop %v677
    %v735 = vmul.f32 %v733, %v619
    %737 = vrot.lane.b32.xlu0 %v734, 96
    %v738 = vpop.permute.xlu0 %737
    %v740 = vmul.f32 %v733, %v738
    %742 = vrot.lane.b32.xlu0 %v740, 16
    %v743 = vpop.permute.xlu0 %742
    %v745 = vadd.f32 %v735, %v743
    %v746 = vtanh.pop %v745
    %748 = vrot.lane.b32.xlu0 %v746, 32
    %v749 = vpop.permute.xlu0 %748
    %v751 = vmul.f32 %v733, %v749
    %vm752 = vcmp.gt.s32.totalorder %v82, 2
    %vm753 = vcmp.gt.s32.totalorder %v82, 5
    %v754 = vsel %vm752, 1, 0
    %755 = vset.pattern.permute.xlu0 0
    %756 = vperm.xlu0 %755, %v754
    %v757 = vpop.permute.xlu0 %756
    %vm758 = vcmp.eq.s32.totalorder %v757, 1
    %v759 = vsel %vm758, %v714, 0.0
    %761 = vrot.lane.b32.xlu0 %v759, 80
    %v762 = vpop.permute.xlu0 %761
    %s764 = scalar_lea.vmem [#allocation3], 8
    %765 = vst.msk [vmem:[%s764] sm:$0xf] %vm445, %v762
    %v766 = vsel %vm753, 1, 0
    %767 = vset.pattern.permute.xlu0 0
    %768 = vperm.xlu0 %767, %v766
    %v769 = vpop.permute.xlu0 %768
    %vm770 = vcmp.eq.s32.totalorder %v769, 1
    %v771 = vsel %vm770, %v751, 0.0
    %773 = vrot.lane.b32.xlu0 %v771, 32
    %v774 = vpop.permute.xlu0 %773
    %s776 = scalar_lea.vmem [#allocation3], 20
    %777 = vst.msk [vmem:[%s776] sm:$0xf] %vm458, %v774
    %v778 = vsel %vm758, %v714, %v616
    %v779 = vsel %vm758, %v708, %v617
    %v780 = vsel %vm770, %v751, %v618
    %v781 = vsel %vm770, %v745, %v619
    %v782 = vld [vmem:[%s194] sm:$0xf]
    %784 = vrot.lane.b32.xlu0 %v778, 80
    %v785 = vpop.permute.xlu0 %784
    %v786 = vsel %vm90, %v785, 0
    %788 = vmatpush.msra.mxu0 0.0
    %789 = vmatpush.msra.mxu0 0.0
    %790 = vmatpush.msra.mxu0 0.0
    %791 = vmatpush.msra.mxu0 0.0
    %792 = vmatpush.msra.mxu0 0.0
    %793 = vmatpush.msra.mxu0 0.0
    %794 = vmatpush.msra.mxu0 0.0
    %795 = vmatpush.msra.mxu0 0.0
    %796 = vmatpush.msra.mxu0 0.0
    %797 = vmatpush.msra.mxu0 0.0
    %798 = vmatpush.msra.mxu0 0.0
    %799 = vmatpush.msra.mxu0 0.0
    %800 = vmatpush.msra.mxu0 0.0
    %801 = vmatpush.msra.mxu0 0.0
    %802 = vmatpush.msra.mxu0 %v305
    %803 = vmatpush.msra.mxu0 %v304
    %804 = vmatmul.f32.gmra.mxu0 %v786
    %v805 = vpop.f32.mrf.mxu0
    %v806 = vadd.f32 0.0, %v805
    %807 = vdwg.mxu0
    %v808 = vadd.f32 %v782, %v806
    %v809 = vld [vmem:[%s221] sm:$0xf]
    %811 = vrot.lane.b32.xlu0 %v780, 16
    %v812 = vpop.permute.xlu0 %811
    %v813 = vsel %vm90, %v812, 0
    %815 = vmatpush.msra.mxu0 0.0
    %816 = vmatpush.msra.mxu0 0.0
    %817 = vmatpush.msra.mxu0 0.0
    %818 = vmatpush.msra.mxu0 0.0
    %819 = vmatpush.msra.mxu0 0.0
    %820 = vmatpush.msra.mxu0 0.0
    %821 = vmatpush.msra.mxu0 0.0
    %822 = vmatpush.msra.mxu0 0.0
    %823 = vmatpush.msra.mxu0 0.0
    %824 = vmatpush.msra.mxu0 0.0
    %825 = vmatpush.msra.mxu0 0.0
    %826 = vmatpush.msra.mxu0 0.0
    %827 = vmatpush.msra.mxu0 0.0
    %828 = vmatpush.msra.mxu0 0.0
    %829 = vmatpush.msra.mxu0 %v307
    %830 = vmatpush.msra.mxu0 %v306
    %831 = vmatmul.f32.gmra.mxu0 %v813
    %v832 = vpop.f32.mrf.mxu0
    %v833 = vadd.f32 0.0, %v832
    %834 = vdwg.mxu0
    %836 = vrot.lane.b32.xlu0 %v833, 64
    %v837 = vpop.permute.xlu0 %836
    %v839 = vadd.f32 %v809, %v837
    %v840 = vxor.u32 %v808, 2147483648
    %v841 = vmul.f32 %v840, 1.442695
    %v842 = vpow.pop %v841
    %v843 = vadd.f32 %v842, 1.0
    %v844 = vrcp.pop %v843
    %v845 = vmul.f32 %v843, %v844
    %v846 = vsub.f32 1.0, %v845
    %v847 = vmul.f32 %v844, %v846
    %v848 = vadd.f32 %v844, %v847
    %vm849 = vweird.f32 %v843
    %vm850 = vweird.f32 %v844
    %vm851 = vmor %vm849, %vm850
    %v852 = vsel %vm851, %v844, %v848
    %v853 = vand.u32 2147483647, %v843
    %vm854 = vcmp.eq.f32.partialorder %v853, 8.507059e+37
    %v855 = vand.u32 %v843, 2147483648
    %v856 = vor.u32 1.1754944e-38, %v855
    %v857 = vsel %vm854, %v856, %v852
    %v858 = vmul.f32 1.0, %v857
    %v859 = vtanh.pop %v808
    %v860 = vmul.f32 %v858, %v779
    %862 = vrot.lane.b32.xlu0 %v859, 96
    %v863 = vpop.permute.xlu0 %862
    %v865 = vmul.f32 %v858, %v863
    %867 = vrot.lane.b32.xlu0 %v865, 16
    %v868 = vpop.permute.xlu0 %867
    %v870 = vadd.f32 %v860, %v868
    %v871 = vtanh.pop %v870
    %873 = vrot.lane.b32.xlu0 %v871, 32
    %v874 = vpop.permute.xlu0 %873
    %v876 = vmul.f32 %v858, %v874
    %v877 = vxor.u32 %v839, 2147483648
    %v878 = vmul.f32 %v877, 1.442695
    %v879 = vpow.pop %v878
    %v880 = vadd.f32 %v879, 1.0
    %v881 = vrcp.pop %v880
    %v882 = vmul.f32 %v880, %v881
    %v883 = vsub.f32 1.0, %v882
    %v884 = vmul.f32 %v881, %v883
    %v885 = vadd.f32 %v881, %v884
    %vm886 = vweird.f32 %v880
    %vm887 = vweird.f32 %v881
    %vm888 = vmor %vm886, %vm887
    %v889 = vsel %vm888, %v881, %v885
    %v890 = vand.u32 2147483647, %v880
    %vm891 = vcmp.eq.f32.partialorder %v890, 8.507059e+37
    %v892 = vand.u32 %v880, 2147483648
    %v893 = vor.u32 1.1754944e-38, %v892
    %v894 = vsel %vm891, %v893, %v889
    %v895 = vmul.f32 1.0, %v894
    %v896 = vtanh.pop %v839
    %v897 = vmul.f32 %v895, %v781
    %899 = vrot.lane.b32.xlu0 %v896, 96
    %v900 = vpop.permute.xlu0 %899
    %v902 = vmul.f32 %v895, %v900
    %904 = vrot.lane.b32.xlu0 %v902, 16
    %v905 = vpop.permute.xlu0 %904
    %v907 = vadd.f32 %v897, %v905
    %v908 = vtanh.pop %v907
    %910 = vrot.lane.b32.xlu0 %v908, 32
    %v911 = vpop.permute.xlu0 %910
    %v913 = vmul.f32 %v895, %v911
    %vm914 = vcmp.gt.s32.totalorder %v82, 3
    %vm915 = vcmp.gt.s32.totalorder %v82, 4
    %v916 = vsel %vm914, 1, 0
    %917 = vset.pattern.permute.xlu0 0
    %918 = vperm.xlu0 %917, %v916
    %v919 = vpop.permute.xlu0 %918
    %vm920 = vcmp.eq.s32.totalorder %v919, 1
    %v921 = vsel %vm920, %v876, 0.0
    %923 = vrot.lane.b32.xlu0 %v921, 80
    %v924 = vpop.permute.xlu0 %923
    %s926 = scalar_lea.vmem [#allocation3], 12
    %927 = vst.msk [vmem:[%s926] sm:$0xf] %vm445, %v924
    %v928 = vsel %vm915, 1, 0
    %929 = vset.pattern.permute.xlu0 0
    %930 = vperm.xlu0 %929, %v928
    %v931 = vpop.permute.xlu0 %930
    %vm932 = vcmp.eq.s32.totalorder %v931, 1
    %v933 = vsel %vm932, %v913, 0.0
    %935 = vrot.lane.b32.xlu0 %v933, 32
    %v936 = vpop.permute.xlu0 %935
    %s938 = scalar_lea.vmem [#allocation3], 16
    %939 = vst.msk [vmem:[%s938] sm:$0xf] %vm458, %v936
    %v940 = vsel %vm920, %v876, %v778
    %v941 = vsel %vm920, %v870, %v779
    %v942 = vsel %vm932, %v913, %v780
    %v943 = vsel %vm932, %v907, %v781
    %v944 = vld [vmem:[%s221] sm:$0xf]
    %946 = vrot.lane.b32.xlu0 %v940, 80
    %v947 = vpop.permute.xlu0 %946
    %v948 = vsel %vm90, %v947, 0
    %950 = vmatpush.msra.mxu0 0.0
    %951 = vmatpush.msra.mxu0 0.0
    %952 = vmatpush.msra.mxu0 0.0
    %953 = vmatpush.msra.mxu0 0.0
    %954 = vmatpush.msra.mxu0 0.0
    %955 = vmatpush.msra.mxu0 0.0
    %956 = vmatpush.msra.mxu0 0.0
    %957 = vmatpush.msra.mxu0 0.0
    %958 = vmatpush.msra.mxu0 0.0
    %959 = vmatpush.msra.mxu0 0.0
    %960 = vmatpush.msra.mxu0 0.0
    %961 = vmatpush.msra.mxu0 0.0
    %962 = vmatpush.msra.mxu0 0.0
    %963 = vmatpush.msra.mxu0 0.0
    %964 = vmatpush.msra.mxu0 %v305
    %965 = vmatpush.msra.mxu0 %v304
    %966 = vmatmul.f32.gmra.mxu0 %v948
    %v967 = vpop.f32.mrf.mxu0
    %v968 = vadd.f32 0.0, %v967
    %969 = vdwg.mxu0
    %v970 = vadd.f32 %v944, %v968
    %v971 = vld [vmem:[%s194] sm:$0xf]
    %973 = vrot.lane.b32.xlu0 %v942, 16
    %v974 = vpop.permute.xlu0 %973
    %v975 = vsel %vm90, %v974, 0
    %977 = vmatpush.msra.mxu0 0.0
    %978 = vmatpush.msra.mxu0 0.0
    %979 = vmatpush.msra.mxu0 0.0
    %980 = vmatpush.msra.mxu0 0.0
    %981 = vmatpush.msra.mxu0 0.0
    %982 = vmatpush.msra.mxu0 0.0
    %983 = vmatpush.msra.mxu0 0.0
    %984 = vmatpush.msra.mxu0 0.0
    %985 = vmatpush.msra.mxu0 0.0
    %986 = vmatpush.msra.mxu0 0.0
    %987 = vmatpush.msra.mxu0 0.0
    %988 = vmatpush.msra.mxu0 0.0
    %989 = vmatpush.msra.mxu0 0.0
    %990 = vmatpush.msra.mxu0 0.0
    %991 = vmatpush.msra.mxu0 %v307
    %992 = vmatpush.msra.mxu0 %v306
    %993 = vmatmul.f32.gmra.mxu0 %v975
    %v994 = vpop.f32.mrf.mxu0
    %v995 = vadd.f32 0.0, %v994
    %996 = vdwg.mxu0
    %998 = vrot.lane.b32.xlu0 %v995, 64
    %v999 = vpop.permute.xlu0 %998
    %v1001 = vadd.f32 %v971, %v999
    %v1002 = vxor.u32 %v970, 2147483648
    %v1003 = vmul.f32 %v1002, 1.442695
    %v1004 = vpow.pop %v1003
    %v1005 = vadd.f32 %v1004, 1.0
    %v1006 = vrcp.pop %v1005
    %v1007 = vmul.f32 %v1005, %v1006
    %v1008 = vsub.f32 1.0, %v1007
    %v1009 = vmul.f32 %v1006, %v1008
    %v1010 = vadd.f32 %v1006, %v1009
    %vm1011 = vweird.f32 %v1005
    %vm1012 = vweird.f32 %v1006
    %vm1013 = vmor %vm1011, %vm1012
    %v1014 = vsel %vm1013, %v1006, %v1010
    %v1015 = vand.u32 2147483647, %v1005
    %vm1016 = vcmp.eq.f32.partialorder %v1015, 8.507059e+37
    %v1017 = vand.u32 %v1005, 2147483648
    %v1018 = vor.u32 1.1754944e-38, %v1017
    %v1019 = vsel %vm1016, %v1018, %v1014
    %v1020 = vmul.f32 1.0, %v1019
    %v1021 = vtanh.pop %v970
    %v1022 = vmul.f32 %v1020, %v941
    %1024 = vrot.lane.b32.xlu0 %v1021, 96
    %v1025 = vpop.permute.xlu0 %1024
    %v1027 = vmul.f32 %v1020, %v1025
    %1029 = vrot.lane.b32.xlu0 %v1027, 16
    %v1030 = vpop.permute.xlu0 %1029
    %v1032 = vadd.f32 %v1022, %v1030
    %v1033 = vtanh.pop %v1032
    %1035 = vrot.lane.b32.xlu0 %v1033, 32
    %v1036 = vpop.permute.xlu0 %1035
    %v1038 = vmul.f32 %v1020, %v1036
    %v1039 = vxor.u32 %v1001, 2147483648
    %v1040 = vmul.f32 %v1039, 1.442695
    %v1041 = vpow.pop %v1040
    %v1042 = vadd.f32 %v1041, 1.0
    %v1043 = vrcp.pop %v1042
    %v1044 = vmul.f32 %v1042, %v1043
    %v1045 = vsub.f32 1.0, %v1044
    %v1046 = vmul.f32 %v1043, %v1045
    %v1047 = vadd.f32 %v1043, %v1046
    %vm1048 = vweird.f32 %v1042
    %vm1049 = vweird.f32 %v1043
    %vm1050 = vmor %vm1048, %vm1049
    %v1051 = vsel %vm1050, %v1043, %v1047
    %v1052 = vand.u32 2147483647, %v1042
    %vm1053 = vcmp.eq.f32.partialorder %v1052, 8.507059e+37
    %v1054 = vand.u32 %v1042, 2147483648
    %v1055 = vor.u32 1.1754944e-38, %v1054
    %v1056 = vsel %vm1053, %v1055, %v1051
    %v1057 = vmul.f32 1.0, %v1056
    %v1058 = vtanh.pop %v1001
    %v1059 = vmul.f32 %v1057, %v943
    %1061 = vrot.lane.b32.xlu0 %v1058, 96
    %v1062 = vpop.permute.xlu0 %1061
    %v1064 = vmul.f32 %v1057, %v1062
    %1066 = vrot.lane.b32.xlu0 %v1064, 16
    %v1067 = vpop.permute.xlu0 %1066
    %v1069 = vadd.f32 %v1059, %v1067
    %v1070 = vtanh.pop %v1069
    %1072 = vrot.lane.b32.xlu0 %v1070, 32
    %v1073 = vpop.permute.xlu0 %1072
    %v1075 = vmul.f32 %v1057, %v1073
    %v1076 = vsel %vm932, %v1038, 0.0
    %1078 = vrot.lane.b32.xlu0 %v1076, 80
    %v1079 = vpop.permute.xlu0 %1078
    %1081 = vst.msk [vmem:[%s938] sm:$0xf] %vm445, %v1079
    %v1082 = vsel %vm920, %v1075, 0.0
    %1084 = vrot.lane.b32.xlu0 %v1082, 32
    %v1085 = vpop.permute.xlu0 %1084
    %1087 = vst.msk [vmem:[%s926] sm:$0xf] %vm458, %v1085
    %v1088 = vsel %vm932, %v1038, %v940
    %v1089 = vsel %vm932, %v1032, %v941
    %v1090 = vsel %vm920, %v1075, %v942
    %v1091 = vsel %vm920, %v1069, %v943
    %v1092 = vld [vmem:[%s248] sm:$0xf]
    %1094 = vrot.lane.b32.xlu0 %v1088, 80
    %v1095 = vpop.permute.xlu0 %1094
    %v1096 = vsel %vm90, %v1095, 0
    %1098 = vmatpush.msra.mxu0 0.0
    %1099 = vmatpush.msra.mxu0 0.0
    %1100 = vmatpush.msra.mxu0 0.0
    %1101 = vmatpush.msra.mxu0 0.0
    %1102 = vmatpush.msra.mxu0 0.0
    %1103 = vmatpush.msra.mxu0 0.0
    %1104 = vmatpush.msra.mxu0 0.0
    %1105 = vmatpush.msra.mxu0 0.0
    %1106 = vmatpush.msra.mxu0 0.0
    %1107 = vmatpush.msra.mxu0 0.0
    %1108 = vmatpush.msra.mxu0 0.0
    %1109 = vmatpush.msra.mxu0 0.0
    %1110 = vmatpush.msra.mxu0 0.0
    %1111 = vmatpush.msra.mxu0 0.0
    %1112 = vmatpush.msra.mxu0 %v305
    %1113 = vmatpush.msra.mxu0 %v304
    %1114 = vmatmul.f32.gmra.mxu0 %v1096
    %v1115 = vpop.f32.mrf.mxu0
    %v1116 = vadd.f32 0.0, %v1115
    %1117 = vdwg.mxu0
    %v1118 = vadd.f32 %v1092, %v1116
    %v1119 = vld [vmem:[%s167] sm:$0xf]
    %1121 = vrot.lane.b32.xlu0 %v1090, 16
    %v1122 = vpop.permute.xlu0 %1121
    %v1123 = vsel %vm90, %v1122, 0
    %1125 = vmatpush.msra.mxu0 0.0
    %1126 = vmatpush.msra.mxu0 0.0
    %1127 = vmatpush.msra.mxu0 0.0
    %1128 = vmatpush.msra.mxu0 0.0
    %1129 = vmatpush.msra.mxu0 0.0
    %1130 = vmatpush.msra.mxu0 0.0
    %1131 = vmatpush.msra.mxu0 0.0
    %1132 = vmatpush.msra.mxu0 0.0
    %1133 = vmatpush.msra.mxu0 0.0
    %1134 = vmatpush.msra.mxu0 0.0
    %1135 = vmatpush.msra.mxu0 0.0
    %1136 = vmatpush.msra.mxu0 0.0
    %1137 = vmatpush.msra.mxu0 0.0
    %1138 = vmatpush.msra.mxu0 0.0
    %1139 = vmatpush.msra.mxu0 %v307
    %1140 = vmatpush.msra.mxu0 %v306
    %1141 = vmatmul.f32.gmra.mxu0 %v1123
    %v1142 = vpop.f32.mrf.mxu0
    %v1143 = vadd.f32 0.0, %v1142
    %1144 = vdwg.mxu0
    %1146 = vrot.lane.b32.xlu0 %v1143, 64
    %v1147 = vpop.permute.xlu0 %1146
    %v1149 = vadd.f32 %v1119, %v1147
    %v1150 = vxor.u32 %v1118, 2147483648
    %v1151 = vmul.f32 %v1150, 1.442695
    %v1152 = vpow.pop %v1151
    %v1153 = vadd.f32 %v1152, 1.0
    %v1154 = vrcp.pop %v1153
    %v1155 = vmul.f32 %v1153, %v1154
    %v1156 = vsub.f32 1.0, %v1155
    %v1157 = vmul.f32 %v1154, %v1156
    %v1158 = vadd.f32 %v1154, %v1157
    %vm1159 = vweird.f32 %v1153
    %vm1160 = vweird.f32 %v1154
    %vm1161 = vmor %vm1159, %vm1160
    %v1162 = vsel %vm1161, %v1154, %v1158
    %v1163 = vand.u32 2147483647, %v1153
    %vm1164 = vcmp.eq.f32.partialorder %v1163, 8.507059e+37
    %v1165 = vand.u32 %v1153, 2147483648
    %v1166 = vor.u32 1.1754944e-38, %v1165
    %v1167 = vsel %vm1164, %v1166, %v1162
    %v1168 = vmul.f32 1.0, %v1167
    %v1169 = vtanh.pop %v1118
    %v1170 = vmul.f32 %v1168, %v1089
    %1172 = vrot.lane.b32.xlu0 %v1169, 96
    %v1173 = vpop.permute.xlu0 %1172
    %v1175 = vmul.f32 %v1168, %v1173
    %1177 = vrot.lane.b32.xlu0 %v1175, 16
    %v1178 = vpop.permute.xlu0 %1177
    %v1180 = vadd.f32 %v1170, %v1178
    %v1181 = vtanh.pop %v1180
    %1183 = vrot.lane.b32.xlu0 %v1181, 32
    %v1184 = vpop.permute.xlu0 %1183
    %v1186 = vmul.f32 %v1168, %v1184
    %v1187 = vxor.u32 %v1149, 2147483648
    %v1188 = vmul.f32 %v1187, 1.442695
    %v1189 = vpow.pop %v1188
    %v1190 = vadd.f32 %v1189, 1.0
    %v1191 = vrcp.pop %v1190
    %v1192 = vmul.f32 %v1190, %v1191
    %v1193 = vsub.f32 1.0, %v1192
    %v1194 = vmul.f32 %v1191, %v1193
    %v1195 = vadd.f32 %v1191, %v1194
    %vm1196 = vweird.f32 %v1190
    %vm1197 = vweird.f32 %v1191
    %vm1198 = vmor %vm1196, %vm1197
    %v1199 = vsel %vm1198, %v1191, %v1195
    %v1200 = vand.u32 2147483647, %v1190
    %vm1201 = vcmp.eq.f32.partialorder %v1200, 8.507059e+37
    %v1202 = vand.u32 %v1190, 2147483648
    %v1203 = vor.u32 1.1754944e-38, %v1202
    %v1204 = vsel %vm1201, %v1203, %v1199
    %v1205 = vmul.f32 1.0, %v1204
    %v1206 = vtanh.pop %v1149
    %v1207 = vmul.f32 %v1205, %v1091
    %1209 = vrot.lane.b32.xlu0 %v1206, 96
    %v1210 = vpop.permute.xlu0 %1209
    %v1212 = vmul.f32 %v1205, %v1210
    %1214 = vrot.lane.b32.xlu0 %v1212, 16
    %v1215 = vpop.permute.xlu0 %1214
    %v1217 = vadd.f32 %v1207, %v1215
    %v1218 = vtanh.pop %v1217
    %1220 = vrot.lane.b32.xlu0 %v1218, 32
    %v1221 = vpop.permute.xlu0 %1220
    %v1223 = vmul.f32 %v1205, %v1221
    %v1224 = vsel %vm770, %v1186, 0.0
    %1226 = vrot.lane.b32.xlu0 %v1224, 80
    %v1227 = vpop.permute.xlu0 %1226
    %1229 = vst.msk [vmem:[%s776] sm:$0xf] %vm445, %v1227
    %v1230 = vsel %vm758, %v1223, 0.0
    %1232 = vrot.lane.b32.xlu0 %v1230, 32
    %v1233 = vpop.permute.xlu0 %1232
    %1235 = vst.msk [vmem:[%s764] sm:$0xf] %vm458, %v1233
    %v1236 = vsel %vm770, %v1186, %v1088
    %v1237 = vsel %vm770, %v1180, %v1089
    %v1238 = vsel %vm758, %v1223, %v1090
    %v1239 = vsel %vm758, %v1217, %v1091
    %v1240 = vld [vmem:[%s275] sm:$0xf]
    %1242 = vrot.lane.b32.xlu0 %v1236, 80
    %v1243 = vpop.permute.xlu0 %1242
    %v1244 = vsel %vm90, %v1243, 0
    %1246 = vmatpush.msra.mxu0 0.0
    %1247 = vmatpush.msra.mxu0 0.0
    %1248 = vmatpush.msra.mxu0 0.0
    %1249 = vmatpush.msra.mxu0 0.0
    %1250 = vmatpush.msra.mxu0 0.0
    %1251 = vmatpush.msra.mxu0 0.0
    %1252 = vmatpush.msra.mxu0 0.0
    %1253 = vmatpush.msra.mxu0 0.0
    %1254 = vmatpush.msra.mxu0 0.0
    %1255 = vmatpush.msra.mxu0 0.0
    %1256 = vmatpush.msra.mxu0 0.0
    %1257 = vmatpush.msra.mxu0 0.0
    %1258 = vmatpush.msra.mxu0 0.0
    %1259 = vmatpush.msra.mxu0 0.0
    %1260 = vmatpush.msra.mxu0 %v305
    %1261 = vmatpush.msra.mxu0 %v304
    %1262 = vmatmul.f32.gmra.mxu0 %v1244
    %v1263 = vpop.f32.mrf.mxu0
    %v1264 = vadd.f32 0.0, %v1263
    %1265 = vdwg.mxu0
    %v1266 = vadd.f32 %v1240, %v1264
    %v1267 = vld [vmem:[%s140] sm:$0xf]
    %1269 = vrot.lane.b32.xlu0 %v1238, 16
    %v1270 = vpop.permute.xlu0 %1269
    %v1271 = vsel %vm90, %v1270, 0
    %1273 = vmatpush.msra.mxu0 0.0
    %1274 = vmatpush.msra.mxu0 0.0
    %1275 = vmatpush.msra.mxu0 0.0
    %1276 = vmatpush.msra.mxu0 0.0
    %1277 = vmatpush.msra.mxu0 0.0
    %1278 = vmatpush.msra.mxu0 0.0
    %1279 = vmatpush.msra.mxu0 0.0
    %1280 = vmatpush.msra.mxu0 0.0
    %1281 = vmatpush.msra.mxu0 0.0
    %1282 = vmatpush.msra.mxu0 0.0
    %1283 = vmatpush.msra.mxu0 0.0
    %1284 = vmatpush.msra.mxu0 0.0
    %1285 = vmatpush.msra.mxu0 0.0
    %1286 = vmatpush.msra.mxu0 0.0
    %1287 = vmatpush.msra.mxu0 %v307
    %1288 = vmatpush.msra.mxu0 %v306
    %1289 = vmatmul.f32.gmra.mxu0 %v1271
    %v1290 = vpop.f32.mrf.mxu0
    %v1291 = vadd.f32 0.0, %v1290
    %1292 = vdwg.mxu0
    %1294 = vrot.lane.b32.xlu0 %v1291, 64
    %v1295 = vpop.permute.xlu0 %1294
    %v1297 = vadd.f32 %v1267, %v1295
    %v1298 = vxor.u32 %v1266, 2147483648
    %v1299 = vmul.f32 %v1298, 1.442695
    %v1300 = vpow.pop %v1299
    %v1301 = vadd.f32 %v1300, 1.0
    %v1302 = vrcp.pop %v1301
    %v1303 = vmul.f32 %v1301, %v1302
    %v1304 = vsub.f32 1.0, %v1303
    %v1305 = vmul.f32 %v1302, %v1304
    %v1306 = vadd.f32 %v1302, %v1305
    %vm1307 = vweird.f32 %v1301
    %vm1308 = vweird.f32 %v1302
    %vm1309 = vmor %vm1307, %vm1308
    %v1310 = vsel %vm1309, %v1302, %v1306
    %v1311 = vand.u32 2147483647, %v1301
    %vm1312 = vcmp.eq.f32.partialorder %v1311, 8.507059e+37
    %v1313 = vand.u32 %v1301, 2147483648
    %v1314 = vor.u32 1.1754944e-38, %v1313
    %v1315 = vsel %vm1312, %v1314, %v1310
    %v1316 = vmul.f32 1.0, %v1315
    %v1317 = vtanh.pop %v1266
    %v1318 = vmul.f32 %v1316, %v1237
    %1320 = vrot.lane.b32.xlu0 %v1317, 96
    %v1321 = vpop.permute.xlu0 %1320
    %v1323 = vmul.f32 %v1316, %v1321
    %1325 = vrot.lane.b32.xlu0 %v1323, 16
    %v1326 = vpop.permute.xlu0 %1325
    %v1328 = vadd.f32 %v1318, %v1326
    %v1329 = vtanh.pop %v1328
    %1331 = vrot.lane.b32.xlu0 %v1329, 32
    %v1332 = vpop.permute.xlu0 %1331
    %v1334 = vmul.f32 %v1316, %v1332
    %v1335 = vxor.u32 %v1297, 2147483648
    %v1336 = vmul.f32 %v1335, 1.442695
    %v1337 = vpow.pop %v1336
    %v1338 = vadd.f32 %v1337, 1.0
    %v1339 = vrcp.pop %v1338
    %v1340 = vmul.f32 %v1338, %v1339
    %v1341 = vsub.f32 1.0, %v1340
    %v1342 = vmul.f32 %v1339, %v1341
    %v1343 = vadd.f32 %v1339, %v1342
    %vm1344 = vweird.f32 %v1338
    %vm1345 = vweird.f32 %v1339
    %vm1346 = vmor %vm1344, %vm1345
    %v1347 = vsel %vm1346, %v1339, %v1343
    %v1348 = vand.u32 2147483647, %v1338
    %vm1349 = vcmp.eq.f32.partialorder %v1348, 8.507059e+37
    %v1350 = vand.u32 %v1338, 2147483648
    %v1351 = vor.u32 1.1754944e-38, %v1350
    %v1352 = vsel %vm1349, %v1351, %v1347
    %v1353 = vmul.f32 1.0, %v1352
    %v1354 = vtanh.pop %v1297
    %v1355 = vmul.f32 %v1353, %v1239
    %1357 = vrot.lane.b32.xlu0 %v1354, 96
    %v1358 = vpop.permute.xlu0 %1357
    %v1360 = vmul.f32 %v1353, %v1358
    %1362 = vrot.lane.b32.xlu0 %v1360, 16
    %v1363 = vpop.permute.xlu0 %1362
    %v1365 = vadd.f32 %v1355, %v1363
    %v1366 = vtanh.pop %v1365
    %1368 = vrot.lane.b32.xlu0 %v1366, 32
    %v1369 = vpop.permute.xlu0 %1368
    %v1371 = vmul.f32 %v1353, %v1369
    %v1372 = vsel %vm608, %v1334, 0.0
    %1374 = vrot.lane.b32.xlu0 %v1372, 80
    %v1375 = vpop.permute.xlu0 %1374
    %1377 = vst.msk [vmem:[%s614] sm:$0xf] %vm445, %v1375
    %v1378 = vsel %vm596, %v1371, 0.0
    %1380 = vrot.lane.b32.xlu0 %v1378, 32
    %v1381 = vpop.permute.xlu0 %1380
    %1383 = vst.msk [vmem:[%s602] sm:$0xf] %vm458, %v1381
    %v1384 = vsel %vm608, %v1334, %v1236
    %v1385 = vsel %vm608, %v1328, %v1237
    %v1386 = vsel %vm596, %v1371, %v1238
    %v1387 = vsel %vm596, %v1365, %v1239
    %v1388 = vld [vmem:[%s302] sm:$0xf]
    %1390 = vrot.lane.b32.xlu0 %v1384, 80
    %v1391 = vpop.permute.xlu0 %1390
    %v1392 = vsel %vm90, %v1391, 0
    %1394 = vmatpush.msra.mxu0 0.0
    %1395 = vmatpush.msra.mxu0 0.0
    %1396 = vmatpush.msra.mxu0 0.0
    %1397 = vmatpush.msra.mxu0 0.0
    %1398 = vmatpush.msra.mxu0 0.0
    %1399 = vmatpush.msra.mxu0 0.0
    %1400 = vmatpush.msra.mxu0 0.0
    %1401 = vmatpush.msra.mxu0 0.0
    %1402 = vmatpush.msra.mxu0 0.0
    %1403 = vmatpush.msra.mxu0 0.0
    %1404 = vmatpush.msra.mxu0 0.0
    %1405 = vmatpush.msra.mxu0 0.0
    %1406 = vmatpush.msra.mxu0 0.0
    %1407 = vmatpush.msra.mxu0 0.0
    %1408 = vmatpush.msra.mxu0 %v305
    %1409 = vmatpush.msra.mxu0 %v304
    %1410 = vmatmul.f32.gmra.mxu0 %v1392
    %v1411 = vpop.f32.mrf.mxu0
    %v1412 = vadd.f32 0.0, %v1411
    %1413 = vdwg.mxu0
    %v1414 = vadd.f32 %v1388, %v1412
    %v1415 = vld [vmem:[#allocation2] sm:$0xf]
    %1417 = vrot.lane.b32.xlu0 %v1386, 16
    %v1418 = vpop.permute.xlu0 %1417
    %v1419 = vsel %vm90, %v1418, 0
    %1421 = vmatpush.msra.mxu0 0.0
    %1422 = vmatpush.msra.mxu0 0.0
    %1423 = vmatpush.msra.mxu0 0.0
    %1424 = vmatpush.msra.mxu0 0.0
    %1425 = vmatpush.msra.mxu0 0.0
    %1426 = vmatpush.msra.mxu0 0.0
    %1427 = vmatpush.msra.mxu0 0.0
    %1428 = vmatpush.msra.mxu0 0.0
    %1429 = vmatpush.msra.mxu0 0.0
    %1430 = vmatpush.msra.mxu0 0.0
    %1431 = vmatpush.msra.mxu0 0.0
    %1432 = vmatpush.msra.mxu0 0.0
    %1433 = vmatpush.msra.mxu0 0.0
    %1434 = vmatpush.msra.mxu0 0.0
    %1435 = vmatpush.msra.mxu0 %v307
    %1436 = vmatpush.msra.mxu0 %v306
    %1437 = vmatmul.f32.gmra.mxu0 %v1419
    %v1438 = vpop.f32.mrf.mxu0
    %v1439 = vadd.f32 0.0, %v1438
    %1440 = vdwg.mxu0
    %1442 = vrot.lane.b32.xlu0 %v1439, 64
    %v1443 = vpop.permute.xlu0 %1442
    %v1445 = vadd.f32 %v1415, %v1443
    %v1446 = vxor.u32 %v1414, 2147483648
    %v1447 = vmul.f32 %v1446, 1.442695
    %v1448 = vpow.pop %v1447
    %v1449 = vadd.f32 %v1448, 1.0
    %v1450 = vrcp.pop %v1449
    %v1451 = vmul.f32 %v1449, %v1450
    %v1452 = vsub.f32 1.0, %v1451
    %v1453 = vmul.f32 %v1450, %v1452
    %v1454 = vadd.f32 %v1450, %v1453
    %vm1455 = vweird.f32 %v1449
    %vm1456 = vweird.f32 %v1450
    %vm1457 = vmor %vm1455, %vm1456
    %v1458 = vsel %vm1457, %v1450, %v1454
    %v1459 = vand.u32 2147483647, %v1449
    %vm1460 = vcmp.eq.f32.partialorder %v1459, 8.507059e+37
    %v1461 = vand.u32 %v1449, 2147483648
    %v1462 = vor.u32 1.1754944e-38, %v1461
    %v1463 = vsel %vm1460, %v1462, %v1458
    %v1464 = vmul.f32 1.0, %v1463
    %v1465 = vtanh.pop %v1414
    %v1466 = vmul.f32 %v1464, %v1385
    %1468 = vrot.lane.b32.xlu0 %v1465, 96
    %v1469 = vpop.permute.xlu0 %1468
    %v1471 = vmul.f32 %v1464, %v1469
    %1473 = vrot.lane.b32.xlu0 %v1471, 16
    %v1474 = vpop.permute.xlu0 %1473
    %v1476 = vadd.f32 %v1466, %v1474
    %v1477 = vtanh.pop %v1476
    %1479 = vrot.lane.b32.xlu0 %v1477, 32
    %v1480 = vpop.permute.xlu0 %1479
    %v1482 = vmul.f32 %v1464, %v1480
    %v1483 = vxor.u32 %v1445, 2147483648
    %v1484 = vmul.f32 %v1483, 1.442695
    %v1485 = vpow.pop %v1484
    %v1486 = vadd.f32 %v1485, 1.0
    %v1487 = vrcp.pop %v1486
    %v1488 = vmul.f32 %v1486, %v1487
    %v1489 = vsub.f32 1.0, %v1488
    %v1490 = vmul.f32 %v1487, %v1489
    %v1491 = vadd.f32 %v1487, %v1490
    %vm1492 = vweird.f32 %v1486
    %vm1493 = vweird.f32 %v1487
    %vm1494 = vmor %vm1492, %vm1493
    %v1495 = vsel %vm1494, %v1487, %v1491
    %v1496 = vand.u32 2147483647, %v1486
    %vm1497 = vcmp.eq.f32.partialorder %v1496, 8.507059e+37
    %v1498 = vand.u32 %v1486, 2147483648
    %v1499 = vor.u32 1.1754944e-38, %v1498
    %v1500 = vsel %vm1497, %v1499, %v1495
    %v1501 = vmul.f32 1.0, %v1500
    %v1502 = vtanh.pop %v1445
    %v1503 = vmul.f32 %v1501, %v1387
    %1505 = vrot.lane.b32.xlu0 %v1502, 96
    %v1506 = vpop.permute.xlu0 %1505
    %v1508 = vmul.f32 %v1501, %v1506
    %1510 = vrot.lane.b32.xlu0 %v1508, 16
    %v1511 = vpop.permute.xlu0 %1510
    %v1513 = vadd.f32 %v1503, %v1511
    %v1514 = vtanh.pop %v1513
    %1516 = vrot.lane.b32.xlu0 %v1514, 32
    %v1517 = vpop.permute.xlu0 %1516
    %v1519 = vmul.f32 %v1501, %v1517
    %v1520 = vsel %vm451, %v1482, 0.0
    %1522 = vrot.lane.b32.xlu0 %v1520, 80
    %v1523 = vpop.permute.xlu0 %1522
    %1525 = vst.msk [vmem:[%s457] sm:$0xf] %vm445, %v1523
    %v1526 = vsel %vm439, %v1519, 0.0
    %1528 = vrot.lane.b32.xlu0 %v1526, 32
    %v1529 = vpop.permute.xlu0 %1528
    %1531 = vst.msk [vmem:[#allocation3] sm:$0xf] %vm458, %v1529
    %v1532 = vld [vmem:[%s6] sm:$0xff]
    %v1533 = vld [vmem:[%s6 + $0x8] sm:$0xff]
    %v1534 = vld [vmem:[%s6 + $0x10] sm:$0xff]
    %v1535 = vld [vmem:[%s6 + $0x18] sm:$0xff]
    %v1536 = vld [vmem:[%s9] sm:$0x1]
    %v1537 = vld [vmem:[#allocation3] sm:$0xf]
    %v1539 = vperm.slane %v1536, 0
    %vm1541 = vcmask 261120
    %v1543 = vsel %vm1541, %v1537, 0
    %1545 = vmatpush.msra.mxu0 0.0
    %1546 = vmatpush.msra.mxu0 0.0
    %1547 = vmatpush.msra.mxu0 0.0
    %1548 = vmatpush.msra.mxu0 0.0
    %1549 = vmatpush.msra.mxu0 0.0
    %1550 = vmatpush.msra.mxu0 0.0
    %1551 = vmatpush.msra.mxu0 0.0
    %1552 = vmatpush.msra.mxu0 0.0
    %1553 = vmatpush.msra.mxu0 0.0
    %1554 = vmatpush.msra.mxu0 0.0
    %1555 = vmatpush.msra.mxu0 0.0
    %1556 = vmatpush.msra.mxu0 0.0
    %1557 = vmatpush.msra.mxu0 %v1535
    %1558 = vmatpush.msra.mxu0 %v1534
    %1559 = vmatpush.msra.mxu0 %v1533
    %1560 = vmatpush.msra.mxu0 %v1532
    %1561 = vmatmul.f32.gmra.mxu0 %v1543
    %v1562 = vpop.f32.mrf.mxu0
    %v1563 = vadd.f32 %v1539, %v1562
    %1564 = vdwg.mxu0
    %1565 = vst [vmem:[#allocation2] sm:$0xf] %v1563
    %v1566 = vld [vmem:[%s602] sm:$0xf]
    %v1568 = vsel %vm1541, %v1566, 0
    %1570 = vmatpush.msra.mxu0 0.0
    %1571 = vmatpush.msra.mxu0 0.0
    %1572 = vmatpush.msra.mxu0 0.0
    %1573 = vmatpush.msra.mxu0 0.0
    %1574 = vmatpush.msra.mxu0 0.0
    %1575 = vmatpush.msra.mxu0 0.0
    %1576 = vmatpush.msra.mxu0 0.0
    %1577 = vmatpush.msra.mxu0 0.0
    %1578 = vmatpush.msra.mxu0 0.0
    %1579 = vmatpush.msra.mxu0 0.0
    %1580 = vmatpush.msra.mxu0 0.0
    %1581 = vmatpush.msra.mxu0 0.0
    %1582 = vmatpush.msra.mxu0 %v1535
    %1583 = vmatpush.msra.mxu0 %v1534
    %1584 = vmatpush.msra.mxu0 %v1533
    %1585 = vmatpush.msra.mxu0 %v1532
    %1586 = vmatmul.f32.gmra.mxu0 %v1568
    %v1587 = vpop.f32.mrf.mxu0
    %v1588 = vadd.f32 %v1539, %v1587
    %1589 = vdwg.mxu0
    %1590 = vst [vmem:[%s140] sm:$0xf] %v1588
    %v1591 = vld [vmem:[%s764] sm:$0xf]
    %v1593 = vsel %vm1541, %v1591, 0
    %1595 = vmatpush.msra.mxu0 0.0
    %1596 = vmatpush.msra.mxu0 0.0
    %1597 = vmatpush.msra.mxu0 0.0
    %1598 = vmatpush.msra.mxu0 0.0
    %1599 = vmatpush.msra.mxu0 0.0
    %1600 = vmatpush.msra.mxu0 0.0
    %1601 = vmatpush.msra.mxu0 0.0
    %1602 = vmatpush.msra.mxu0 0.0
    %1603 = vmatpush.msra.mxu0 0.0
    %1604 = vmatpush.msra.mxu0 0.0
    %1605 = vmatpush.msra.mxu0 0.0
    %1606 = vmatpush.msra.mxu0 0.0
    %1607 = vmatpush.msra.mxu0 %v1535
    %1608 = vmatpush.msra.mxu0 %v1534
    %1609 = vmatpush.msra.mxu0 %v1533
    %1610 = vmatpush.msra.mxu0 %v1532
    %1611 = vmatmul.f32.gmra.mxu0 %v1593
    %v1612 = vpop.f32.mrf.mxu0
    %v1613 = vadd.f32 %v1539, %v1612
    %1614 = vdwg.mxu0
    %1615 = vst [vmem:[%s167] sm:$0xf] %v1613
    %v1616 = vld [vmem:[%s926] sm:$0xf]
    %v1618 = vsel %vm1541, %v1616, 0
    %1620 = vmatpush.msra.mxu0 0.0
    %1621 = vmatpush.msra.mxu0 0.0
    %1622 = vmatpush.msra.mxu0 0.0
    %1623 = vmatpush.msra.mxu0 0.0
    %1624 = vmatpush.msra.mxu0 0.0
    %1625 = vmatpush.msra.mxu0 0.0
    %1626 = vmatpush.msra.mxu0 0.0
    %1627 = vmatpush.msra.mxu0 0.0
    %1628 = vmatpush.msra.mxu0 0.0
    %1629 = vmatpush.msra.mxu0 0.0
    %1630 = vmatpush.msra.mxu0 0.0
    %1631 = vmatpush.msra.mxu0 0.0
    %1632 = vmatpush.msra.mxu0 %v1535
    %1633 = vmatpush.msra.mxu0 %v1534
    %1634 = vmatpush.msra.mxu0 %v1533
    %1635 = vmatpush.msra.mxu0 %v1532
    %1636 = vmatmul.f32.gmra.mxu0 %v1618
    %v1637 = vpop.f32.mrf.mxu0
    %v1638 = vadd.f32 %v1539, %v1637
    %1639 = vdwg.mxu0
    %1640 = vst [vmem:[%s194] sm:$0xf] %v1638
    %v1641 = vld [vmem:[%s938] sm:$0xf]
    %v1643 = vsel %vm1541, %v1641, 0
    %1645 = vmatpush.msra.mxu0 0.0
    %1646 = vmatpush.msra.mxu0 0.0
    %1647 = vmatpush.msra.mxu0 0.0
    %1648 = vmatpush.msra.mxu0 0.0
    %1649 = vmatpush.msra.mxu0 0.0
    %1650 = vmatpush.msra.mxu0 0.0
    %1651 = vmatpush.msra.mxu0 0.0
    %1652 = vmatpush.msra.mxu0 0.0
    %1653 = vmatpush.msra.mxu0 0.0
    %1654 = vmatpush.msra.mxu0 0.0
    %1655 = vmatpush.msra.mxu0 0.0
    %1656 = vmatpush.msra.mxu0 0.0
    %1657 = vmatpush.msra.mxu0 %v1535
    %1658 = vmatpush.msra.mxu0 %v1534
    %1659 = vmatpush.msra.mxu0 %v1533
    %1660 = vmatpush.msra.mxu0 %v1532
    %1661 = vmatmul.f32.gmra.mxu0 %v1643
    %v1662 = vpop.f32.mrf.mxu0
    %v1663 = vadd.f32 %v1539, %v1662
    %1664 = vdwg.mxu0
    %1665 = vst [vmem:[%s221] sm:$0xf] %v1663
    %v1666 = vld [vmem:[%s776] sm:$0xf]
    %v1668 = vsel %vm1541, %v1666, 0
    %1670 = vmatpush.msra.mxu0 0.0
    %1671 = vmatpush.msra.mxu0 0.0
    %1672 = vmatpush.msra.mxu0 0.0
    %1673 = vmatpush.msra.mxu0 0.0
    %1674 = vmatpush.msra.mxu0 0.0
    %1675 = vmatpush.msra.mxu0 0.0
    %1676 = vmatpush.msra.mxu0 0.0
    %1677 = vmatpush.msra.mxu0 0.0
    %1678 = vmatpush.msra.mxu0 0.0
    %1679 = vmatpush.msra.mxu0 0.0
    %1680 = vmatpush.msra.mxu0 0.0
    %1681 = vmatpush.msra.mxu0 0.0
    %1682 = vmatpush.msra.mxu0 %v1535
    %1683 = vmatpush.msra.mxu0 %v1534
    %1684 = vmatpush.msra.mxu0 %v1533
    %1685 = vmatpush.msra.mxu0 %v1532
    %1686 = vmatmul.f32.gmra.mxu0 %v1668
    %v1687 = vpop.f32.mrf.mxu0
    %v1688 = vadd.f32 %v1539, %v1687
    %1689 = vdwg.mxu0
    %1690 = vst [vmem:[%s248] sm:$0xf] %v1688
    %v1691 = vld [vmem:[%s614] sm:$0xf]
    %v1693 = vsel %vm1541, %v1691, 0
    %1695 = vmatpush.msra.mxu0 0.0
    %1696 = vmatpush.msra.mxu0 0.0
    %1697 = vmatpush.msra.mxu0 0.0
    %1698 = vmatpush.msra.mxu0 0.0
    %1699 = vmatpush.msra.mxu0 0.0
    %1700 = vmatpush.msra.mxu0 0.0
    %1701 = vmatpush.msra.mxu0 0.0
    %1702 = vmatpush.msra.mxu0 0.0
    %1703 = vmatpush.msra.mxu0 0.0
    %1704 = vmatpush.msra.mxu0 0.0
    %1705 = vmatpush.msra.mxu0 0.0
    %1706 = vmatpush.msra.mxu0 0.0
    %1707 = vmatpush.msra.mxu0 %v1535
    %1708 = vmatpush.msra.mxu0 %v1534
    %1709 = vmatpush.msra.mxu0 %v1533
    %1710 = vmatpush.msra.mxu0 %v1532
    %1711 = vmatmul.f32.gmra.mxu0 %v1693
    %v1712 = vpop.f32.mrf.mxu0
    %v1713 = vadd.f32 %v1539, %v1712
    %1714 = vdwg.mxu0
    %1715 = vst [vmem:[%s275] sm:$0xf] %v1713
    %v1716 = vld [vmem:[%s457] sm:$0xf]
    %v1718 = vsel %vm1541, %v1716, 0
    %1720 = vmatpush.msra.mxu0 0.0
    %1721 = vmatpush.msra.mxu0 0.0
    %1722 = vmatpush.msra.mxu0 0.0
    %1723 = vmatpush.msra.mxu0 0.0
    %1724 = vmatpush.msra.mxu0 0.0
    %1725 = vmatpush.msra.mxu0 0.0
    %1726 = vmatpush.msra.mxu0 0.0
    %1727 = vmatpush.msra.mxu0 0.0
    %1728 = vmatpush.msra.mxu0 0.0
    %1729 = vmatpush.msra.mxu0 0.0
    %1730 = vmatpush.msra.mxu0 0.0
    %1731 = vmatpush.msra.mxu0 0.0
    %1732 = vmatpush.msra.mxu0 %v1535
    %1733 = vmatpush.msra.mxu0 %v1534
    %1734 = vmatpush.msra.mxu0 %v1533
    %1735 = vmatpush.msra.mxu0 %v1532
    %1736 = vmatmul.f32.gmra.mxu0 %v1718
    %v1737 = vpop.f32.mrf.mxu0
    %v1738 = vadd.f32 %v1539, %v1737
    %1739 = vdwg.mxu0
    %1740 = vst [vmem:[%s302] sm:$0xf] %v1738
    %v1741 = vld [vmem:[#allocation6] sm:$0xff]
    %v1742 = vld [vmem:[#allocation6 + $0x8] sm:$0xff]
    %v1743 = vld [vmem:[#allocation8] sm:$0xff]
    %v1744 = vld [vmem:[#allocation8 + $0x8] sm:$0xff]
    %v1745 = vld [vmem:[#allocation2] sm:$0xf]
    %1746 = vmatpush.msra.mxu0 0.0
    %1747 = vmatpush.msra.mxu0 0.0
    %1748 = vmatpush.msra.mxu0 0.0
    %1749 = vmatpush.msra.mxu0 0.0
    %1750 = vmatpush.msra.mxu0 0.0
    %1751 = vmatpush.msra.mxu0 0.0
    %1752 = vmatpush.msra.mxu0 0.0
    %1753 = vmatpush.msra.mxu0 0.0
    %1754 = vmatpush.msra.mxu0 0.0
    %1755 = vmatpush.msra.mxu0 0.0
    %1756 = vmatpush.msra.mxu0 0.0
    %1757 = vmatpush.msra.mxu0 0.0
    %1758 = vmatpush.msra.mxu0 0.0
    %1759 = vmatpush.msra.mxu0 0.0
    %1760 = vmatpush.msra.mxu0 %v1742
    %1761 = vmatpush.msra.mxu0 %v1741
    %1762 = vmatmul.f32.gmra.mxu0 %v310
    %v1763 = vpop.f32.mrf.mxu0
    %v1764 = vadd.f32 0.0, %v1763
    %1765 = vdwg.mxu0
    %v1766 = vadd.f32 %v1745, %v1764
    %v1767 = vld [vmem:[%s302] sm:$0xf]
    %1768 = vmatpush.msra.mxu0 0.0
    %1769 = vmatpush.msra.mxu0 0.0
    %1770 = vmatpush.msra.mxu0 0.0
    %1771 = vmatpush.msra.mxu0 0.0
    %1772 = vmatpush.msra.mxu0 0.0
    %1773 = vmatpush.msra.mxu0 0.0
    %1774 = vmatpush.msra.mxu0 0.0
    %1775 = vmatpush.msra.mxu0 0.0
    %1776 = vmatpush.msra.mxu0 0.0
    %1777 = vmatpush.msra.mxu0 0.0
    %1778 = vmatpush.msra.mxu0 0.0
    %1779 = vmatpush.msra.mxu0 0.0
    %1780 = vmatpush.msra.mxu0 0.0
    %1781 = vmatpush.msra.mxu0 0.0
    %1782 = vmatpush.msra.mxu0 %v1744
    %1783 = vmatpush.msra.mxu0 %v1743
    %1784 = vmatmul.f32.gmra.mxu0 %v310
    %v1785 = vpop.f32.mrf.mxu0
    %v1786 = vadd.f32 0.0, %v1785
    %1787 = vdwg.mxu0
    %1789 = vrot.lane.b32.xlu0 %v1786, 64
    %v1790 = vpop.permute.xlu0 %1789
    %v1792 = vadd.f32 %v1767, %v1790
    %v1793 = vxor.u32 %v1766, 2147483648
    %v1794 = vmul.f32 %v1793, 1.442695
    %v1795 = vpow.pop %v1794
    %v1796 = vadd.f32 %v1795, 1.0
    %v1797 = vrcp.pop %v1796
    %v1798 = vmul.f32 %v1796, %v1797
    %v1799 = vsub.f32 1.0, %v1798
    %v1800 = vmul.f32 %v1797, %v1799
    %v1801 = vadd.f32 %v1797, %v1800
    %vm1802 = vweird.f32 %v1796
    %vm1803 = vweird.f32 %v1797
    %vm1804 = vmor %vm1802, %vm1803
    %v1805 = vsel %vm1804, %v1797, %v1801
    %v1806 = vand.u32 2147483647, %v1796
    %vm1807 = vcmp.eq.f32.partialorder %v1806, 8.507059e+37
    %v1808 = vand.u32 %v1796, 2147483648
    %v1809 = vor.u32 1.1754944e-38, %v1808
    %v1810 = vsel %vm1807, %v1809, %v1805
    %v1811 = vmul.f32 1.0, %v1810
    %v1812 = vtanh.pop %v1766
    %v1813 = vmul.f32 %v1811, 0.0
    %1815 = vrot.lane.b32.xlu0 %v1812, 96
    %v1816 = vpop.permute.xlu0 %1815
    %v1818 = vmul.f32 %v1811, %v1816
    %1820 = vrot.lane.b32.xlu0 %v1818, 16
    %v1821 = vpop.permute.xlu0 %1820
    %v1823 = vadd.f32 %v1813, %v1821
    %v1824 = vtanh.pop %v1823
    %1826 = vrot.lane.b32.xlu0 %v1824, 32
    %v1827 = vpop.permute.xlu0 %1826
    %v1829 = vmul.f32 %v1811, %v1827
    %v1830 = vxor.u32 %v1792, 2147483648
    %v1831 = vmul.f32 %v1830, 1.442695
    %v1832 = vpow.pop %v1831
    %v1833 = vadd.f32 %v1832, 1.0
    %v1834 = vrcp.pop %v1833
    %v1835 = vmul.f32 %v1833, %v1834
    %v1836 = vsub.f32 1.0, %v1835
    %v1837 = vmul.f32 %v1834, %v1836
    %v1838 = vadd.f32 %v1834, %v1837
    %vm1839 = vweird.f32 %v1833
    %vm1840 = vweird.f32 %v1834
    %vm1841 = vmor %vm1839, %vm1840
    %v1842 = vsel %vm1841, %v1834, %v1838
    %v1843 = vand.u32 2147483647, %v1833
    %vm1844 = vcmp.eq.f32.partialorder %v1843, 8.507059e+37
    %v1845 = vand.u32 %v1833, 2147483648
    %v1846 = vor.u32 1.1754944e-38, %v1845
    %v1847 = vsel %vm1844, %v1846, %v1842
    %v1848 = vmul.f32 1.0, %v1847
    %v1849 = vtanh.pop %v1792
    %v1850 = vmul.f32 %v1848, 0.0
    %1852 = vrot.lane.b32.xlu0 %v1849, 96
    %v1853 = vpop.permute.xlu0 %1852
    %v1855 = vmul.f32 %v1848, %v1853
    %1857 = vrot.lane.b32.xlu0 %v1855, 16
    %v1858 = vpop.permute.xlu0 %1857
    %v1860 = vadd.f32 %v1850, %v1858
    %v1861 = vtanh.pop %v1860
    %1863 = vrot.lane.b32.xlu0 %v1861, 32
    %v1864 = vpop.permute.xlu0 %1863
    %v1866 = vmul.f32 %v1848, %v1864
    %v1867 = vsel %vm439, %v1829, 0.0
    %1869 = vrot.lane.b32.xlu0 %v1867, 80
    %v1870 = vpop.permute.xlu0 %1869
    %1872 = vst.msk [vmem:[%s10] sm:$0xf] %vm445, %v1870
    %v1873 = vsel %vm451, %v1866, 0.0
    %1875 = vrot.lane.b32.xlu0 %v1873, 32
    %v1876 = vpop.permute.xlu0 %1875
    %s1878 = scalar_lea.vmem %s10, 28
    %1879 = vst.msk [vmem:[%s1878] sm:$0xf] %vm458, %v1876
    %v1880 = vsel %vm439, %v1823, 0.0
    %v1881 = vsel %vm451, %v1860, 0.0
    %v1882 = vld [vmem:[%s140] sm:$0xf]
    %v1883 = vsel %vm90, %v1870, 0
    %1885 = vmatpush.msra.mxu0 0.0
    %1886 = vmatpush.msra.mxu0 0.0
    %1887 = vmatpush.msra.mxu0 0.0
    %1888 = vmatpush.msra.mxu0 0.0
    %1889 = vmatpush.msra.mxu0 0.0
    %1890 = vmatpush.msra.mxu0 0.0
    %1891 = vmatpush.msra.mxu0 0.0
    %1892 = vmatpush.msra.mxu0 0.0
    %1893 = vmatpush.msra.mxu0 0.0
    %1894 = vmatpush.msra.mxu0 0.0
    %1895 = vmatpush.msra.mxu0 0.0
    %1896 = vmatpush.msra.mxu0 0.0
    %1897 = vmatpush.msra.mxu0 0.0
    %1898 = vmatpush.msra.mxu0 0.0
    %1899 = vmatpush.msra.mxu0 %v1742
    %1900 = vmatpush.msra.mxu0 %v1741
    %1901 = vmatmul.f32.gmra.mxu0 %v1883
    %v1902 = vpop.f32.mrf.mxu0
    %v1903 = vadd.f32 0.0, %v1902
    %1904 = vdwg.mxu0
    %v1905 = vadd.f32 %v1882, %v1903
    %v1906 = vld [vmem:[%s275] sm:$0xf]
    %1907 = vrot.lane.b32.xlu0 %v1873, 16
    %v1908 = vpop.permute.xlu0 %1907
    %v1909 = vsel %vm90, %v1908, 0
    %1911 = vmatpush.msra.mxu0 0.0
    %1912 = vmatpush.msra.mxu0 0.0
    %1913 = vmatpush.msra.mxu0 0.0
    %1914 = vmatpush.msra.mxu0 0.0
    %1915 = vmatpush.msra.mxu0 0.0
    %1916 = vmatpush.msra.mxu0 0.0
    %1917 = vmatpush.msra.mxu0 0.0
    %1918 = vmatpush.msra.mxu0 0.0
    %1919 = vmatpush.msra.mxu0 0.0
    %1920 = vmatpush.msra.mxu0 0.0
    %1921 = vmatpush.msra.mxu0 0.0
    %1922 = vmatpush.msra.mxu0 0.0
    %1923 = vmatpush.msra.mxu0 0.0
    %1924 = vmatpush.msra.mxu0 0.0
    %1925 = vmatpush.msra.mxu0 %v1744
    %1926 = vmatpush.msra.mxu0 %v1743
    %1927 = vmatmul.f32.gmra.mxu0 %v1909
    %v1928 = vpop.f32.mrf.mxu0
    %v1929 = vadd.f32 0.0, %v1928
    %1930 = vdwg.mxu0
    %1932 = vrot.lane.b32.xlu0 %v1929, 64
    %v1933 = vpop.permute.xlu0 %1932
    %v1935 = vadd.f32 %v1906, %v1933
    %v1936 = vxor.u32 %v1905, 2147483648
    %v1937 = vmul.f32 %v1936, 1.442695
    %v1938 = vpow.pop %v1937
    %v1939 = vadd.f32 %v1938, 1.0
    %v1940 = vrcp.pop %v1939
    %v1941 = vmul.f32 %v1939, %v1940
    %v1942 = vsub.f32 1.0, %v1941
    %v1943 = vmul.f32 %v1940, %v1942
    %v1944 = vadd.f32 %v1940, %v1943
    %vm1945 = vweird.f32 %v1939
    %vm1946 = vweird.f32 %v1940
    %vm1947 = vmor %vm1945, %vm1946
    %v1948 = vsel %vm1947, %v1940, %v1944
    %v1949 = vand.u32 2147483647, %v1939
    %vm1950 = vcmp.eq.f32.partialorder %v1949, 8.507059e+37
    %v1951 = vand.u32 %v1939, 2147483648
    %v1952 = vor.u32 1.1754944e-38, %v1951
    %v1953 = vsel %vm1950, %v1952, %v1948
    %v1954 = vmul.f32 1.0, %v1953
    %v1955 = vtanh.pop %v1905
    %v1956 = vmul.f32 %v1954, %v1880
    %1958 = vrot.lane.b32.xlu0 %v1955, 96
    %v1959 = vpop.permute.xlu0 %1958
    %v1961 = vmul.f32 %v1954, %v1959
    %1963 = vrot.lane.b32.xlu0 %v1961, 16
    %v1964 = vpop.permute.xlu0 %1963
    %v1966 = vadd.f32 %v1956, %v1964
    %v1967 = vtanh.pop %v1966
    %1969 = vrot.lane.b32.xlu0 %v1967, 32
    %v1970 = vpop.permute.xlu0 %1969
    %v1972 = vmul.f32 %v1954, %v1970
    %v1973 = vxor.u32 %v1935, 2147483648
    %v1974 = vmul.f32 %v1973, 1.442695
    %v1975 = vpow.pop %v1974
    %v1976 = vadd.f32 %v1975, 1.0
    %v1977 = vrcp.pop %v1976
    %v1978 = vmul.f32 %v1976, %v1977
    %v1979 = vsub.f32 1.0, %v1978
    %v1980 = vmul.f32 %v1977, %v1979
    %v1981 = vadd.f32 %v1977, %v1980
    %vm1982 = vweird.f32 %v1976
    %vm1983 = vweird.f32 %v1977
    %vm1984 = vmor %vm1982, %vm1983
    %v1985 = vsel %vm1984, %v1977, %v1981
    %v1986 = vand.u32 2147483647, %v1976
    %vm1987 = vcmp.eq.f32.partialorder %v1986, 8.507059e+37
    %v1988 = vand.u32 %v1976, 2147483648
    %v1989 = vor.u32 1.1754944e-38, %v1988
    %v1990 = vsel %vm1987, %v1989, %v1985
    %v1991 = vmul.f32 1.0, %v1990
    %v1992 = vtanh.pop %v1935
    %v1993 = vmul.f32 %v1991, %v1881
    %1995 = vrot.lane.b32.xlu0 %v1992, 96
    %v1996 = vpop.permute.xlu0 %1995
    %v1998 = vmul.f32 %v1991, %v1996
    %2000 = vrot.lane.b32.xlu0 %v1998, 16
    %v2001 = vpop.permute.xlu0 %2000
    %v2003 = vadd.f32 %v1993, %v2001
    %v2004 = vtanh.pop %v2003
    %2006 = vrot.lane.b32.xlu0 %v2004, 32
    %v2007 = vpop.permute.xlu0 %2006
    %v2009 = vmul.f32 %v1991, %v2007
    %v2010 = vsel %vm596, %v1972, 0.0
    %2012 = vrot.lane.b32.xlu0 %v2010, 80
    %v2013 = vpop.permute.xlu0 %2012
    %s2015 = scalar_lea.vmem %s10, 4
    %2016 = vst.msk [vmem:[%s2015] sm:$0xf] %vm445, %v2013
    %v2017 = vsel %vm608, %v2009, 0.0
    %2019 = vrot.lane.b32.xlu0 %v2017, 32
    %v2020 = vpop.permute.xlu0 %2019
    %s2022 = scalar_lea.vmem %s10, 24
    %2023 = vst.msk [vmem:[%s2022] sm:$0xf] %vm458, %v2020
    %v2024 = vsel %vm596, %v1972, %v1867
    %v2025 = vsel %vm596, %v1966, %v1880
    %v2026 = vsel %vm608, %v2009, %v1873
    %v2027 = vsel %vm608, %v2003, %v1881
    %v2028 = vld [vmem:[%s167] sm:$0xf]
    %2030 = vrot.lane.b32.xlu0 %v2024, 80
    %v2031 = vpop.permute.xlu0 %2030
    %v2032 = vsel %vm90, %v2031, 0
    %2034 = vmatpush.msra.mxu0 0.0
    %2035 = vmatpush.msra.mxu0 0.0
    %2036 = vmatpush.msra.mxu0 0.0
    %2037 = vmatpush.msra.mxu0 0.0
    %2038 = vmatpush.msra.mxu0 0.0
    %2039 = vmatpush.msra.mxu0 0.0
    %2040 = vmatpush.msra.mxu0 0.0
    %2041 = vmatpush.msra.mxu0 0.0
    %2042 = vmatpush.msra.mxu0 0.0
    %2043 = vmatpush.msra.mxu0 0.0
    %2044 = vmatpush.msra.mxu0 0.0
    %2045 = vmatpush.msra.mxu0 0.0
    %2046 = vmatpush.msra.mxu0 0.0
    %2047 = vmatpush.msra.mxu0 0.0
    %2048 = vmatpush.msra.mxu0 %v1742
    %2049 = vmatpush.msra.mxu0 %v1741
    %2050 = vmatmul.f32.gmra.mxu0 %v2032
    %v2051 = vpop.f32.mrf.mxu0
    %v2052 = vadd.f32 0.0, %v2051
    %2053 = vdwg.mxu0
    %v2054 = vadd.f32 %v2028, %v2052
    %v2055 = vld [vmem:[%s248] sm:$0xf]
    %2057 = vrot.lane.b32.xlu0 %v2026, 16
    %v2058 = vpop.permute.xlu0 %2057
    %v2059 = vsel %vm90, %v2058, 0
    %2061 = vmatpush.msra.mxu0 0.0
    %2062 = vmatpush.msra.mxu0 0.0
    %2063 = vmatpush.msra.mxu0 0.0
    %2064 = vmatpush.msra.mxu0 0.0
    %2065 = vmatpush.msra.mxu0 0.0
    %2066 = vmatpush.msra.mxu0 0.0
    %2067 = vmatpush.msra.mxu0 0.0
    %2068 = vmatpush.msra.mxu0 0.0
    %2069 = vmatpush.msra.mxu0 0.0
    %2070 = vmatpush.msra.mxu0 0.0
    %2071 = vmatpush.msra.mxu0 0.0
    %2072 = vmatpush.msra.mxu0 0.0
    %2073 = vmatpush.msra.mxu0 0.0
    %2074 = vmatpush.msra.mxu0 0.0
    %2075 = vmatpush.msra.mxu0 %v1744
    %2076 = vmatpush.msra.mxu0 %v1743
    %2077 = vmatmul.f32.gmra.mxu0 %v2059
    %v2078 = vpop.f32.mrf.mxu0
    %v2079 = vadd.f32 0.0, %v2078
    %2080 = vdwg.mxu0
    %2082 = vrot.lane.b32.xlu0 %v2079, 64
    %v2083 = vpop.permute.xlu0 %2082
    %v2085 = vadd.f32 %v2055, %v2083
    %v2086 = vxor.u32 %v2054, 2147483648
    %v2087 = vmul.f32 %v2086, 1.442695
    %v2088 = vpow.pop %v2087
    %v2089 = vadd.f32 %v2088, 1.0
    %v2090 = vrcp.pop %v2089
    %v2091 = vmul.f32 %v2089, %v2090
    %v2092 = vsub.f32 1.0, %v2091
    %v2093 = vmul.f32 %v2090, %v2092
    %v2094 = vadd.f32 %v2090, %v2093
    %vm2095 = vweird.f32 %v2089
    %vm2096 = vweird.f32 %v2090
    %vm2097 = vmor %vm2095, %vm2096
    %v2098 = vsel %vm2097, %v2090, %v2094
    %v2099 = vand.u32 2147483647, %v2089
    %vm2100 = vcmp.eq.f32.partialorder %v2099, 8.507059e+37
    %v2101 = vand.u32 %v2089, 2147483648
    %v2102 = vor.u32 1.1754944e-38, %v2101
    %v2103 = vsel %vm2100, %v2102, %v2098
    %v2104 = vmul.f32 1.0, %v2103
    %v2105 = vtanh.pop %v2054
    %v2106 = vmul.f32 %v2104, %v2025
    %2108 = vrot.lane.b32.xlu0 %v2105, 96
    %v2109 = vpop.permute.xlu0 %2108
    %v2111 = vmul.f32 %v2104, %v2109
    %2113 = vrot.lane.b32.xlu0 %v2111, 16
    %v2114 = vpop.permute.xlu0 %2113
    %v2116 = vadd.f32 %v2106, %v2114
    %v2117 = vtanh.pop %v2116
    %2119 = vrot.lane.b32.xlu0 %v2117, 32
    %v2120 = vpop.permute.xlu0 %2119
    %v2122 = vmul.f32 %v2104, %v2120
    %v2123 = vxor.u32 %v2085, 2147483648
    %v2124 = vmul.f32 %v2123, 1.442695
    %v2125 = vpow.pop %v2124
    %v2126 = vadd.f32 %v2125, 1.0
    %v2127 = vrcp.pop %v2126
    %v2128 = vmul.f32 %v2126, %v2127
    %v2129 = vsub.f32 1.0, %v2128
    %v2130 = vmul.f32 %v2127, %v2129
    %v2131 = vadd.f32 %v2127, %v2130
    %vm2132 = vweird.f32 %v2126
    %vm2133 = vweird.f32 %v2127
    %vm2134 = vmor %vm2132, %vm2133
    %v2135 = vsel %vm2134, %v2127, %v2131
    %v2136 = vand.u32 2147483647, %v2126
    %vm2137 = vcmp.eq.f32.partialorder %v2136, 8.507059e+37
    %v2138 = vand.u32 %v2126, 2147483648
    %v2139 = vor.u32 1.1754944e-38, %v2138
    %v2140 = vsel %vm2137, %v2139, %v2135
    %v2141 = vmul.f32 1.0, %v2140
    %v2142 = vtanh.pop %v2085
    %v2143 = vmul.f32 %v2141, %v2027
    %2145 = vrot.lane.b32.xlu0 %v2142, 96
    %v2146 = vpop.permute.xlu0 %2145
    %v2148 = vmul.f32 %v2141, %v2146
    %2150 = vrot.lane.b32.xlu0 %v2148, 16
    %v2151 = vpop.permute.xlu0 %2150
    %v2153 = vadd.f32 %v2143, %v2151
    %v2154 = vtanh.pop %v2153
    %2156 = vrot.lane.b32.xlu0 %v2154, 32
    %v2157 = vpop.permute.xlu0 %2156
    %v2159 = vmul.f32 %v2141, %v2157
    %v2160 = vsel %vm758, %v2122, 0.0
    %2162 = vrot.lane.b32.xlu0 %v2160, 80
    %v2163 = vpop.permute.xlu0 %2162
    %s2165 = scalar_lea.vmem %s10, 8
    %2166 = vst.msk [vmem:[%s2165] sm:$0xf] %vm445, %v2163
    %v2167 = vsel %vm770, %v2159, 0.0
    %2169 = vrot.lane.b32.xlu0 %v2167, 32
    %v2170 = vpop.permute.xlu0 %2169
    %s2172 = scalar_lea.vmem %s10, 20
    %2173 = vst.msk [vmem:[%s2172] sm:$0xf] %vm458, %v2170
    %v2174 = vsel %vm758, %v2122, %v2024
    %v2175 = vsel %vm758, %v2116, %v2025
    %v2176 = vsel %vm770, %v2159, %v2026
    %v2177 = vsel %vm770, %v2153, %v2027
    %v2178 = vld [vmem:[%s194] sm:$0xf]
    %2180 = vrot.lane.b32.xlu0 %v2174, 80
    %v2181 = vpop.permute.xlu0 %2180
    %v2182 = vsel %vm90, %v2181, 0
    %2184 = vmatpush.msra.mxu0 0.0
    %2185 = vmatpush.msra.mxu0 0.0
    %2186 = vmatpush.msra.mxu0 0.0
    %2187 = vmatpush.msra.mxu0 0.0
    %2188 = vmatpush.msra.mxu0 0.0
    %2189 = vmatpush.msra.mxu0 0.0
    %2190 = vmatpush.msra.mxu0 0.0
    %2191 = vmatpush.msra.mxu0 0.0
    %2192 = vmatpush.msra.mxu0 0.0
    %2193 = vmatpush.msra.mxu0 0.0
    %2194 = vmatpush.msra.mxu0 0.0
    %2195 = vmatpush.msra.mxu0 0.0
    %2196 = vmatpush.msra.mxu0 0.0
    %2197 = vmatpush.msra.mxu0 0.0
    %2198 = vmatpush.msra.mxu0 %v1742
    %2199 = vmatpush.msra.mxu0 %v1741
    %2200 = vmatmul.f32.gmra.mxu0 %v2182
    %v2201 = vpop.f32.mrf.mxu0
    %v2202 = vadd.f32 0.0, %v2201
    %2203 = vdwg.mxu0
    %v2204 = vadd.f32 %v2178, %v2202
    %v2205 = vld [vmem:[%s221] sm:$0xf]
    %2207 = vrot.lane.b32.xlu0 %v2176, 16
    %v2208 = vpop.permute.xlu0 %2207
    %v2209 = vsel %vm90, %v2208, 0
    %2211 = vmatpush.msra.mxu0 0.0
    %2212 = vmatpush.msra.mxu0 0.0
    %2213 = vmatpush.msra.mxu0 0.0
    %2214 = vmatpush.msra.mxu0 0.0
    %2215 = vmatpush.msra.mxu0 0.0
    %2216 = vmatpush.msra.mxu0 0.0
    %2217 = vmatpush.msra.mxu0 0.0
    %2218 = vmatpush.msra.mxu0 0.0
    %2219 = vmatpush.msra.mxu0 0.0
    %2220 = vmatpush.msra.mxu0 0.0
    %2221 = vmatpush.msra.mxu0 0.0
    %2222 = vmatpush.msra.mxu0 0.0
    %2223 = vmatpush.msra.mxu0 0.0
    %2224 = vmatpush.msra.mxu0 0.0
    %2225 = vmatpush.msra.mxu0 %v1744
    %2226 = vmatpush.msra.mxu0 %v1743
    %2227 = vmatmul.f32.gmra.mxu0 %v2209
    %v2228 = vpop.f32.mrf.mxu0
    %v2229 = vadd.f32 0.0, %v2228
    %2230 = vdwg.mxu0
    %2232 = vrot.lane.b32.xlu0 %v2229, 64
    %v2233 = vpop.permute.xlu0 %2232
    %v2235 = vadd.f32 %v2205, %v2233
    %v2236 = vxor.u32 %v2204, 2147483648
    %v2237 = vmul.f32 %v2236, 1.442695
    %v2238 = vpow.pop %v2237
    %v2239 = vadd.f32 %v2238, 1.0
    %v2240 = vrcp.pop %v2239
    %v2241 = vmul.f32 %v2239, %v2240
    %v2242 = vsub.f32 1.0, %v2241
    %v2243 = vmul.f32 %v2240, %v2242
    %v2244 = vadd.f32 %v2240, %v2243
    %vm2245 = vweird.f32 %v2239
    %vm2246 = vweird.f32 %v2240
    %vm2247 = vmor %vm2245, %vm2246
    %v2248 = vsel %vm2247, %v2240, %v2244
    %v2249 = vand.u32 2147483647, %v2239
    %vm2250 = vcmp.eq.f32.partialorder %v2249, 8.507059e+37
    %v2251 = vand.u32 %v2239, 2147483648
    %v2252 = vor.u32 1.1754944e-38, %v2251
    %v2253 = vsel %vm2250, %v2252, %v2248
    %v2254 = vmul.f32 1.0, %v2253
    %v2255 = vtanh.pop %v2204
    %v2256 = vmul.f32 %v2254, %v2175
    %2258 = vrot.lane.b32.xlu0 %v2255, 96
    %v2259 = vpop.permute.xlu0 %2258
    %v2261 = vmul.f32 %v2254, %v2259
    %2263 = vrot.lane.b32.xlu0 %v2261, 16
    %v2264 = vpop.permute.xlu0 %2263
    %v2266 = vadd.f32 %v2256, %v2264
    %v2267 = vtanh.pop %v2266
    %2269 = vrot.lane.b32.xlu0 %v2267, 32
    %v2270 = vpop.permute.xlu0 %2269
    %v2272 = vmul.f32 %v2254, %v2270
    %v2273 = vxor.u32 %v2235, 2147483648
    %v2274 = vmul.f32 %v2273, 1.442695
    %v2275 = vpow.pop %v2274
    %v2276 = vadd.f32 %v2275, 1.0
    %v2277 = vrcp.pop %v2276
    %v2278 = vmul.f32 %v2276, %v2277
    %v2279 = vsub.f32 1.0, %v2278
    %v2280 = vmul.f32 %v2277, %v2279
    %v2281 = vadd.f32 %v2277, %v2280
    %vm2282 = vweird.f32 %v2276
    %vm2283 = vweird.f32 %v2277
    %vm2284 = vmor %vm2282, %vm2283
    %v2285 = vsel %vm2284, %v2277, %v2281
    %v2286 = vand.u32 2147483647, %v2276
    %vm2287 = vcmp.eq.f32.partialorder %v2286, 8.507059e+37
    %v2288 = vand.u32 %v2276, 2147483648
    %v2289 = vor.u32 1.1754944e-38, %v2288
    %v2290 = vsel %vm2287, %v2289, %v2285
    %v2291 = vmul.f32 1.0, %v2290
    %v2292 = vtanh.pop %v2235
    %v2293 = vmul.f32 %v2291, %v2177
    %2295 = vrot.lane.b32.xlu0 %v2292, 96
    %v2296 = vpop.permute.xlu0 %2295
    %v2298 = vmul.f32 %v2291, %v2296
    %2300 = vrot.lane.b32.xlu0 %v2298, 16
    %v2301 = vpop.permute.xlu0 %2300
    %v2303 = vadd.f32 %v2293, %v2301
    %v2304 = vtanh.pop %v2303
    %2306 = vrot.lane.b32.xlu0 %v2304, 32
    %v2307 = vpop.permute.xlu0 %2306
    %v2309 = vmul.f32 %v2291, %v2307
    %v2310 = vsel %vm920, %v2272, 0.0
    %2312 = vrot.lane.b32.xlu0 %v2310, 80
    %v2313 = vpop.permute.xlu0 %2312
    %s2315 = scalar_lea.vmem %s10, 12
    %2316 = vst.msk [vmem:[%s2315] sm:$0xf] %vm445, %v2313
    %v2317 = vsel %vm932, %v2309, 0.0
    %2319 = vrot.lane.b32.xlu0 %v2317, 32
    %v2320 = vpop.permute.xlu0 %2319
    %s2322 = scalar_lea.vmem %s10, 16
    %2323 = vst.msk [vmem:[%s2322] sm:$0xf] %vm458, %v2320
    %v2324 = vsel %vm920, %v2272, %v2174
    %v2325 = vsel %vm920, %v2266, %v2175
    %v2326 = vsel %vm932, %v2309, %v2176
    %v2327 = vsel %vm932, %v2303, %v2177
    %v2328 = vld [vmem:[%s221] sm:$0xf]
    %2330 = vrot.lane.b32.xlu0 %v2324, 80
    %v2331 = vpop.permute.xlu0 %2330
    %v2332 = vsel %vm90, %v2331, 0
    %2334 = vmatpush.msra.mxu0 0.0
    %2335 = vmatpush.msra.mxu0 0.0
    %2336 = vmatpush.msra.mxu0 0.0
    %2337 = vmatpush.msra.mxu0 0.0
    %2338 = vmatpush.msra.mxu0 0.0
    %2339 = vmatpush.msra.mxu0 0.0
    %2340 = vmatpush.msra.mxu0 0.0
    %2341 = vmatpush.msra.mxu0 0.0
    %2342 = vmatpush.msra.mxu0 0.0
    %2343 = vmatpush.msra.mxu0 0.0
    %2344 = vmatpush.msra.mxu0 0.0
    %2345 = vmatpush.msra.mxu0 0.0
    %2346 = vmatpush.msra.mxu0 0.0
    %2347 = vmatpush.msra.mxu0 0.0
    %2348 = vmatpush.msra.mxu0 %v1742
    %2349 = vmatpush.msra.mxu0 %v1741
    %2350 = vmatmul.f32.gmra.mxu0 %v2332
    %v2351 = vpop.f32.mrf.mxu0
    %v2352 = vadd.f32 0.0, %v2351
    %2353 = vdwg.mxu0
    %v2354 = vadd.f32 %v2328, %v2352
    %v2355 = vld [vmem:[%s194] sm:$0xf]
    %2357 = vrot.lane.b32.xlu0 %v2326, 16
    %v2358 = vpop.permute.xlu0 %2357
    %v2359 = vsel %vm90, %v2358, 0
    %2361 = vmatpush.msra.mxu0 0.0
    %2362 = vmatpush.msra.mxu0 0.0
    %2363 = vmatpush.msra.mxu0 0.0
    %2364 = vmatpush.msra.mxu0 0.0
    %2365 = vmatpush.msra.mxu0 0.0
    %2366 = vmatpush.msra.mxu0 0.0
    %2367 = vmatpush.msra.mxu0 0.0
    %2368 = vmatpush.msra.mxu0 0.0
    %2369 = vmatpush.msra.mxu0 0.0
    %2370 = vmatpush.msra.mxu0 0.0
    %2371 = vmatpush.msra.mxu0 0.0
    %2372 = vmatpush.msra.mxu0 0.0
    %2373 = vmatpush.msra.mxu0 0.0
    %2374 = vmatpush.msra.mxu0 0.0
    %2375 = vmatpush.msra.mxu0 %v1744
    %2376 = vmatpush.msra.mxu0 %v1743
    %2377 = vmatmul.f32.gmra.mxu0 %v2359
    %v2378 = vpop.f32.mrf.mxu0
    %v2379 = vadd.f32 0.0, %v2378
    %2380 = vdwg.mxu0
    %2382 = vrot.lane.b32.xlu0 %v2379, 64
    %v2383 = vpop.permute.xlu0 %2382
    %v2385 = vadd.f32 %v2355, %v2383
    %v2386 = vxor.u32 %v2354, 2147483648
    %v2387 = vmul.f32 %v2386, 1.442695
    %v2388 = vpow.pop %v2387
    %v2389 = vadd.f32 %v2388, 1.0
    %v2390 = vrcp.pop %v2389
    %v2391 = vmul.f32 %v2389, %v2390
    %v2392 = vsub.f32 1.0, %v2391
    %v2393 = vmul.f32 %v2390, %v2392
    %v2394 = vadd.f32 %v2390, %v2393
    %vm2395 = vweird.f32 %v2389
    %vm2396 = vweird.f32 %v2390
    %vm2397 = vmor %vm2395, %vm2396
    %v2398 = vsel %vm2397, %v2390, %v2394
    %v2399 = vand.u32 2147483647, %v2389
    %vm2400 = vcmp.eq.f32.partialorder %v2399, 8.507059e+37
    %v2401 = vand.u32 %v2389, 2147483648
    %v2402 = vor.u32 1.1754944e-38, %v2401
    %v2403 = vsel %vm2400, %v2402, %v2398
    %v2404 = vmul.f32 1.0, %v2403
    %v2405 = vtanh.pop %v2354
    %v2406 = vmul.f32 %v2404, %v2325
    %2408 = vrot.lane.b32.xlu0 %v2405, 96
    %v2409 = vpop.permute.xlu0 %2408
    %v2411 = vmul.f32 %v2404, %v2409
    %2413 = vrot.lane.b32.xlu0 %v2411, 16
    %v2414 = vpop.permute.xlu0 %2413
    %v2416 = vadd.f32 %v2406, %v2414
    %v2417 = vtanh.pop %v2416
    %2419 = vrot.lane.b32.xlu0 %v2417, 32
    %v2420 = vpop.permute.xlu0 %2419
    %v2422 = vmul.f32 %v2404, %v2420
    %v2423 = vxor.u32 %v2385, 2147483648
    %v2424 = vmul.f32 %v2423, 1.442695
    %v2425 = vpow.pop %v2424
    %v2426 = vadd.f32 %v2425, 1.0
    %v2427 = vrcp.pop %v2426
    %v2428 = vmul.f32 %v2426, %v2427
    %v2429 = vsub.f32 1.0, %v2428
    %v2430 = vmul.f32 %v2427, %v2429
    %v2431 = vadd.f32 %v2427, %v2430
    %vm2432 = vweird.f32 %v2426
    %vm2433 = vweird.f32 %v2427
    %vm2434 = vmor %vm2432, %vm2433
    %v2435 = vsel %vm2434, %v2427, %v2431
    %v2436 = vand.u32 2147483647, %v2426
    %vm2437 = vcmp.eq.f32.partialorder %v2436, 8.507059e+37
    %v2438 = vand.u32 %v2426, 2147483648
    %v2439 = vor.u32 1.1754944e-38, %v2438
    %v2440 = vsel %vm2437, %v2439, %v2435
    %v2441 = vmul.f32 1.0, %v2440
    %v2442 = vtanh.pop %v2385
    %v2443 = vmul.f32 %v2441, %v2327
    %2445 = vrot.lane.b32.xlu0 %v2442, 96
    %v2446 = vpop.permute.xlu0 %2445
    %v2448 = vmul.f32 %v2441, %v2446
    %2450 = vrot.lane.b32.xlu0 %v2448, 16
    %v2451 = vpop.permute.xlu0 %2450
    %v2453 = vadd.f32 %v2443, %v2451
    %v2454 = vtanh.pop %v2453
    %2456 = vrot.lane.b32.xlu0 %v2454, 32
    %v2457 = vpop.permute.xlu0 %2456
    %v2459 = vmul.f32 %v2441, %v2457
    %v2460 = vsel %vm932, %v2422, 0.0
    %2462 = vrot.lane.b32.xlu0 %v2460, 80
    %v2463 = vpop.permute.xlu0 %2462
    %2465 = vst.msk [vmem:[%s2322] sm:$0xf] %vm445, %v2463
    %v2466 = vsel %vm920, %v2459, 0.0
    %2468 = vrot.lane.b32.xlu0 %v2466, 32
    %v2469 = vpop.permute.xlu0 %2468
    %2471 = vst.msk [vmem:[%s2315] sm:$0xf] %vm458, %v2469
    %v2472 = vsel %vm932, %v2422, %v2324
    %v2473 = vsel %vm932, %v2416, %v2325
    %v2474 = vsel %vm920, %v2459, %v2326
    %v2475 = vsel %vm920, %v2453, %v2327
    %v2476 = vld [vmem:[%s248] sm:$0xf]
    %2478 = vrot.lane.b32.xlu0 %v2472, 80
    %v2479 = vpop.permute.xlu0 %2478
    %v2480 = vsel %vm90, %v2479, 0
    %2482 = vmatpush.msra.mxu0 0.0
    %2483 = vmatpush.msra.mxu0 0.0
    %2484 = vmatpush.msra.mxu0 0.0
    %2485 = vmatpush.msra.mxu0 0.0
    %2486 = vmatpush.msra.mxu0 0.0
    %2487 = vmatpush.msra.mxu0 0.0
    %2488 = vmatpush.msra.mxu0 0.0
    %2489 = vmatpush.msra.mxu0 0.0
    %2490 = vmatpush.msra.mxu0 0.0
    %2491 = vmatpush.msra.mxu0 0.0
    %2492 = vmatpush.msra.mxu0 0.0
    %2493 = vmatpush.msra.mxu0 0.0
    %2494 = vmatpush.msra.mxu0 0.0
    %2495 = vmatpush.msra.mxu0 0.0
    %2496 = vmatpush.msra.mxu0 %v1742
    %2497 = vmatpush.msra.mxu0 %v1741
    %2498 = vmatmul.f32.gmra.mxu0 %v2480
    %v2499 = vpop.f32.mrf.mxu0
    %v2500 = vadd.f32 0.0, %v2499
    %2501 = vdwg.mxu0
    %v2502 = vadd.f32 %v2476, %v2500
    %v2503 = vld [vmem:[%s167] sm:$0xf]
    %2505 = vrot.lane.b32.xlu0 %v2474, 16
    %v2506 = vpop.permute.xlu0 %2505
    %v2507 = vsel %vm90, %v2506, 0
    %2509 = vmatpush.msra.mxu0 0.0
    %2510 = vmatpush.msra.mxu0 0.0
    %2511 = vmatpush.msra.mxu0 0.0
    %2512 = vmatpush.msra.mxu0 0.0
    %2513 = vmatpush.msra.mxu0 0.0
    %2514 = vmatpush.msra.mxu0 0.0
    %2515 = vmatpush.msra.mxu0 0.0
    %2516 = vmatpush.msra.mxu0 0.0
    %2517 = vmatpush.msra.mxu0 0.0
    %2518 = vmatpush.msra.mxu0 0.0
    %2519 = vmatpush.msra.mxu0 0.0
    %2520 = vmatpush.msra.mxu0 0.0
    %2521 = vmatpush.msra.mxu0 0.0
    %2522 = vmatpush.msra.mxu0 0.0
    %2523 = vmatpush.msra.mxu0 %v1744
    %2524 = vmatpush.msra.mxu0 %v1743
    %2525 = vmatmul.f32.gmra.mxu0 %v2507
    %v2526 = vpop.f32.mrf.mxu0
    %v2527 = vadd.f32 0.0, %v2526
    %2528 = vdwg.mxu0
    %2530 = vrot.lane.b32.xlu0 %v2527, 64
    %v2531 = vpop.permute.xlu0 %2530
    %v2533 = vadd.f32 %v2503, %v2531
    %v2534 = vxor.u32 %v2502, 2147483648
    %v2535 = vmul.f32 %v2534, 1.442695
    %v2536 = vpow.pop %v2535
    %v2537 = vadd.f32 %v2536, 1.0
    %v2538 = vrcp.pop %v2537
    %v2539 = vmul.f32 %v2537, %v2538
    %v2540 = vsub.f32 1.0, %v2539
    %v2541 = vmul.f32 %v2538, %v2540
    %v2542 = vadd.f32 %v2538, %v2541
    %vm2543 = vweird.f32 %v2537
    %vm2544 = vweird.f32 %v2538
    %vm2545 = vmor %vm2543, %vm2544
    %v2546 = vsel %vm2545, %v2538, %v2542
    %v2547 = vand.u32 2147483647, %v2537
    %vm2548 = vcmp.eq.f32.partialorder %v2547, 8.507059e+37
    %v2549 = vand.u32 %v2537, 2147483648
    %v2550 = vor.u32 1.1754944e-38, %v2549
    %v2551 = vsel %vm2548, %v2550, %v2546
    %v2552 = vmul.f32 1.0, %v2551
    %v2553 = vtanh.pop %v2502
    %v2554 = vmul.f32 %v2552, %v2473
    %2556 = vrot.lane.b32.xlu0 %v2553, 96
    %v2557 = vpop.permute.xlu0 %2556
    %v2559 = vmul.f32 %v2552, %v2557
    %2561 = vrot.lane.b32.xlu0 %v2559, 16
    %v2562 = vpop.permute.xlu0 %2561
    %v2564 = vadd.f32 %v2554, %v2562
    %v2565 = vtanh.pop %v2564
    %2567 = vrot.lane.b32.xlu0 %v2565, 32
    %v2568 = vpop.permute.xlu0 %2567
    %v2570 = vmul.f32 %v2552, %v2568
    %v2571 = vxor.u32 %v2533, 2147483648
    %v2572 = vmul.f32 %v2571, 1.442695
    %v2573 = vpow.pop %v2572
    %v2574 = vadd.f32 %v2573, 1.0
    %v2575 = vrcp.pop %v2574
    %v2576 = vmul.f32 %v2574, %v2575
    %v2577 = vsub.f32 1.0, %v2576
    %v2578 = vmul.f32 %v2575, %v2577
    %v2579 = vadd.f32 %v2575, %v2578
    %vm2580 = vweird.f32 %v2574
    %vm2581 = vweird.f32 %v2575
    %vm2582 = vmor %vm2580, %vm2581
    %v2583 = vsel %vm2582, %v2575, %v2579
    %v2584 = vand.u32 2147483647, %v2574
    %vm2585 = vcmp.eq.f32.partialorder %v2584, 8.507059e+37
    %v2586 = vand.u32 %v2574, 2147483648
    %v2587 = vor.u32 1.1754944e-38, %v2586
    %v2588 = vsel %vm2585, %v2587, %v2583
    %v2589 = vmul.f32 1.0, %v2588
    %v2590 = vtanh.pop %v2533
    %v2591 = vmul.f32 %v2589, %v2475
    %2593 = vrot.lane.b32.xlu0 %v2590, 96
    %v2594 = vpop.permute.xlu0 %2593
    %v2596 = vmul.f32 %v2589, %v2594
    %2598 = vrot.lane.b32.xlu0 %v2596, 16
    %v2599 = vpop.permute.xlu0 %2598
    %v2601 = vadd.f32 %v2591, %v2599
    %v2602 = vtanh.pop %v2601
    %2604 = vrot.lane.b32.xlu0 %v2602, 32
    %v2605 = vpop.permute.xlu0 %2604
    %v2607 = vmul.f32 %v2589, %v2605
    %v2608 = vsel %vm770, %v2570, 0.0
    %2610 = vrot.lane.b32.xlu0 %v2608, 80
    %v2611 = vpop.permute.xlu0 %2610
    %2613 = vst.msk [vmem:[%s2172] sm:$0xf] %vm445, %v2611
    %v2614 = vsel %vm758, %v2607, 0.0
    %2616 = vrot.lane.b32.xlu0 %v2614, 32
    %v2617 = vpop.permute.xlu0 %2616
    %2619 = vst.msk [vmem:[%s2165] sm:$0xf] %vm458, %v2617
    %v2620 = vsel %vm770, %v2570, %v2472
    %v2621 = vsel %vm770, %v2564, %v2473
    %v2622 = vsel %vm758, %v2607, %v2474
    %v2623 = vsel %vm758, %v2601, %v2475
    %v2624 = vld [vmem:[%s275] sm:$0xf]
    %2626 = vrot.lane.b32.xlu0 %v2620, 80
    %v2627 = vpop.permute.xlu0 %2626
    %v2628 = vsel %vm90, %v2627, 0
    %2630 = vmatpush.msra.mxu0 0.0
    %2631 = vmatpush.msra.mxu0 0.0
    %2632 = vmatpush.msra.mxu0 0.0
    %2633 = vmatpush.msra.mxu0 0.0
    %2634 = vmatpush.msra.mxu0 0.0
    %2635 = vmatpush.msra.mxu0 0.0
    %2636 = vmatpush.msra.mxu0 0.0
    %2637 = vmatpush.msra.mxu0 0.0
    %2638 = vmatpush.msra.mxu0 0.0
    %2639 = vmatpush.msra.mxu0 0.0
    %2640 = vmatpush.msra.mxu0 0.0
    %2641 = vmatpush.msra.mxu0 0.0
    %2642 = vmatpush.msra.mxu0 0.0
    %2643 = vmatpush.msra.mxu0 0.0
    %2644 = vmatpush.msra.mxu0 %v1742
    %2645 = vmatpush.msra.mxu0 %v1741
    %2646 = vmatmul.f32.gmra.mxu0 %v2628
    %v2647 = vpop.f32.mrf.mxu0
    %v2648 = vadd.f32 0.0, %v2647
    %2649 = vdwg.mxu0
    %v2650 = vadd.f32 %v2624, %v2648
    %v2651 = vld [vmem:[%s140] sm:$0xf]
    %2653 = vrot.lane.b32.xlu0 %v2622, 16
    %v2654 = vpop.permute.xlu0 %2653
    %v2655 = vsel %vm90, %v2654, 0
    %2657 = vmatpush.msra.mxu0 0.0
    %2658 = vmatpush.msra.mxu0 0.0
    %2659 = vmatpush.msra.mxu0 0.0
    %2660 = vmatpush.msra.mxu0 0.0
    %2661 = vmatpush.msra.mxu0 0.0
    %2662 = vmatpush.msra.mxu0 0.0
    %2663 = vmatpush.msra.mxu0 0.0
    %2664 = vmatpush.msra.mxu0 0.0
    %2665 = vmatpush.msra.mxu0 0.0
    %2666 = vmatpush.msra.mxu0 0.0
    %2667 = vmatpush.msra.mxu0 0.0
    %2668 = vmatpush.msra.mxu0 0.0
    %2669 = vmatpush.msra.mxu0 0.0
    %2670 = vmatpush.msra.mxu0 0.0
    %2671 = vmatpush.msra.mxu0 %v1744
    %2672 = vmatpush.msra.mxu0 %v1743
    %2673 = vmatmul.f32.gmra.mxu0 %v2655
    %v2674 = vpop.f32.mrf.mxu0
    %v2675 = vadd.f32 0.0, %v2674
    %2676 = vdwg.mxu0
    %2678 = vrot.lane.b32.xlu0 %v2675, 64
    %v2679 = vpop.permute.xlu0 %2678
    %v2681 = vadd.f32 %v2651, %v2679
    %v2682 = vxor.u32 %v2650, 2147483648
    %v2683 = vmul.f32 %v2682, 1.442695
    %v2684 = vpow.pop %v2683
    %v2685 = vadd.f32 %v2684, 1.0
    %v2686 = vrcp.pop %v2685
    %v2687 = vmul.f32 %v2685, %v2686
    %v2688 = vsub.f32 1.0, %v2687
    %v2689 = vmul.f32 %v2686, %v2688
    %v2690 = vadd.f32 %v2686, %v2689
    %vm2691 = vweird.f32 %v2685
    %vm2692 = vweird.f32 %v2686
    %vm2693 = vmor %vm2691, %vm2692
    %v2694 = vsel %vm2693, %v2686, %v2690
    %v2695 = vand.u32 2147483647, %v2685
    %vm2696 = vcmp.eq.f32.partialorder %v2695, 8.507059e+37
    %v2697 = vand.u32 %v2685, 2147483648
    %v2698 = vor.u32 1.1754944e-38, %v2697
    %v2699 = vsel %vm2696, %v2698, %v2694
    %v2700 = vmul.f32 1.0, %v2699
    %v2701 = vtanh.pop %v2650
    %v2702 = vmul.f32 %v2700, %v2621
    %2704 = vrot.lane.b32.xlu0 %v2701, 96
    %v2705 = vpop.permute.xlu0 %2704
    %v2707 = vmul.f32 %v2700, %v2705
    %2709 = vrot.lane.b32.xlu0 %v2707, 16
    %v2710 = vpop.permute.xlu0 %2709
    %v2712 = vadd.f32 %v2702, %v2710
    %v2713 = vtanh.pop %v2712
    %2715 = vrot.lane.b32.xlu0 %v2713, 32
    %v2716 = vpop.permute.xlu0 %2715
    %v2718 = vmul.f32 %v2700, %v2716
    %v2719 = vxor.u32 %v2681, 2147483648
    %v2720 = vmul.f32 %v2719, 1.442695
    %v2721 = vpow.pop %v2720
    %v2722 = vadd.f32 %v2721, 1.0
    %v2723 = vrcp.pop %v2722
    %v2724 = vmul.f32 %v2722, %v2723
    %v2725 = vsub.f32 1.0, %v2724
    %v2726 = vmul.f32 %v2723, %v2725
    %v2727 = vadd.f32 %v2723, %v2726
    %vm2728 = vweird.f32 %v2722
    %vm2729 = vweird.f32 %v2723
    %vm2730 = vmor %vm2728, %vm2729
    %v2731 = vsel %vm2730, %v2723, %v2727
    %v2732 = vand.u32 2147483647, %v2722
    %vm2733 = vcmp.eq.f32.partialorder %v2732, 8.507059e+37
    %v2734 = vand.u32 %v2722, 2147483648
    %v2735 = vor.u32 1.1754944e-38, %v2734
    %v2736 = vsel %vm2733, %v2735, %v2731
    %v2737 = vmul.f32 1.0, %v2736
    %v2738 = vtanh.pop %v2681
    %v2739 = vmul.f32 %v2737, %v2623
    %2741 = vrot.lane.b32.xlu0 %v2738, 96
    %v2742 = vpop.permute.xlu0 %2741
    %v2744 = vmul.f32 %v2737, %v2742
    %2746 = vrot.lane.b32.xlu0 %v2744, 16
    %v2747 = vpop.permute.xlu0 %2746
    %v2749 = vadd.f32 %v2739, %v2747
    %v2750 = vtanh.pop %v2749
    %2752 = vrot.lane.b32.xlu0 %v2750, 32
    %v2753 = vpop.permute.xlu0 %2752
    %v2755 = vmul.f32 %v2737, %v2753
    %v2756 = vsel %vm608, %v2718, 0.0
    %2758 = vrot.lane.b32.xlu0 %v2756, 80
    %v2759 = vpop.permute.xlu0 %2758
    %2761 = vst.msk [vmem:[%s2022] sm:$0xf] %vm445, %v2759
    %v2762 = vsel %vm596, %v2755, 0.0
    %2764 = vrot.lane.b32.xlu0 %v2762, 32
    %v2765 = vpop.permute.xlu0 %2764
    %2767 = vst.msk [vmem:[%s2015] sm:$0xf] %vm458, %v2765
    %v2768 = vsel %vm608, %v2718, %v2620
    %v2769 = vsel %vm608, %v2712, %v2621
    %v2770 = vsel %vm596, %v2755, %v2622
    %v2771 = vsel %vm596, %v2749, %v2623
    %v2772 = vld [vmem:[%s302] sm:$0xf]
    %2774 = vrot.lane.b32.xlu0 %v2768, 80
    %v2775 = vpop.permute.xlu0 %2774
    %v2776 = vsel %vm90, %v2775, 0
    %2778 = vmatpush.msra.mxu0 0.0
    %2779 = vmatpush.msra.mxu0 0.0
    %2780 = vmatpush.msra.mxu0 0.0
    %2781 = vmatpush.msra.mxu0 0.0
    %2782 = vmatpush.msra.mxu0 0.0
    %2783 = vmatpush.msra.mxu0 0.0
    %2784 = vmatpush.msra.mxu0 0.0
    %2785 = vmatpush.msra.mxu0 0.0
    %2786 = vmatpush.msra.mxu0 0.0
    %2787 = vmatpush.msra.mxu0 0.0
    %2788 = vmatpush.msra.mxu0 0.0
    %2789 = vmatpush.msra.mxu0 0.0
    %2790 = vmatpush.msra.mxu0 0.0
    %2791 = vmatpush.msra.mxu0 0.0
    %2792 = vmatpush.msra.mxu0 %v1742
    %2793 = vmatpush.msra.mxu0 %v1741
    %2794 = vmatmul.f32.gmra.mxu0 %v2776
    %v2795 = vpop.f32.mrf.mxu0
    %v2796 = vadd.f32 0.0, %v2795
    %2797 = vdwg.mxu0
    %v2798 = vadd.f32 %v2772, %v2796
    %v2799 = vld [vmem:[#allocation2] sm:$0xf]
    %2801 = vrot.lane.b32.xlu0 %v2770, 16
    %v2802 = vpop.permute.xlu0 %2801
    %v2803 = vsel %vm90, %v2802, 0
    %2805 = vmatpush.msra.mxu0 0.0
    %2806 = vmatpush.msra.mxu0 0.0
    %2807 = vmatpush.msra.mxu0 0.0
    %2808 = vmatpush.msra.mxu0 0.0
    %2809 = vmatpush.msra.mxu0 0.0
    %2810 = vmatpush.msra.mxu0 0.0
    %2811 = vmatpush.msra.mxu0 0.0
    %2812 = vmatpush.msra.mxu0 0.0
    %2813 = vmatpush.msra.mxu0 0.0
    %2814 = vmatpush.msra.mxu0 0.0
    %2815 = vmatpush.msra.mxu0 0.0
    %2816 = vmatpush.msra.mxu0 0.0
    %2817 = vmatpush.msra.mxu0 0.0
    %2818 = vmatpush.msra.mxu0 0.0
    %2819 = vmatpush.msra.mxu0 %v1744
    %2820 = vmatpush.msra.mxu0 %v1743
    %2821 = vmatmul.f32.gmra.mxu0 %v2803
    %v2822 = vpop.f32.mrf.mxu0
    %v2823 = vadd.f32 0.0, %v2822
    %2824 = vdwg.mxu0
    %2826 = vrot.lane.b32.xlu0 %v2823, 64
    %v2827 = vpop.permute.xlu0 %2826
    %v2829 = vadd.f32 %v2799, %v2827
    %v2830 = vxor.u32 %v2798, 2147483648
    %v2831 = vmul.f32 %v2830, 1.442695
    %v2832 = vpow.pop %v2831
    %v2833 = vadd.f32 %v2832, 1.0
    %v2834 = vrcp.pop %v2833
    %v2835 = vmul.f32 %v2833, %v2834
    %v2836 = vsub.f32 1.0, %v2835
    %v2837 = vmul.f32 %v2834, %v2836
    %v2838 = vadd.f32 %v2834, %v2837
    %vm2839 = vweird.f32 %v2833
    %vm2840 = vweird.f32 %v2834
    %vm2841 = vmor %vm2839, %vm2840
    %v2842 = vsel %vm2841, %v2834, %v2838
    %v2843 = vand.u32 2147483647, %v2833
    %vm2844 = vcmp.eq.f32.partialorder %v2843, 8.507059e+37
    %v2845 = vand.u32 %v2833, 2147483648
    %v2846 = vor.u32 1.1754944e-38, %v2845
    %v2847 = vsel %vm2844, %v2846, %v2842
    %v2848 = vmul.f32 1.0, %v2847
    %v2849 = vtanh.pop %v2798
    %v2850 = vmul.f32 %v2848, %v2769
    %2852 = vrot.lane.b32.xlu0 %v2849, 96
    %v2853 = vpop.permute.xlu0 %2852
    %v2855 = vmul.f32 %v2848, %v2853
    %2857 = vrot.lane.b32.xlu0 %v2855, 16
    %v2858 = vpop.permute.xlu0 %2857
    %v2860 = vadd.f32 %v2850, %v2858
    %v2861 = vtanh.pop %v2860
    %2863 = vrot.lane.b32.xlu0 %v2861, 32
    %v2864 = vpop.permute.xlu0 %2863
    %v2866 = vmul.f32 %v2848, %v2864
    %v2867 = vxor.u32 %v2829, 2147483648
    %v2868 = vmul.f32 %v2867, 1.442695
    %v2869 = vpow.pop %v2868
    %v2870 = vadd.f32 %v2869, 1.0
    %v2871 = vrcp.pop %v2870
    %v2872 = vmul.f32 %v2870, %v2871
    %v2873 = vsub.f32 1.0, %v2872
    %v2874 = vmul.f32 %v2871, %v2873
    %v2875 = vadd.f32 %v2871, %v2874
    %vm2876 = vweird.f32 %v2870
    %vm2877 = vweird.f32 %v2871
    %vm2878 = vmor %vm2876, %vm2877
    %v2879 = vsel %vm2878, %v2871, %v2875
    %v2880 = vand.u32 2147483647, %v2870
    %vm2881 = vcmp.eq.f32.partialorder %v2880, 8.507059e+37
    %v2882 = vand.u32 %v2870, 2147483648
    %v2883 = vor.u32 1.1754944e-38, %v2882
    %v2884 = vsel %vm2881, %v2883, %v2879
    %v2885 = vmul.f32 1.0, %v2884
    %v2886 = vtanh.pop %v2829
    %v2887 = vmul.f32 %v2885, %v2771
    %2889 = vrot.lane.b32.xlu0 %v2886, 96
    %v2890 = vpop.permute.xlu0 %2889
    %v2892 = vmul.f32 %v2885, %v2890
    %2894 = vrot.lane.b32.xlu0 %v2892, 16
    %v2895 = vpop.permute.xlu0 %2894
    %v2897 = vadd.f32 %v2887, %v2895
    %v2898 = vtanh.pop %v2897
    %2900 = vrot.lane.b32.xlu0 %v2898, 32
    %v2901 = vpop.permute.xlu0 %2900
    %v2903 = vmul.f32 %v2885, %v2901
    %v2904 = vsel %vm451, %v2866, 0.0
    %2906 = vrot.lane.b32.xlu0 %v2904, 80
    %v2907 = vpop.permute.xlu0 %2906
    %2909 = vst.msk [vmem:[%s1878] sm:$0xf] %vm445, %v2907
    %v2910 = vsel %vm439, %v2903, 0.0
    %2912 = vrot.lane.b32.xlu0 %v2910, 32
    %v2913 = vpop.permute.xlu0 %2912
    %2915 = vst.msk [vmem:[%s10] sm:$0xf] %vm458, %v2913
    // Predicated region
    $region54: #{bilstm_layer_forward.1} parent=1 // pred_check
      _
    $region55: #{bilstm_layer_forward.1} parent=1 // pred_check_branch
      %2917 = sbr.rel (0) target = $region57
    $region56: #{bilstm_layer_forward.1} parent=1 // pred_region
      _
    $region57: #{bilstm_layer_forward.1} parent=1 // pred_fallthru
      _
    // Predicated region
    $region58: #{bilstm_layer_forward.1} parent=1 // pred_check
      _
    $region59: #{bilstm_layer_forward.1} parent=1 // pred_check_branch
      %2919 = sbr.rel (0) target = $region61
    $region60: #{bilstm_layer_forward.1} parent=1 // pred_region
      _
    $region61: #{bilstm_layer_forward.1} parent=1 // pred_fallthru
      _
    %2920 = vsyncpa [#allocation5], 1
    %2921 = vsyncpa [#allocation7], 1

</llo_original>
